<compile_context>
chip_gen: v6e
topology: v6e:2x2x1
jax: 0.10.0
libtpu: 0.0.40
codegen_flags: <defaults>
</compile_context>

<pallas_src>
import functools
import math

import jax
import jax.numpy as jnp
from jax import lax
from jax.experimental import pallas as pl
from jax.experimental.pallas import tpu as pltpu

N_AGGR = 3          # EGConv aggregators: ['sum', 'max', 'min']
PARAM_ROWS = 8      # packed row-parameter tile: (8, 128)
PARAM_W = 128
STATS_W = 128       # lane-dense per-tile per-graph partial-stats width (>= 2*hidden_dim)


# ------------------------------------------------------------------ pass A ----
def _transform_kernel(x_ref, w_ref, b_ref, bases_ref, wexp_ref, *, db, precision):
    """One fused matmul: [bases | lane-expanded comb weights (+bias)]."""
    x = x_ref[...]
    w = w_ref[...]
    y = jnp.dot(x.astype(w.dtype), w,
                preferred_element_type=jnp.float32, precision=precision)
    y = y + b_ref[...]
    bases_ref[...] = y[:, :db]
    wexp_ref[...] = y[:, db:]


# ------------------------------------------------------------------ pass B ----
def _aggregate_kernel(adj_ref, src_ref, srcT_ref, wexp_ref, node_ref, mT_ref, pp_ref,
                      h_ref, stats_ref,
                      sum_ref, max_ref, min_ref,
                      *, heads, bases, fh, skip, precision):
    db = bases * fh                 # width of the bases block
    da = N_AGGR * db                # per-head aggregate-slab width
    hdim = heads * fh               # hidden_dim
    j = pl.program_id(1)

    @pl.when(j == 0)
    def _init():
        sum_ref[...] = jnp.zeros_like(sum_ref)
        max_ref[...] = jnp.full_like(max_ref, -jnp.inf)
        min_ref[...] = jnp.full_like(min_ref, jnp.inf)

    adj = adj_ref[...]                                           # (TM, TN) 0/1 (+self loops)

    # -- 'sum' aggregation: single-pass MXU matmul (bf16 operands by default) --
    sum_ref[...] = sum_ref[...] + jnp.dot(
        adj, src_ref[...], preferred_element_type=jnp.float32, precision=precision)

    # -- 'max' / 'min': incremental accumulation, no (TM, db, TN) temps --
    # per basis column: mask the (TM, TN) candidates, lane-reduce, fold into (TM, db) registers.
    nbr = adj > jnp.asarray(0.5, adj.dtype)                      # (TM, TN)
    lane = lax.broadcasted_iota(jnp.int32, (1, db), 1)           # (1, db)
    mx = max_ref[...]
    mn = min_ref[...]
    for c in range(db):
        vals = srcT_ref[c:c + 1, :]                              # (1, TN) f32 source values
        cmax = jnp.max(jnp.where(nbr, vals, -jnp.inf), axis=-1, keepdims=True)   # (TM, 1)
        cmin = jnp.min(jnp.where(nbr, vals, jnp.inf), axis=-1, keepdims=True)
        sel = lane == c
        mx = jnp.maximum(mx, jnp.where(sel, cmax, -jnp.inf))
        mn = jnp.minimum(mn, jnp.where(sel, cmin, jnp.inf))
    max_ref[...] = mx
    min_ref[...] = mn

    # -- last source block: lane-dense head mixing, bias, skip, per-graph partial stats --
    @pl.when(j == pl.num_programs(1) - 1)
    def _finalize():
        agg = jnp.concatenate([sum_ref[...], max_ref[...], min_ref[...]], axis=1)  # (TM, 3*db)
        wexp = wexp_ref[...]                                                       # (TM, heads*3*db)
        outs = []
        for hd in range(heads):
            p = wexp[:, hd * da:(hd + 1) * da] * agg              # one wide multiply per head
            p = p[:, :db] + p[:, db:2 * db] + p[:, 2 * db:]       # sum over aggregators
            o = p[:, :fh]
            for b in range(1, bases):
                o = o + p[:, b * fh:(b + 1) * fh]                  # sum over bases
            outs.append(o)
        out = jnp.concatenate(outs, axis=1) + pp_ref[0:1, :hdim]   # + EGConv bias
        if skip:
            out = out + node_ref[...]                              # raw f32 node (no bf16 detour)
        h_ref[...] = out

        # per-graph partial GraphNorm stats sum_g([h, h*h]) via an MXU contraction
        hh = jnp.concatenate([out, out * out], axis=1)             # (TM, 2H)
        stats = jnp.dot(mT_ref[...], hh,
                        preferred_element_type=jnp.float32, precision=precision)  # (G, 2H)
        pad = stats_ref.shape[2] - 2 * hdim
        if pad > 0:
            stats = jnp.concatenate(
                [stats, jnp.zeros((stats.shape[0], pad), jnp.float32)], axis=1)
        stats_ref[0] = stats                                       # lane-dense (G, 128) store


# ------------------------------------------------------------------ pass C ----
def _graphnorm_kernel(h_ref, m_ref, bsrc_ref, pp_ref, o_ref, *, precision):
    hdim = h_ref.shape[1]
    h = h_ref[...]
    # broadcast per-graph [mean_scale*mean | inv_std] to the node tile via one MXU matmul
    bc = jnp.dot(m_ref[...], bsrc_ref[...],
                 preferred_element_type=jnp.float32, precision=precision)  # (TM, 2H)
    centered = h - bc[:, :hdim]
    o_ref[...] = jnp.maximum(
        pp_ref[1:2, :hdim] * centered * bc[:, hdim:] + pp_ref[2:3, :hdim], 0.0)


# ------------------------------------------------------------------ wrapper ----
def egconv_layer(node, edge_index, batch, params, *, num_graphs,
                 skip_connection=False, row_tile=128, col_tile=256,
                 matmul_dtype=jnp.bfloat16, precision=None):
    """Pallas implementation of EGConv_layer.forward(node, edge_index, edge_attr, batch_ptr).

    node: (N, H) f32; edge_index: (2, E) int32 ([src; dst], PyG source->target flow);
    batch: (N,) int32 node -> graph id (GraphNorm consumes batch_ptr as this vector).
    Default path uses bf16 MXU operands / DEFAULT precision (adjacency is exact in bf16);
    pass matmul_dtype=jnp.float32, precision=lax.Precision.HIGHEST for full-f32 numerics.
    """
    N, H = node.shape
    heads, bases = params["num_heads"], params["num_bases"]
    assert H % heads == 0
    fh = H // heads
    db = bases * fh
    da = N_AGGR * db
    dwe = heads * da                  # lane-expanded comb-weight width
    G = num_graphs
    assert 2 * H <= STATS_W and H <= PARAM_W

    TM = min(row_tile, N)
    TN = min(col_tile, N)
    assert N % TM == 0 and N % TN == 0
    assert TM % 16 == 0 or TM == N
    assert TN % 128 == 0 or TN == N
    T, S = N // TM, N // TN

    # ---- glue: dense adjacency with EGConv's add_remaining_self_loops semantics ----
    # TODO(synk): for large graphs keep edge/neighbour lists and gather rows via scalar
    # prefetch / manual DMA instead of materializing a dense O(N^2) adjacency.
    src_e, dst_e = edge_index[0], edge_index[1]
    ew = jnp.where(src_e == dst_e, 0.0, 1.0).astype(jnp.float32)      # drop existing self loops
    adj = jnp.zeros((N, N), jnp.float32).at[dst_e, src_e].add(ew) + jnp.eye(N, dtype=jnp.float32)
    adj = adj.astype(matmul_dtype)

    m = jax.nn.one_hot(batch, G, dtype=jnp.float32)                   # (N, G) graph membership
    mT = m.T                                                          # (G, N)

    # ---- packed row parameters: one lane-dense (8,128) tile ----
    pp = jnp.zeros((PARAM_ROWS, PARAM_W), jnp.float32)
    pp = pp.at[0, :H].set(params["conv_bias"])
    pp = pp.at[1, :H].set(params["gn_weight"])
    pp = pp.at[2, :H].set(params["gn_bias"])

    # ---- fused node-transform weight [W_bases | repeat(W_comb, fh)] and its bias row ----
    w_full = jnp.concatenate(
        [params["bases_w"], jnp.repeat(params["comb_w"], fh, axis=1)], axis=1
    ).astype(matmul_dtype)                                            # (H, db + dwe)
    b_full = jnp.concatenate(
        [jnp.zeros((db,), jnp.float32), jnp.repeat(params["comb_bias"], fh)])[None, :]

    # ---- pass A: per-node transform -> bases + lane-expanded comb weights ----
    kernel_a = functools.partial(_transform_kernel, db=db, precision=precision)
    bases_f32, wexp = pl.pallas_call(
        kernel_a,
        out_shape=(jax.ShapeDtypeStruct((N, db), jnp.float32),
                   jax.ShapeDtypeStruct((N, dwe), jnp.float32)),
        grid=(T,),
        in_specs=[pl.BlockSpec((TM, H), lambda i: (i, 0)),
                  pl.BlockSpec((H, db + dwe), lambda i: (0, 0)),
                  pl.BlockSpec((1, db + dwe), lambda i: (0, 0))],
        out_specs=(pl.BlockSpec((TM, db), lambda i: (i, 0)),
                   pl.BlockSpec((TM, dwe), lambda i: (i, 0))),
        compiler_params=pltpu.CompilerParams(dimension_semantics=("parallel",)),
    )(node, w_full, b_full)

    src_mm = bases_f32.astype(matmul_dtype)      # (N, db)  j-streamed MXU operand (bases only)
    srcT = bases_f32.T                           # (db, N)  j-streamed max/min operand (f32, exact)

    # ---- pass B: neighbourhood aggregation + head mixing + per-graph partial stats ----
    kernel_b = functools.partial(_aggregate_kernel, heads=heads, bases=bases, fh=fh,
                                 skip=skip_connection, precision=precision)
    h, stats_part = pl.pallas_call(
        kernel_b,
        out_shape=(jax.ShapeDtypeStruct((N, H), jnp.float32),
                   jax.ShapeDtypeStruct((T, G, STATS_W), jnp.float32)),
        grid=(T, S),
        in_specs=[pl.BlockSpec((TM, TN), lambda i, j: (i, j)),            # adjacency slab
                  pl.BlockSpec((TN, db), lambda i, j: (j, 0)),            # source bases (MXU)
                  pl.BlockSpec((db, TN), lambda i, j: (0, j)),            # source bases^T (max/min)
                  pl.BlockSpec((TM, dwe), lambda i, j: (i, 0)),           # expanded comb weights
                  pl.BlockSpec((TM, H), lambda i, j: (i, 0)),             # raw node (skip path)
                  pl.BlockSpec((G, TM), lambda i, j: (0, i)),             # graph one-hot (transposed)
                  pl.BlockSpec((PARAM_ROWS, PARAM_W), lambda i, j: (0, 0))],
        out_specs=(pl.BlockSpec((TM, H), lambda i, j: (i, 0)),
                   pl.BlockSpec((1, G, STATS_W), lambda i, j: (i, 0, 0))),
        scratch_shapes=[pltpu.VMEM((TM, db), jnp.float32) for _ in range(3)],
        compiler_params=pltpu.CompilerParams(
            dimension_semantics=("parallel", "arbitrary")),
    )(adj, src_mm, srcT, wexp, node, mT, pp)

    # ---- glue: finalize per-graph GraphNorm stats (G x 2H, negligible) ----
    stats = jnp.sum(stats_part, axis=0)[:, :2 * H]                        # (G, 2H)
    cnt = jnp.maximum(jnp.sum(m, axis=0), 1.0)[:, None]                   # empty-graph guard
    mean = stats[:, :H] / cnt
    ex2 = stats[:, H:] / cnt
    alpha = params["gn_mean_scale"][None, :]
    var = jnp.maximum(ex2 - alpha * (2.0 - alpha) * mean * mean, 0.0)
    inv_std = lax.rsqrt(var + 1e-5)
    bsrc = jnp.concatenate([alpha * mean, inv_std], axis=1)               # (G, 2H)

    # ---- pass C: GraphNorm scale/shift + final ReLU ----
    kernel_c = functools.partial(_graphnorm_kernel, precision=precision)
    out = pl.pallas_call(
        kernel_c,
        out_shape=jax.ShapeDtypeStruct((N, H), jnp.float32),
        grid=(T,),
        in_specs=[pl.BlockSpec((TM, H), lambda i: (i, 0)),
                  pl.BlockSpec((TM, G), lambda i: (i, 0)),
                  pl.BlockSpec((G, 2 * H), lambda i: (0, 0)),
                  pl.BlockSpec((PARAM_ROWS, PARAM_W), lambda i: (0, 0))],
        out_specs=pl.BlockSpec((TM, H), lambda i: (i, 0)),
        compiler_params=pltpu.CompilerParams(dimension_semantics=("parallel",)),
    )(h, m, bsrc, pp)
    return out


# ------------------------------------------------------------------ reference ----
def reference(node, edge_index, batch, params, *, num_graphs, skip_connection=False):
    """Pure-JAX reference replicating PyG EGConv(sum,max,min) + GraphNorm + ReLU (full f32)."""
    N, H = node.shape
    heads, bases = params["num_heads"], params["num_bases"]
    fh = H // heads
    db = bases * fh
    hi = lax.Precision.HIGHEST

    bas = jnp.dot(node, params["bases_w"], precision=hi)                 # (N, db)
    wgt = jnp.dot(node, params["comb_w"], precision=hi) + params["comb_bias"]

    # add_remaining_self_loops: drop existing self loops, add one per node
    src, dst = edge_index[0], edge_index[1]
    loop = jnp.arange(N, dtype=src.dtype)
    src2 = jnp.concatenate([src, loop])
    dst2 = jnp.concatenate([dst, loop])
    valid = jnp.concatenate([src != dst, jnp.ones((N,), bool)])[:, None]
    msg = bas[src2]
    agg_sum = jnp.zeros((N, db)).at[dst2].add(jnp.where(valid, msg, 0.0))
    agg_max = jnp.full((N, db), -jnp.inf).at[dst2].max(jnp.where(valid, msg, -jnp.inf))
    agg_min = jnp.full((N, db), jnp.inf).at[dst2].min(jnp.where(valid, msg, jnp.inf))

    w3 = wgt.reshape(N, heads, N_AGGR * bases)
    a3 = jnp.stack([agg_sum, agg_max, agg_min], axis=1).reshape(N, N_AGGR * bases, fh)
    out = jnp.einsum('nhk,nkf->nhf', w3, a3, precision=hi).reshape(N, H) + params["conv_bias"]
    if skip_connection:
        out = node + out

    cnt = jnp.zeros((num_graphs,)).at[batch].add(1.0)[:, None]
    mean = jnp.zeros((num_graphs, H)).at[batch].add(out) / cnt
    c = out - params["gn_mean_scale"] * mean[batch]
    var = jnp.zeros((num_graphs, H)).at[batch].add(c * c) / cnt
    res = params["gn_weight"] * c / jnp.sqrt(var[batch] + 1e-5) + params["gn_bias"]
    return jax.nn.relu(res)


if __name__ == "__main__":
    N, H, G = 256, 32, 4              # 4 graphs x 64 nodes batched into one call, hidden_dim=32
    heads, bases = 4, 4               # EGConv(num_heads=4, num_bases=4)
    fh = H // heads

    key = jax.random.PRNGKey(0)
    ks = jax.random.split(key, 9)
    s = 1.0 / math.sqrt(H)
    params = {
        "num_heads": heads, "num_bases": bases,
        "bases_w": jax.random.normal(ks[0], (H, bases * fh), jnp.float32) * s,
        "comb_w": jax.random.normal(ks[1], (H, heads * bases * N_AGGR), jnp.float32) * s,
        "comb_bias": jax.random.normal(ks[2], (heads * bases * N_AGGR,), jnp.float32) * 0.1,
        "conv_bias": jax.random.normal(ks[3], (H,), jnp.float32) * 0.1,
        "gn_weight": 1.0 + 0.1 * jax.random.normal(ks[4], (H,), jnp.float32),
        "gn_bias": 0.05 * jax.random.normal(ks[5], (H,), jnp.float32),
        "gn_mean_scale": 1.0 + 0.1 * jax.random.normal(ks[6], (H,), jnp.float32),
    }
    node = jax.random.normal(ks[7], (N, H), jnp.float32)

    # 4 ring graphs of 64 nodes each, bidirectional edges (PyG edge_index: [src; dst]).
    npg = N // G
    srcs, dsts = [], []
    for g in range(G):
        base = g * npg
        for i in range(npg):
            a, b = base + i, base + (i + 1) % npg
            srcs += [a, b]
            dsts += [b, a]
    edge_index = jnp.array([srcs, dsts], jnp.int32)               # (2, 512)
    batch = jnp.repeat(jnp.arange(G, dtype=jnp.int32), npg)       # node -> graph id
    # NOTE: the PyTorch module passes `batch_ptr` into GraphNorm; GraphNorm consumes it as the
    # per-node graph-assignment vector, which is what `batch` is here.
    # TODO(synk): edge_attr is accepted by the PyTorch forward but unused by EGConv; ignored.

    # tight correctness check: f32 operands + HIGHEST precision inside the kernels
    for skip in (False, True):
        out = egconv_layer(node, edge_index, batch, params, num_graphs=G,
                           skip_connection=skip,
                           matmul_dtype=jnp.float32, precision=lax.Precision.HIGHEST)
        out = jax.block_until_ready(out)
        ref = reference(node, edge_index, batch, params, num_graphs=G,
                        skip_connection=skip)
        assert out.shape == (N, H) and out.dtype == jnp.float32
        assert jnp.allclose(out, ref, rtol=1e-3, atol=1e-3), f"f32 mismatch (skip={skip})"

    # performance-default path (bf16 MXU operands, single-pass DEFAULT precision) sanity check.
    # Looser tolerance documents the bf16 rounding of the transforms / sum aggregation.
    out_bf = egconv_layer(node, edge_index, batch, params, num_graphs=G,
                          skip_connection=False)
    out_bf = jax.block_until_ready(out_bf)
    ref = reference(node, edge_index, batch, params, num_graphs=G, skip_connection=False)
    assert jnp.allclose(out_bf, ref, rtol=1e-1, atol=1e-1), "bf16 path sanity check failed"

    print("KERNEL_OK")
</pallas_src>

<mosaic_0001>
module attributes {stable_mosaic.version = 11 : i64} {
  func.func @_transform_kernel(%arg0: i32, %arg1: memref<128x32xf32, #tpu.memory_space<vmem>>, %arg2: memref<32x416xf32, #tpu.memory_space<vmem>>, %arg3: memref<1x416xf32, #tpu.memory_space<vmem>>, %arg4: memref<128x32xf32, #tpu.memory_space<vmem>>, %arg5: memref<128x384xf32, #tpu.memory_space<vmem>>) attributes {dimension_semantics = [#tpu.dimension_semantics<parallel>], iteration_bounds = array<i64: 2>, scalar_prefetch = 0 : i64, scratch_operands = 0 : i64, tpu.core_type = #tpu.core_type<tc>, window_params = [{transform_indices = @transform_0, window_bounds = array<i64: 128, 32>}, {pipeline_mode = #tpu.pipeline_mode<synchronous>, transform_indices = @transform_1, window_bounds = array<i64: 32, 416>}, {pipeline_mode = #tpu.pipeline_mode<synchronous>, transform_indices = @transform_2, window_bounds = array<i64: 1, 416>}, {transform_indices = @transform_3, window_bounds = array<i64: 128, 32>}, {transform_indices = @transform_4, window_bounds = array<i64: 128, 384>}]} {
    %c0 = arith.constant 0 : index
    %c0_0 = arith.constant 0 : index
    %0 = vector.load %arg1[%c0, %c0_0] : memref<128x32xf32, #tpu.memory_space<vmem>>, vector<128x32xf32>
    %c0_1 = arith.constant 0 : index
    %c0_2 = arith.constant 0 : index
    %1 = vector.load %arg2[%c0_1, %c0_2] : memref<32x416xf32, #tpu.memory_space<vmem>>, vector<32x416xf32>
    %cst = arith.constant dense<0.000000e+00> : vector<128x416xf32>
    %2 = tpu.matmul %0, %1, %cst {dimension_numbers = #tpu.dot_dimension_numbers<[1], [0], [0], [1], [0, 0, 1, 1], [], []>, precision = #tpu.contract_precision<fp32>} : vector<128x32xf32>, vector<32x416xf32>, vector<128x416xf32> -> vector<128x416xf32>
    %c0_3 = arith.constant 0 : index
    %c0_4 = arith.constant 0 : index
    %3 = vector.load %arg3[%c0_3, %c0_4] : memref<1x416xf32, #tpu.memory_space<vmem>>, vector<1x416xf32>
    %4 = vector.broadcast %3 : vector<1x416xf32> to vector<128x416xf32>
    %5 = arith.addf %2, %4 : vector<128x416xf32>
    %6 = vector.extract_strided_slice %5 {offsets = [0, 0], sizes = [128, 32], strides = [1, 1]} : vector<128x416xf32> to vector<128x32xf32>
    %c0_5 = arith.constant 0 : index
    %c0_6 = arith.constant 0 : index
    %7 = vector.load %arg4[%c0_5, %c0_6] : memref<128x32xf32, #tpu.memory_space<vmem>>, vector<128x32xf32>
    tpu.vector_store %arg4[%c0_5, %c0_6], %6 {strides = array<i32>} : memref<128x32xf32, #tpu.memory_space<vmem>>, vector<128x32xf32>,
    %8 = vector.extract_strided_slice %5 {offsets = [0, 32], sizes = [128, 384], strides = [1, 1]} : vector<128x416xf32> to vector<128x384xf32>
    %c0_7 = arith.constant 0 : index
    %c0_8 = arith.constant 0 : index
    %9 = vector.load %arg5[%c0_7, %c0_8] : memref<128x384xf32, #tpu.memory_space<vmem>>, vector<128x384xf32>
    tpu.vector_store %arg5[%c0_7, %c0_8], %8 {strides = array<i32>} : memref<128x384xf32, #tpu.memory_space<vmem>>, vector<128x384xf32>,
    return
  }
  func.func @transform_0(%arg0: i32) -> (i32, i32) {
    %c0_i32 = arith.constant 0 : i32
    %c0_i32_0 = arith.constant 0 : i32
    return %arg0, %c0_i32 : i32, i32
  }
  func.func @transform_1(%arg0: i32) -> (i32, i32) {
    %c0_i32 = arith.constant 0 : i32
    %c0_i32_0 = arith.constant 0 : i32
    %c0_i32_1 = arith.constant 0 : i32
    return %c0_i32, %c0_i32_0 : i32, i32
  }
  func.func @transform_2(%arg0: i32) -> (i32, i32) {
    %c0_i32 = arith.constant 0 : i32
    %c0_i32_0 = arith.constant 0 : i32
    %c0_i32_1 = arith.constant 0 : i32
    return %c0_i32, %c0_i32_0 : i32, i32
  }
  func.func @transform_3(%arg0: i32) -> (i32, i32) {
    %c0_i32 = arith.constant 0 : i32
    %c0_i32_0 = arith.constant 0 : i32
    return %arg0, %c0_i32 : i32, i32
  }
  func.func @transform_4(%arg0: i32) -> (i32, i32) {
    %c0_i32 = arith.constant 0 : i32
    %c0_i32_0 = arith.constant 0 : i32
    return %arg0, %c0_i32 : i32, i32
  }
}

</mosaic_0001>

<llo_original>
// kernel: tpu_custom_call.1
$region0: #{tpu_custom_call.1}
  #allocation0 [shape = 'u32[]', space=smem, size = 0x4, offset = 0x4, fixed_abs, tag = 'smem constant byte address 0x4 - core index']
  #allocation1 [shape = 'u32[144,128]{1,0:T(1,128)}', space=vmem, size = 0x12000, scoped, tag = 'internal scratch']
  %s0 = inlined_call_operand.vmem [shape: f32[256,32], index: 0, kind: input, shape index: {}]
  %s1 = inlined_call_operand.vmem [shape: f32[32,416], index: 1, kind: input, shape index: {}]
  %s2 = inlined_call_operand.vmem [shape: f32[1,416], index: 2, kind: input, shape index: {}]
  %s3 = inlined_call_operand.vmem [shape: f32[256,32], index: 3, kind: output, shape index: {0}]
  %s4 = inlined_call_operand.hbm [shape: f32[256,384], index: 4, kind: output, shape index: {1}]
  %5 = xla_tuple %s3, %s4
  %s6 = sld [smem:[#allocation0]]
  $region53: #{tpu_custom_call.1} parent=0
    _
  %s8 = ssub.s32 1, %s6
  %s9 = scalar_select 0, %s8, %s6
  $region1: #{tpu_custom_call.1} parent=0
    #allocation2 [shape = 'u8[393216]{0}', space=vmem, size = 0x60000, scoped, tag = 'output window, operand 1']
    #allocation3 [shape = 's32[2]{0}', space=sflag, size = 0x8, scoped, tag = 'scoped memory for tpu_custom_call.1']
    %10 = vsyncpa [#allocation3], 0
    %s11 = scalar_lea.sflag [#allocation3], 1
    %12 = vsyncpa %s11, 0
    loop: start=0, step=1, limit=4
    $region2: #{tpu_custom_call.1} parent=1 // loop_pre_header
      _
    $region3: #{tpu_custom_call.1} parent=1 // loop_header
      %s14 = sphi 0, %s18
      %p15 = scmp.ge.s32.totalorder %s14, 4
      %s24 = sphi 0, %s26
      %s27 = sphi 0, %s24
      %s28 = sphi 0, %s27
      %s44 = sphi 0, %s28
      %s48 = sphi 0, %s48
      %s50 = sphi 0, %s48
      %s51 = sphi 0, %s50
      %s65 = sphi 0, %s51
      %s69 = sphi 0, %s69
      %s71 = sphi 0, %s69
      %s72 = sphi 0, %s71
      %s86 = sphi 0, %s72
      %s92 = sphi 0, %s94
      %s95 = sphi 0, %s92
      %s96 = sphi 0, %s95
      %s112 = sphi 0, %s96
      %s118 = sphi 0, %s120
      %s121 = sphi 0, %s118
      %s122 = sphi 0, %s121
      %s138 = sphi 0, %s122
    $region4: #{tpu_custom_call.1} parent=1 // loop_header_branch
      %17 = sbr.rel (%p15) target = $region8
    $region5: #{tpu_custom_call.1} parent=1 // loop_body
      %s19 = ssub.s32 %s14, 1
      %s20 = ssub.s32 %s14, 2
      %s21 = sadd.s32 %s14, 1
      %s22 = ssub.s32 %s14, %s21
      %p23 = scmp.eq.s32.totalorder %s22, 0
      %s25 = sadd.s32 %s24, 1
      %s26 = scalar_select %p23, %s24, %s25
      %p29 = pneg %p23
      %p30 = scmp.eq.s32.totalorder %s14, 1
      %p31 = por %p29, %p30
      %p32 = scmp.ne.s32.totalorder %s24, %s27
      %p33 = scmp.eq.s32.totalorder %s14, 0
      %p34 = por %p32, %p33
      %p35 = scmp.ne.s32.totalorder %s24, %s27
      %p36 = scmp.eq.s32.totalorder %s19, 1
      %p37 = por %p35, %p36
      %p38 = scmp.ne.s32.totalorder %s27, %s28
      %p39 = scmp.eq.s32.totalorder %s19, 0
      %p40 = por %p38, %p39
      %p41 = scmp.ne.s32.totalorder %s27, %s28
      %p42 = scmp.eq.s32.totalorder %s20, 1
      %p43 = por %p41, %p42
      %p45 = scmp.ne.s32.totalorder %s28, %s44
      %p46 = scmp.eq.s32.totalorder %s20, 0
      %p47 = por %p45, %p46
      %s49 = sadd.s32 %s48, 1
      %p52 = scmp.eq.s32.totalorder %s14, 1
      %p53 = scmp.ne.s32.totalorder %s48, %s50
      %p54 = scmp.eq.s32.totalorder %s14, 0
      %p55 = por %p53, %p54
      %p56 = scmp.ne.s32.totalorder %s48, %s50
      %p57 = scmp.eq.s32.totalorder %s19, 1
      %p58 = por %p56, %p57
      %p59 = scmp.ne.s32.totalorder %s50, %s51
      %p60 = scmp.eq.s32.totalorder %s19, 0
      %p61 = por %p59, %p60
      %p62 = scmp.ne.s32.totalorder %s50, %s51
      %p63 = scmp.eq.s32.totalorder %s20, 1
      %p64 = por %p62, %p63
      %p66 = scmp.ne.s32.totalorder %s51, %s65
      %p67 = scmp.eq.s32.totalorder %s20, 0
      %p68 = por %p66, %p67
      %s70 = sadd.s32 %s69, 1
      %p73 = scmp.eq.s32.totalorder %s14, 1
      %p74 = scmp.ne.s32.totalorder %s69, %s71
      %p75 = scmp.eq.s32.totalorder %s14, 0
      %p76 = por %p74, %p75
      %p77 = scmp.ne.s32.totalorder %s69, %s71
      %p78 = scmp.eq.s32.totalorder %s19, 1
      %p79 = por %p77, %p78
      %p80 = scmp.ne.s32.totalorder %s71, %s72
      %p81 = scmp.eq.s32.totalorder %s19, 0
      %p82 = por %p80, %p81
      %p83 = scmp.ne.s32.totalorder %s71, %s72
      %p84 = scmp.eq.s32.totalorder %s20, 1
      %p85 = por %p83, %p84
      %p87 = scmp.ne.s32.totalorder %s72, %s86
      %p88 = scmp.eq.s32.totalorder %s20, 0
      %p89 = por %p87, %p88
      %s90 = ssub.s32 %s14, %s21
      %p91 = scmp.eq.s32.totalorder %s90, 0
      %s93 = sadd.s32 %s92, 1
      %s94 = scalar_select %p91, %s92, %s93
      %p97 = pneg %p91
      %p98 = scmp.eq.s32.totalorder %s14, 1
      %p99 = por %p97, %p98
      %p100 = scmp.ne.s32.totalorder %s92, %s95
      %p101 = scmp.eq.s32.totalorder %s14, 0
      %p102 = por %p100, %p101
      %p103 = scmp.ne.s32.totalorder %s92, %s95
      %p104 = scmp.eq.s32.totalorder %s19, 1
      %p105 = por %p103, %p104
      %p106 = scmp.ne.s32.totalorder %s95, %s96
      %p107 = scmp.eq.s32.totalorder %s19, 0
      %p108 = por %p106, %p107
      %p109 = scmp.ne.s32.totalorder %s95, %s96
      %p110 = scmp.eq.s32.totalorder %s20, 1
      %p111 = por %p109, %p110
      %p113 = scmp.ne.s32.totalorder %s96, %s112
      %p114 = scmp.eq.s32.totalorder %s20, 0
      %p115 = por %p113, %p114
      %s116 = ssub.s32 %s14, %s21
      %p117 = scmp.eq.s32.totalorder %s116, 0
      %s119 = sadd.s32 %s118, 1
      %s120 = scalar_select %p117, %s118, %s119
      %p123 = pneg %p117
      %p124 = scmp.eq.s32.totalorder %s14, 1
      %p125 = por %p123, %p124
      %p126 = scmp.ne.s32.totalorder %s118, %s121
      %p127 = scmp.eq.s32.totalorder %s14, 0
      %p128 = por %p126, %p127
      %p129 = scmp.ne.s32.totalorder %s118, %s121
      %p130 = scmp.eq.s32.totalorder %s19, 1
      %p131 = por %p129, %p130
      %p132 = scmp.ne.s32.totalorder %s121, %s122
      %p133 = scmp.eq.s32.totalorder %s19, 0
      %p134 = por %p132, %p133
      %p135 = scmp.ne.s32.totalorder %s121, %s122
      %p136 = scmp.eq.s32.totalorder %s20, 1
      %p137 = por %p135, %p136
      %p139 = scmp.ne.s32.totalorder %s122, %s138
      %p140 = scmp.eq.s32.totalorder %s20, 0
      %p141 = por %p139, %p140
      %p142 = scmp.le.s32.totalorder 1, %s14
      %p143 = scmp.lt.s32.totalorder %s14, 3
      %p144 = pnand %p142, %p143
      %p145 = pneg %p144
      // Predicated region
      $region9: #{tpu_custom_call.1} parent=5 // pred_check
        _
      $region10: #{tpu_custom_call.1} parent=5 // pred_check_branch
        %147 = sbr.rel (%p144) target = $region12
      $region11: #{tpu_custom_call.1} parent=5 // pred_region
        %s148 = ssub.s32 %s14, 1
        // Predicated region
        $region13: #{tpu_custom_call.1} parent=11 // pred_check
          %p149 = pneg %p61
        $region14: #{tpu_custom_call.1} parent=11 // pred_check_branch
          %151 = sbr.rel (%p149) target = $region16
        $region15: #{tpu_custom_call.1} parent=11 // pred_region
          _
        $region16: #{tpu_custom_call.1} parent=11 // pred_fallthru
          _
        // Predicated region
        $region17: #{tpu_custom_call.1} parent=11 // pred_check
          %p152 = pneg %p82
        $region18: #{tpu_custom_call.1} parent=11 // pred_check_branch
          %154 = sbr.rel (%p152) target = $region20
        $region19: #{tpu_custom_call.1} parent=11 // pred_region
          _
        $region20: #{tpu_custom_call.1} parent=11 // pred_fallthru
          _
      $region12: #{tpu_custom_call.1} parent=5 // pred_fallthru
        _
      %p155 = scmp.lt.s32.totalorder %s14, 2
      // Predicated region
      $region21: #{tpu_custom_call.1} parent=5 // pred_check
        %p156 = pneg %p155
      $region22: #{tpu_custom_call.1} parent=5 // pred_check_branch
        %158 = sbr.rel (%p156) target = $region24
      $region23: #{tpu_custom_call.1} parent=5 // pred_region
        // Predicated region
        $region25: #{tpu_custom_call.1} parent=23 // pred_check
          %p159 = pneg %p34
        $region26: #{tpu_custom_call.1} parent=23 // pred_check_branch
          %161 = sbr.rel (%p159) target = $region28
        $region27: #{tpu_custom_call.1} parent=23 // pred_region
          %s162 = smul.u32 16, %s14
          %p163 = scmp.lt.s32.totalorder %s162, 31
          %s164 = scalar_select %p163, %s162, 31
          %s165 = smul.addr %s164, 8
          %s166 = scalar_lea.vmem %s0, %s165
          %s167 = smul.u32 16, %s14
        $region28: #{tpu_custom_call.1} parent=23 // pred_fallthru
          _
      $region24: #{tpu_custom_call.1} parent=5 // pred_fallthru
        _
      %p168 = scmp.le.s32.totalorder 1, %s14
      %p169 = scmp.lt.s32.totalorder %s14, 3
      %p170 = pnand %p168, %p169
      %p171 = pneg %p170
      // Predicated region
      $region29: #{tpu_custom_call.1} parent=5 // pred_check
        _
      $region30: #{tpu_custom_call.1} parent=5 // pred_check_branch
        %173 = sbr.rel (%p170) target = $region32
      $region31: #{tpu_custom_call.1} parent=5 // pred_region
        %s174 = ssub.s32 %s14, 1
        %s175 = smul.u32 16, %s19
        %p176 = scmp.lt.s32.totalorder %s175, 31
        %s177 = scalar_select %p176, %s175, 31
        %s178 = smul.addr %s177, 8
        %s179 = scalar_lea.vmem %s0, %s178
        %p180 = pneg %p40
        %p181 = pneg %p37
        %p182 = pneg %p61
        %p183 = pneg %p58
        %p184 = pneg %p82
        %p185 = pneg %p79
        %p186 = pneg %p108
        %p187 = pneg %p105
        %s188 = smul.u32 16, %s19
        %p189 = scmp.lt.s32.totalorder %s188, 31
        %s190 = scalar_select %p189, %s188, 31
        %s191 = smul.addr %s190, 8
        %s192 = scalar_lea.vmem %s3, %s191
        %p193 = pneg %p134
        %p194 = pneg %p131
        %s195 = sand.u32 %s121, 1
        %s196 = scalar_lea.sflag [#allocation3], %s195
        %s197 = sand.u32 %s121, 1
        %s198 = smul.addr %s197, 384
        %s199 = scalar_lea.vmem [#allocation2], %s198
        %s200 = smul.u32 16, %s19
        %p201 = scmp.lt.s32.totalorder %s200, 31
        %s202 = scalar_select %p201, %s200, 31
        %s203 = smul.addr %s202, 8
        %s204 = scalar_lea.vmem %s0, %s203
        %s205 = smul.u32 16, %s19
        %s206 = smul.u32 16, %s19
        %p207 = scmp.lt.s32.totalorder %s206, 31
        %s208 = scalar_select %p207, %s206, 31
        %s209 = smul.addr %s208, 8
        %s210 = scalar_lea.vmem %s3, %s209
        %s211 = smul.u32 16, %s19
        %s212 = smul.u32 16, %s19
        %v213 = vld [vmem:[%s204] sm:$0xff]
        %v214 = vld [vmem:[%s204 + $0x8] sm:$0xff]
        %v215 = vld [vmem:[%s204 + $0x10] sm:$0xff]
        %v216 = vld [vmem:[%s204 + $0x18] sm:$0xff]
        %v217 = vld [vmem:[%s204 + $0x20] sm:$0xff]
        %v218 = vld [vmem:[%s204 + $0x28] sm:$0xff]
        %v219 = vld [vmem:[%s204 + $0x30] sm:$0xff]
        %v220 = vld [vmem:[%s204 + $0x38] sm:$0xff]
        %v221 = vld [vmem:[%s204 + $0x40] sm:$0xff]
        %v222 = vld [vmem:[%s204 + $0x48] sm:$0xff]
        %v223 = vld [vmem:[%s204 + $0x50] sm:$0xff]
        %v224 = vld [vmem:[%s204 + $0x58] sm:$0xff]
        %v225 = vld [vmem:[%s204 + $0x60] sm:$0xff]
        %v226 = vld [vmem:[%s204 + $0x68] sm:$0xff]
        %v227 = vld [vmem:[%s204 + $0x70] sm:$0xff]
        %v228 = vld [vmem:[%s204 + $0x78] sm:$0xff]
        %v229 = vld [vmem:[%s1] sm:$0xff]
        %v230 = vld [vmem:[%s1 + $0x8] sm:$0xff]
        %v231 = vld [vmem:[%s1 + $0x10] sm:$0xff]
        %v232 = vld [vmem:[%s1 + $0x18] sm:$0xff]
        %v233 = vld [vmem:[%s1 + $0x20] sm:$0xff]
        %v234 = vld [vmem:[%s1 + $0x28] sm:$0xff]
        %v235 = vld [vmem:[%s1 + $0x30] sm:$0xff]
        %v236 = vld [vmem:[%s1 + $0x38] sm:$0xff]
        %v237 = vld [vmem:[%s1 + $0x40] sm:$0xff]
        %v238 = vld [vmem:[%s1 + $0x48] sm:$0xff]
        %v239 = vld [vmem:[%s1 + $0x50] sm:$0xff]
        %v240 = vld [vmem:[%s1 + $0x58] sm:$0xff]
        %v241 = vld [vmem:[%s1 + $0x60] sm:$0xff]
        %v242 = vld [vmem:[%s1 + $0x68] sm:$0xff]
        %v243 = vld [vmem:[%s1 + $0x70] sm:$0xff]
        %v244 = vld [vmem:[%s1 + $0x78] sm:$0xff]
        %v245 = vld [vmem:[%s2] sm:$0xf]
        %v247 = vlaneseq
        %v248 = vshrl.u32 %v247, 7
        %v249 = vsub.s32 0, %v248
        %v250 = vrot.slane %v245, %v249
        %v251 = vlaneseq
        %v252 = vshrl.u32 %v251, 7
        %v253 = vsub.s32 1, %v252
        %v254 = vrot.slane %v245, %v253
        %v255 = vlaneseq
        %v256 = vshrl.u32 %v255, 7
        %v257 = vsub.s32 2, %v256
        %v258 = vrot.slane %v245, %v257
        %v259 = vlaneseq
        %v260 = vshrl.u32 %v259, 7
        %v261 = vsub.s32 3, %v260
        %v262 = vrot.slane %v245, %v261
        %vm267 = vcmask 261120
        %v269 = vsel %vm267, %v213, 0
        %v272 = vsel %vm267, %v214, 0
        %v275 = vsel %vm267, %v215, 0
        %v278 = vsel %vm267, %v216, 0
        %v281 = vsel %vm267, %v217, 0
        %v284 = vsel %vm267, %v218, 0
        %v287 = vsel %vm267, %v219, 0
        %v290 = vsel %vm267, %v220, 0
        %v293 = vsel %vm267, %v221, 0
        %v296 = vsel %vm267, %v222, 0
        %v299 = vsel %vm267, %v223, 0
        %v302 = vsel %vm267, %v224, 0
        %v305 = vsel %vm267, %v225, 0
        %v308 = vsel %vm267, %v226, 0
        %v311 = vsel %vm267, %v227, 0
        %v314 = vsel %vm267, %v228, 0
        %316 = vmatprep.subr.mxu0 0.0
        %317 = vmatpush1.msra.mxu0 0.0
        %318 = vmatprep.subr.mxu0 0.0
        %319 = vmatpush1.msra.mxu0 0.0
        %320 = vmatprep.subr.mxu0 0.0
        %321 = vmatpush1.msra.mxu0 0.0
        %322 = vmatprep.subr.mxu0 0.0
        %323 = vmatpush1.msra.mxu0 0.0
        %324 = vmatprep.subr.mxu0 0.0
        %325 = vmatpush1.msra.mxu0 0.0
        %326 = vmatprep.subr.mxu0 0.0
        %327 = vmatpush1.msra.mxu0 0.0
        %328 = vmatprep.subr.mxu0 0.0
        %329 = vmatpush1.msra.mxu0 0.0
        %330 = vmatprep.subr.mxu0 0.0
        %331 = vmatpush1.msra.mxu0 0.0
        %332 = vmatprep.subr.mxu0 0.0
        %333 = vmatpush1.msra.mxu0 0.0
        %334 = vmatprep.subr.mxu0 0.0
        %335 = vmatpush1.msra.mxu0 0.0
        %336 = vmatprep.subr.mxu0 0.0
        %337 = vmatpush1.msra.mxu0 0.0
        %338 = vmatprep.subr.mxu0 0.0
        %339 = vmatpush1.msra.mxu0 0.0
        %v340 = vand.u32 %v242, 4294901760
        %341 = vmatprep.subr.mxu0 %v340
        %v342 = vand.u32 %v241, 4294901760
        %343 = vmatpush1.msra.mxu0 %v342
        %v344 = vand.u32 %v238, 4294901760
        %345 = vmatprep.subr.mxu0 %v344
        %v346 = vand.u32 %v237, 4294901760
        %347 = vmatpush1.msra.mxu0 %v346
        %v348 = vand.u32 %v234, 4294901760
        %349 = vmatprep.subr.mxu0 %v348
        %v350 = vand.u32 %v233, 4294901760
        %351 = vmatpush1.msra.mxu0 %v350
        %v352 = vand.u32 %v230, 4294901760
        %353 = vmatprep.subr.mxu0 %v352
        %v354 = vand.u32 %v229, 4294901760
        %355 = vmatpush1.msra.mxu0 %v354
        %356 = vmatprep.subr.mxu0 0.0
        %357 = vmatpush2.msra.mxu0 0.0
        %358 = vmatprep.subr.mxu0 0.0
        %359 = vmatpush2.msra.mxu0 0.0
        %360 = vmatprep.subr.mxu0 0.0
        %361 = vmatpush2.msra.mxu0 0.0
        %362 = vmatprep.subr.mxu0 0.0
        %363 = vmatpush2.msra.mxu0 0.0
        %364 = vmatprep.subr.mxu0 0.0
        %365 = vmatpush2.msra.mxu0 0.0
        %366 = vmatprep.subr.mxu0 0.0
        %367 = vmatpush2.msra.mxu0 0.0
        %368 = vmatprep.subr.mxu0 0.0
        %369 = vmatpush2.msra.mxu0 0.0
        %370 = vmatprep.subr.mxu0 0.0
        %371 = vmatpush2.msra.mxu0 0.0
        %372 = vmatprep.subr.mxu0 0.0
        %373 = vmatpush2.msra.mxu0 0.0
        %374 = vmatprep.subr.mxu0 0.0
        %375 = vmatpush2.msra.mxu0 0.0
        %376 = vmatprep.subr.mxu0 0.0
        %377 = vmatpush2.msra.mxu0 0.0
        %378 = vmatprep.subr.mxu0 0.0
        %379 = vmatpush2.msra.mxu0 0.0
        %380 = vmatprep.subr.mxu0 0.0
        %381 = vmatpush2.msra.mxu0 0.0
        %382 = vmatprep.subr.mxu0 0.0
        %383 = vmatpush2.msra.mxu0 0.0
        %384 = vmatprep.subr.mxu0 0.0
        %385 = vmatpush2.msra.mxu0 0.0
        %386 = vmatprep.subr.mxu0 0.0
        %387 = vmatpush2.msra.mxu0 0.0
        %388 = vmatprep.mubr.f32.mxu0 0.0
        %v389 = vand.u32 %v269, 4294901760
        %v390 = vsub.f32 %v269, %v389
        %v391 = vand.u32 %v390, 4294901760
        %v392 = vsub.f32 %v390, %v391
        %v393 = vand.u32 %v392, 4294901760
        %394 = vmatmul.mubr.f32.gmra.mxu0 %v393
        %v395 = vpop.f32.mrf.mxu0
        %v396 = vadd.f32 %v250, %v395
        %v397 = vpop.f32.mrf.mxu0
        %v398 = vadd.f32 %v254, %v397
        %399 = vmatprep.mubr.f32.mxu0 0.0
        %v400 = vand.u32 %v272, 4294901760
        %v401 = vsub.f32 %v272, %v400
        %v402 = vand.u32 %v401, 4294901760
        %v403 = vsub.f32 %v401, %v402
        %v404 = vand.u32 %v403, 4294901760
        %405 = vmatmul.mubr.f32.gmra.mxu0 %v404
        %v406 = vpop.f32.mrf.mxu0
        %v407 = vadd.f32 %v250, %v406
        %v408 = vpop.f32.mrf.mxu0
        %v409 = vadd.f32 %v254, %v408
        %410 = vmatprep.mubr.f32.mxu0 0.0
        %v411 = vand.u32 %v275, 4294901760
        %v412 = vsub.f32 %v275, %v411
        %v413 = vand.u32 %v412, 4294901760
        %v414 = vsub.f32 %v412, %v413
        %v415 = vand.u32 %v414, 4294901760
        %416 = vmatmul.mubr.f32.gmra.mxu0 %v415
        %v417 = vpop.f32.mrf.mxu0
        %v418 = vadd.f32 %v250, %v417
        %v419 = vpop.f32.mrf.mxu0
        %v420 = vadd.f32 %v254, %v419
        %421 = vmatprep.mubr.f32.mxu0 0.0
        %v422 = vand.u32 %v278, 4294901760
        %v423 = vsub.f32 %v278, %v422
        %v424 = vand.u32 %v423, 4294901760
        %v425 = vsub.f32 %v423, %v424
        %v426 = vand.u32 %v425, 4294901760
        %427 = vmatmul.mubr.f32.gmra.mxu0 %v426
        %v428 = vpop.f32.mrf.mxu0
        %v429 = vadd.f32 %v250, %v428
        %v430 = vpop.f32.mrf.mxu0
        %v431 = vadd.f32 %v254, %v430
        %432 = vmatprep.mubr.f32.mxu0 0.0
        %v433 = vand.u32 %v281, 4294901760
        %v434 = vsub.f32 %v281, %v433
        %v435 = vand.u32 %v434, 4294901760
        %v436 = vsub.f32 %v434, %v435
        %v437 = vand.u32 %v436, 4294901760
        %438 = vmatmul.mubr.f32.gmra.mxu0 %v437
        %v439 = vpop.f32.mrf.mxu0
        %v440 = vadd.f32 %v250, %v439
        %v441 = vpop.f32.mrf.mxu0
        %v442 = vadd.f32 %v254, %v441
        %443 = vmatprep.mubr.f32.mxu0 0.0
        %v444 = vand.u32 %v284, 4294901760
        %v445 = vsub.f32 %v284, %v444
        %v446 = vand.u32 %v445, 4294901760
        %v447 = vsub.f32 %v445, %v446
        %v448 = vand.u32 %v447, 4294901760
        %449 = vmatmul.mubr.f32.gmra.mxu0 %v448
        %v450 = vpop.f32.mrf.mxu0
        %v451 = vadd.f32 %v250, %v450
        %v452 = vpop.f32.mrf.mxu0
        %v453 = vadd.f32 %v254, %v452
        %454 = vmatprep.mubr.f32.mxu0 0.0
        %v455 = vand.u32 %v287, 4294901760
        %v456 = vsub.f32 %v287, %v455
        %v457 = vand.u32 %v456, 4294901760
        %v458 = vsub.f32 %v456, %v457
        %v459 = vand.u32 %v458, 4294901760
        %460 = vmatmul.mubr.f32.gmra.mxu0 %v459
        %v461 = vpop.f32.mrf.mxu0
        %v462 = vadd.f32 %v250, %v461
        %v463 = vpop.f32.mrf.mxu0
        %v464 = vadd.f32 %v254, %v463
        %465 = vmatprep.mubr.f32.mxu0 0.0
        %v466 = vand.u32 %v290, 4294901760
        %v467 = vsub.f32 %v290, %v466
        %v468 = vand.u32 %v467, 4294901760
        %v469 = vsub.f32 %v467, %v468
        %v470 = vand.u32 %v469, 4294901760
        %471 = vmatmul.mubr.f32.gmra.mxu0 %v470
        %v472 = vpop.f32.mrf.mxu0
        %v473 = vadd.f32 %v250, %v472
        %v474 = vpop.f32.mrf.mxu0
        %v475 = vadd.f32 %v254, %v474
        %476 = vmatprep.mubr.f32.mxu0 0.0
        %v477 = vand.u32 %v293, 4294901760
        %v478 = vsub.f32 %v293, %v477
        %v479 = vand.u32 %v478, 4294901760
        %v480 = vsub.f32 %v478, %v479
        %v481 = vand.u32 %v480, 4294901760
        %482 = vmatmul.mubr.f32.gmra.mxu0 %v481
        %v483 = vpop.f32.mrf.mxu0
        %v484 = vadd.f32 %v250, %v483
        %v485 = vpop.f32.mrf.mxu0
        %v486 = vadd.f32 %v254, %v485
        %487 = vmatprep.mubr.f32.mxu0 0.0
        %v488 = vand.u32 %v296, 4294901760
        %v489 = vsub.f32 %v296, %v488
        %v490 = vand.u32 %v489, 4294901760
        %v491 = vsub.f32 %v489, %v490
        %v492 = vand.u32 %v491, 4294901760
        %493 = vmatmul.mubr.f32.gmra.mxu0 %v492
        %v494 = vpop.f32.mrf.mxu0
        %v495 = vadd.f32 %v250, %v494
        %v496 = vpop.f32.mrf.mxu0
        %v497 = vadd.f32 %v254, %v496
        %498 = vmatprep.mubr.f32.mxu0 0.0
        %v499 = vand.u32 %v299, 4294901760
        %v500 = vsub.f32 %v299, %v499
        %v501 = vand.u32 %v500, 4294901760
        %v502 = vsub.f32 %v500, %v501
        %v503 = vand.u32 %v502, 4294901760
        %504 = vmatmul.mubr.f32.gmra.mxu0 %v503
        %v505 = vpop.f32.mrf.mxu0
        %v506 = vadd.f32 %v250, %v505
        %v507 = vpop.f32.mrf.mxu0
        %v508 = vadd.f32 %v254, %v507
        %509 = vmatprep.mubr.f32.mxu0 0.0
        %v510 = vand.u32 %v302, 4294901760
        %v511 = vsub.f32 %v302, %v510
        %v512 = vand.u32 %v511, 4294901760
        %v513 = vsub.f32 %v511, %v512
        %v514 = vand.u32 %v513, 4294901760
        %515 = vmatmul.mubr.f32.gmra.mxu0 %v514
        %v516 = vpop.f32.mrf.mxu0
        %v517 = vadd.f32 %v250, %v516
        %v518 = vpop.f32.mrf.mxu0
        %v519 = vadd.f32 %v254, %v518
        %520 = vmatprep.mubr.f32.mxu0 0.0
        %v521 = vand.u32 %v305, 4294901760
        %v522 = vsub.f32 %v305, %v521
        %v523 = vand.u32 %v522, 4294901760
        %v524 = vsub.f32 %v522, %v523
        %v525 = vand.u32 %v524, 4294901760
        %526 = vmatmul.mubr.f32.gmra.mxu0 %v525
        %v527 = vpop.f32.mrf.mxu0
        %v528 = vadd.f32 %v250, %v527
        %v529 = vpop.f32.mrf.mxu0
        %v530 = vadd.f32 %v254, %v529
        %531 = vmatprep.mubr.f32.mxu0 0.0
        %v532 = vand.u32 %v308, 4294901760
        %v533 = vsub.f32 %v308, %v532
        %v534 = vand.u32 %v533, 4294901760
        %v535 = vsub.f32 %v533, %v534
        %v536 = vand.u32 %v535, 4294901760
        %537 = vmatmul.mubr.f32.gmra.mxu0 %v536
        %v538 = vpop.f32.mrf.mxu0
        %v539 = vadd.f32 %v250, %v538
        %v540 = vpop.f32.mrf.mxu0
        %v541 = vadd.f32 %v254, %v540
        %542 = vmatprep.mubr.f32.mxu0 0.0
        %v543 = vand.u32 %v311, 4294901760
        %v544 = vsub.f32 %v311, %v543
        %v545 = vand.u32 %v544, 4294901760
        %v546 = vsub.f32 %v544, %v545
        %v547 = vand.u32 %v546, 4294901760
        %548 = vmatmul.mubr.f32.gmra.mxu0 %v547
        %v549 = vpop.f32.mrf.mxu0
        %v550 = vadd.f32 %v250, %v549
        %v551 = vpop.f32.mrf.mxu0
        %v552 = vadd.f32 %v254, %v551
        %553 = vmatprep.mubr.f32.mxu0 0.0
        %v554 = vand.u32 %v314, 4294901760
        %v555 = vsub.f32 %v314, %v554
        %v556 = vand.u32 %v555, 4294901760
        %v557 = vsub.f32 %v555, %v556
        %v558 = vand.u32 %v557, 4294901760
        %559 = vmatmul.mubr.f32.gmra.mxu0 %v558
        %v560 = vpop.f32.mrf.mxu0
        %v561 = vadd.f32 %v250, %v560
        %v562 = vpop.f32.mrf.mxu0
        %v563 = vadd.f32 %v254, %v562
        %564 = vdwg.mxu0
        %565 = vmatprep.subr.mxu0 0.0
        %566 = vmatpush1.msra.mxu0 0.0
        %567 = vmatprep.subr.mxu0 0.0
        %568 = vmatpush1.msra.mxu0 0.0
        %569 = vmatprep.subr.mxu0 0.0
        %570 = vmatpush1.msra.mxu0 0.0
        %571 = vmatprep.subr.mxu0 0.0
        %572 = vmatpush1.msra.mxu0 0.0
        %573 = vmatprep.subr.mxu0 0.0
        %574 = vmatpush1.msra.mxu0 0.0
        %575 = vmatprep.subr.mxu0 0.0
        %576 = vmatpush1.msra.mxu0 0.0
        %577 = vmatprep.subr.mxu0 0.0
        %578 = vmatpush1.msra.mxu0 0.0
        %579 = vmatprep.subr.mxu0 0.0
        %580 = vmatpush1.msra.mxu0 0.0
        %581 = vmatprep.subr.mxu0 0.0
        %582 = vmatpush1.msra.mxu0 0.0
        %583 = vmatprep.subr.mxu0 0.0
        %584 = vmatpush1.msra.mxu0 0.0
        %585 = vmatprep.subr.mxu0 0.0
        %586 = vmatpush1.msra.mxu0 0.0
        %587 = vmatprep.subr.mxu0 0.0
        %588 = vmatpush1.msra.mxu0 0.0
        %v589 = vand.u32 %v242, 4294901760
        %v590 = vsub.f32 %v242, %v589
        %v591 = vand.u32 %v590, 4294901760
        %v592 = vsub.f32 %v590, %v591
        %v593 = vand.u32 %v592, 4294901760
        %594 = vmatprep.subr.mxu0 %v593
        %v595 = vand.u32 %v241, 4294901760
        %v596 = vsub.f32 %v241, %v595
        %v597 = vand.u32 %v596, 4294901760
        %v598 = vsub.f32 %v596, %v597
        %v599 = vand.u32 %v598, 4294901760
        %600 = vmatpush1.msra.mxu0 %v599
        %v601 = vand.u32 %v238, 4294901760
        %v602 = vsub.f32 %v238, %v601
        %v603 = vand.u32 %v602, 4294901760
        %v604 = vsub.f32 %v602, %v603
        %v605 = vand.u32 %v604, 4294901760
        %606 = vmatprep.subr.mxu0 %v605
        %v607 = vand.u32 %v237, 4294901760
        %v608 = vsub.f32 %v237, %v607
        %v609 = vand.u32 %v608, 4294901760
        %v610 = vsub.f32 %v608, %v609
        %v611 = vand.u32 %v610, 4294901760
        %612 = vmatpush1.msra.mxu0 %v611
        %v613 = vand.u32 %v234, 4294901760
        %v614 = vsub.f32 %v234, %v613
        %v615 = vand.u32 %v614, 4294901760
        %v616 = vsub.f32 %v614, %v615
        %v617 = vand.u32 %v616, 4294901760
        %618 = vmatprep.subr.mxu0 %v617
        %v619 = vand.u32 %v233, 4294901760
        %v620 = vsub.f32 %v233, %v619
        %v621 = vand.u32 %v620, 4294901760
        %v622 = vsub.f32 %v620, %v621
        %v623 = vand.u32 %v622, 4294901760
        %624 = vmatpush1.msra.mxu0 %v623
        %v625 = vand.u32 %v230, 4294901760
        %v626 = vsub.f32 %v230, %v625
        %v627 = vand.u32 %v626, 4294901760
        %v628 = vsub.f32 %v626, %v627
        %v629 = vand.u32 %v628, 4294901760
        %630 = vmatprep.subr.mxu0 %v629
        %v631 = vand.u32 %v229, 4294901760
        %v632 = vsub.f32 %v229, %v631
        %v633 = vand.u32 %v632, 4294901760
        %v634 = vsub.f32 %v632, %v633
        %v635 = vand.u32 %v634, 4294901760
        %636 = vmatpush1.msra.mxu0 %v635
        %637 = vmatprep.subr.mxu0 0.0
        %638 = vmatpush2.msra.mxu0 0.0
        %639 = vmatprep.subr.mxu0 0.0
        %640 = vmatpush2.msra.mxu0 0.0
        %641 = vmatprep.subr.mxu0 0.0
        %642 = vmatpush2.msra.mxu0 0.0
        %643 = vmatprep.subr.mxu0 0.0
        %644 = vmatpush2.msra.mxu0 0.0
        %645 = vmatprep.subr.mxu0 0.0
        %646 = vmatpush2.msra.mxu0 0.0
        %647 = vmatprep.subr.mxu0 0.0
        %648 = vmatpush2.msra.mxu0 0.0
        %649 = vmatprep.subr.mxu0 0.0
        %650 = vmatpush2.msra.mxu0 0.0
        %651 = vmatprep.subr.mxu0 0.0
        %652 = vmatpush2.msra.mxu0 0.0
        %653 = vmatprep.subr.mxu0 0.0
        %654 = vmatpush2.msra.mxu0 0.0
        %655 = vmatprep.subr.mxu0 0.0
        %656 = vmatpush2.msra.mxu0 0.0
        %657 = vmatprep.subr.mxu0 0.0
        %658 = vmatpush2.msra.mxu0 0.0
        %659 = vmatprep.subr.mxu0 0.0
        %660 = vmatpush2.msra.mxu0 0.0
        %661 = vmatprep.subr.mxu0 0.0
        %662 = vmatpush2.msra.mxu0 0.0
        %663 = vmatprep.subr.mxu0 0.0
        %664 = vmatpush2.msra.mxu0 0.0
        %665 = vmatprep.subr.mxu0 0.0
        %666 = vmatpush2.msra.mxu0 0.0
        %667 = vmatprep.subr.mxu0 0.0
        %668 = vmatpush2.msra.mxu0 0.0
        %669 = vmatprep.mubr.f32.mxu0 0.0
        %v670 = vand.u32 %v269, 4294901760
        %671 = vmatmul.mubr.f32.gmra.mxu0 %v670
        %v672 = vpop.f32.mrf.mxu0
        %v673 = vadd.f32 %v396, %v672
        %v674 = vpop.f32.mrf.mxu0
        %v675 = vadd.f32 %v398, %v674
        %676 = vmatprep.mubr.f32.mxu0 0.0
        %v677 = vand.u32 %v272, 4294901760
        %678 = vmatmul.mubr.f32.gmra.mxu0 %v677
        %v679 = vpop.f32.mrf.mxu0
        %v680 = vadd.f32 %v407, %v679
        %v681 = vpop.f32.mrf.mxu0
        %v682 = vadd.f32 %v409, %v681
        %683 = vmatprep.mubr.f32.mxu0 0.0
        %v684 = vand.u32 %v275, 4294901760
        %685 = vmatmul.mubr.f32.gmra.mxu0 %v684
        %v686 = vpop.f32.mrf.mxu0
        %v687 = vadd.f32 %v418, %v686
        %v688 = vpop.f32.mrf.mxu0
        %v689 = vadd.f32 %v420, %v688
        %690 = vmatprep.mubr.f32.mxu0 0.0
        %v691 = vand.u32 %v278, 4294901760
        %692 = vmatmul.mubr.f32.gmra.mxu0 %v691
        %v693 = vpop.f32.mrf.mxu0
        %v694 = vadd.f32 %v429, %v693
        %v695 = vpop.f32.mrf.mxu0
        %v696 = vadd.f32 %v431, %v695
        %697 = vmatprep.mubr.f32.mxu0 0.0
        %v698 = vand.u32 %v281, 4294901760
        %699 = vmatmul.mubr.f32.gmra.mxu0 %v698
        %v700 = vpop.f32.mrf.mxu0
        %v701 = vadd.f32 %v440, %v700
        %v702 = vpop.f32.mrf.mxu0
        %v703 = vadd.f32 %v442, %v702
        %704 = vmatprep.mubr.f32.mxu0 0.0
        %v705 = vand.u32 %v284, 4294901760
        %706 = vmatmul.mubr.f32.gmra.mxu0 %v705
        %v707 = vpop.f32.mrf.mxu0
        %v708 = vadd.f32 %v451, %v707
        %v709 = vpop.f32.mrf.mxu0
        %v710 = vadd.f32 %v453, %v709
        %711 = vmatprep.mubr.f32.mxu0 0.0
        %v712 = vand.u32 %v287, 4294901760
        %713 = vmatmul.mubr.f32.gmra.mxu0 %v712
        %v714 = vpop.f32.mrf.mxu0
        %v715 = vadd.f32 %v462, %v714
        %v716 = vpop.f32.mrf.mxu0
        %v717 = vadd.f32 %v464, %v716
        %718 = vmatprep.mubr.f32.mxu0 0.0
        %v719 = vand.u32 %v290, 4294901760
        %720 = vmatmul.mubr.f32.gmra.mxu0 %v719
        %v721 = vpop.f32.mrf.mxu0
        %v722 = vadd.f32 %v473, %v721
        %v723 = vpop.f32.mrf.mxu0
        %v724 = vadd.f32 %v475, %v723
        %725 = vmatprep.mubr.f32.mxu0 0.0
        %v726 = vand.u32 %v293, 4294901760
        %727 = vmatmul.mubr.f32.gmra.mxu0 %v726
        %v728 = vpop.f32.mrf.mxu0
        %v729 = vadd.f32 %v484, %v728
        %v730 = vpop.f32.mrf.mxu0
        %v731 = vadd.f32 %v486, %v730
        %732 = vmatprep.mubr.f32.mxu0 0.0
        %v733 = vand.u32 %v296, 4294901760
        %734 = vmatmul.mubr.f32.gmra.mxu0 %v733
        %v735 = vpop.f32.mrf.mxu0
        %v736 = vadd.f32 %v495, %v735
        %v737 = vpop.f32.mrf.mxu0
        %v738 = vadd.f32 %v497, %v737
        %739 = vmatprep.mubr.f32.mxu0 0.0
        %v740 = vand.u32 %v299, 4294901760
        %741 = vmatmul.mubr.f32.gmra.mxu0 %v740
        %v742 = vpop.f32.mrf.mxu0
        %v743 = vadd.f32 %v506, %v742
        %v744 = vpop.f32.mrf.mxu0
        %v745 = vadd.f32 %v508, %v744
        %746 = vmatprep.mubr.f32.mxu0 0.0
        %v747 = vand.u32 %v302, 4294901760
        %748 = vmatmul.mubr.f32.gmra.mxu0 %v747
        %v749 = vpop.f32.mrf.mxu0
        %v750 = vadd.f32 %v517, %v749
        %v751 = vpop.f32.mrf.mxu0
        %v752 = vadd.f32 %v519, %v751
        %753 = vmatprep.mubr.f32.mxu0 0.0
        %v754 = vand.u32 %v305, 4294901760
        %755 = vmatmul.mubr.f32.gmra.mxu0 %v754
        %v756 = vpop.f32.mrf.mxu0
        %v757 = vadd.f32 %v528, %v756
        %v758 = vpop.f32.mrf.mxu0
        %v759 = vadd.f32 %v530, %v758
        %760 = vmatprep.mubr.f32.mxu0 0.0
        %v761 = vand.u32 %v308, 4294901760
        %762 = vmatmul.mubr.f32.gmra.mxu0 %v761
        %v763 = vpop.f32.mrf.mxu0
        %v764 = vadd.f32 %v539, %v763
        %v765 = vpop.f32.mrf.mxu0
        %v766 = vadd.f32 %v541, %v765
        %767 = vmatprep.mubr.f32.mxu0 0.0
        %v768 = vand.u32 %v311, 4294901760
        %769 = vmatmul.mubr.f32.gmra.mxu0 %v768
        %v770 = vpop.f32.mrf.mxu0
        %v771 = vadd.f32 %v550, %v770
        %v772 = vpop.f32.mrf.mxu0
        %v773 = vadd.f32 %v552, %v772
        %774 = vmatprep.mubr.f32.mxu0 0.0
        %v775 = vand.u32 %v314, 4294901760
        %776 = vmatmul.mubr.f32.gmra.mxu0 %v775
        %v777 = vpop.f32.mrf.mxu0
        %v778 = vadd.f32 %v561, %v777
        %v779 = vpop.f32.mrf.mxu0
        %v780 = vadd.f32 %v563, %v779
        %781 = vdwg.mxu0
        %782 = vmatprep.subr.mxu0 0.0
        %783 = vmatpush1.msra.mxu0 0.0
        %784 = vmatprep.subr.mxu0 0.0
        %785 = vmatpush1.msra.mxu0 0.0
        %786 = vmatprep.subr.mxu0 0.0
        %787 = vmatpush1.msra.mxu0 0.0
        %788 = vmatprep.subr.mxu0 0.0
        %789 = vmatpush1.msra.mxu0 0.0
        %790 = vmatprep.subr.mxu0 0.0
        %791 = vmatpush1.msra.mxu0 0.0
        %792 = vmatprep.subr.mxu0 0.0
        %793 = vmatpush1.msra.mxu0 0.0
        %794 = vmatprep.subr.mxu0 0.0
        %795 = vmatpush1.msra.mxu0 0.0
        %796 = vmatprep.subr.mxu0 0.0
        %797 = vmatpush1.msra.mxu0 0.0
        %798 = vmatprep.subr.mxu0 0.0
        %799 = vmatpush1.msra.mxu0 0.0
        %800 = vmatprep.subr.mxu0 0.0
        %801 = vmatpush1.msra.mxu0 0.0
        %802 = vmatprep.subr.mxu0 0.0
        %803 = vmatpush1.msra.mxu0 0.0
        %804 = vmatprep.subr.mxu0 0.0
        %805 = vmatpush1.msra.mxu0 0.0
        %v806 = vand.u32 %v242, 4294901760
        %v807 = vsub.f32 %v242, %v806
        %808 = vmatprep.subr.mxu0 %v807
        %v809 = vand.u32 %v241, 4294901760
        %v810 = vsub.f32 %v241, %v809
        %811 = vmatpush1.msra.mxu0 %v810
        %v812 = vand.u32 %v238, 4294901760
        %v813 = vsub.f32 %v238, %v812
        %814 = vmatprep.subr.mxu0 %v813
        %v815 = vand.u32 %v237, 4294901760
        %v816 = vsub.f32 %v237, %v815
        %817 = vmatpush1.msra.mxu0 %v816
        %v818 = vand.u32 %v234, 4294901760
        %v819 = vsub.f32 %v234, %v818
        %820 = vmatprep.subr.mxu0 %v819
        %v821 = vand.u32 %v233, 4294901760
        %v822 = vsub.f32 %v233, %v821
        %823 = vmatpush1.msra.mxu0 %v822
        %v824 = vand.u32 %v230, 4294901760
        %v825 = vsub.f32 %v230, %v824
        %826 = vmatprep.subr.mxu0 %v825
        %v827 = vand.u32 %v229, 4294901760
        %v828 = vsub.f32 %v229, %v827
        %829 = vmatpush1.msra.mxu0 %v828
        %830 = vmatprep.subr.mxu0 0.0
        %831 = vmatpush2.msra.mxu0 0.0
        %832 = vmatprep.subr.mxu0 0.0
        %833 = vmatpush2.msra.mxu0 0.0
        %834 = vmatprep.subr.mxu0 0.0
        %835 = vmatpush2.msra.mxu0 0.0
        %836 = vmatprep.subr.mxu0 0.0
        %837 = vmatpush2.msra.mxu0 0.0
        %838 = vmatprep.subr.mxu0 0.0
        %839 = vmatpush2.msra.mxu0 0.0
        %840 = vmatprep.subr.mxu0 0.0
        %841 = vmatpush2.msra.mxu0 0.0
        %842 = vmatprep.subr.mxu0 0.0
        %843 = vmatpush2.msra.mxu0 0.0
        %844 = vmatprep.subr.mxu0 0.0
        %845 = vmatpush2.msra.mxu0 0.0
        %846 = vmatprep.subr.mxu0 0.0
        %847 = vmatpush2.msra.mxu0 0.0
        %848 = vmatprep.subr.mxu0 0.0
        %849 = vmatpush2.msra.mxu0 0.0
        %850 = vmatprep.subr.mxu0 0.0
        %851 = vmatpush2.msra.mxu0 0.0
        %852 = vmatprep.subr.mxu0 0.0
        %853 = vmatpush2.msra.mxu0 0.0
        %854 = vmatprep.subr.mxu0 0.0
        %855 = vmatpush2.msra.mxu0 0.0
        %856 = vmatprep.subr.mxu0 0.0
        %857 = vmatpush2.msra.mxu0 0.0
        %858 = vmatprep.subr.mxu0 0.0
        %859 = vmatpush2.msra.mxu0 0.0
        %860 = vmatprep.subr.mxu0 0.0
        %861 = vmatpush2.msra.mxu0 0.0
        %862 = vmatprep.mubr.f32.mxu0 0.0
        %v863 = vand.u32 %v269, 4294901760
        %v864 = vsub.f32 %v269, %v863
        %865 = vmatmul.mubr.f32.gmra.mxu0 %v864
        %v866 = vpop.f32.mrf.mxu0
        %v867 = vadd.f32 %v673, %v866
        %v868 = vpop.f32.mrf.mxu0
        %v869 = vadd.f32 %v675, %v868
        %870 = vmatprep.mubr.f32.mxu0 0.0
        %v871 = vand.u32 %v272, 4294901760
        %v872 = vsub.f32 %v272, %v871
        %873 = vmatmul.mubr.f32.gmra.mxu0 %v872
        %v874 = vpop.f32.mrf.mxu0
        %v875 = vadd.f32 %v680, %v874
        %v876 = vpop.f32.mrf.mxu0
        %v877 = vadd.f32 %v682, %v876
        %878 = vmatprep.mubr.f32.mxu0 0.0
        %v879 = vand.u32 %v275, 4294901760
        %v880 = vsub.f32 %v275, %v879
        %881 = vmatmul.mubr.f32.gmra.mxu0 %v880
        %v882 = vpop.f32.mrf.mxu0
        %v883 = vadd.f32 %v687, %v882
        %v884 = vpop.f32.mrf.mxu0
        %v885 = vadd.f32 %v689, %v884
        %886 = vmatprep.mubr.f32.mxu0 0.0
        %v887 = vand.u32 %v278, 4294901760
        %v888 = vsub.f32 %v278, %v887
        %889 = vmatmul.mubr.f32.gmra.mxu0 %v888
        %v890 = vpop.f32.mrf.mxu0
        %v891 = vadd.f32 %v694, %v890
        %v892 = vpop.f32.mrf.mxu0
        %v893 = vadd.f32 %v696, %v892
        %894 = vmatprep.mubr.f32.mxu0 0.0
        %v895 = vand.u32 %v281, 4294901760
        %v896 = vsub.f32 %v281, %v895
        %897 = vmatmul.mubr.f32.gmra.mxu0 %v896
        %v898 = vpop.f32.mrf.mxu0
        %v899 = vadd.f32 %v701, %v898
        %v900 = vpop.f32.mrf.mxu0
        %v901 = vadd.f32 %v703, %v900
        %902 = vmatprep.mubr.f32.mxu0 0.0
        %v903 = vand.u32 %v284, 4294901760
        %v904 = vsub.f32 %v284, %v903
        %905 = vmatmul.mubr.f32.gmra.mxu0 %v904
        %v906 = vpop.f32.mrf.mxu0
        %v907 = vadd.f32 %v708, %v906
        %v908 = vpop.f32.mrf.mxu0
        %v909 = vadd.f32 %v710, %v908
        %910 = vmatprep.mubr.f32.mxu0 0.0
        %v911 = vand.u32 %v287, 4294901760
        %v912 = vsub.f32 %v287, %v911
        %913 = vmatmul.mubr.f32.gmra.mxu0 %v912
        %v914 = vpop.f32.mrf.mxu0
        %v915 = vadd.f32 %v715, %v914
        %v916 = vpop.f32.mrf.mxu0
        %v917 = vadd.f32 %v717, %v916
        %918 = vmatprep.mubr.f32.mxu0 0.0
        %v919 = vand.u32 %v290, 4294901760
        %v920 = vsub.f32 %v290, %v919
        %921 = vmatmul.mubr.f32.gmra.mxu0 %v920
        %v922 = vpop.f32.mrf.mxu0
        %v923 = vadd.f32 %v722, %v922
        %v924 = vpop.f32.mrf.mxu0
        %v925 = vadd.f32 %v724, %v924
        %926 = vmatprep.mubr.f32.mxu0 0.0
        %v927 = vand.u32 %v293, 4294901760
        %v928 = vsub.f32 %v293, %v927
        %929 = vmatmul.mubr.f32.gmra.mxu0 %v928
        %v930 = vpop.f32.mrf.mxu0
        %v931 = vadd.f32 %v729, %v930
        %v932 = vpop.f32.mrf.mxu0
        %v933 = vadd.f32 %v731, %v932
        %934 = vmatprep.mubr.f32.mxu0 0.0
        %v935 = vand.u32 %v296, 4294901760
        %v936 = vsub.f32 %v296, %v935
        %937 = vmatmul.mubr.f32.gmra.mxu0 %v936
        %v938 = vpop.f32.mrf.mxu0
        %v939 = vadd.f32 %v736, %v938
        %v940 = vpop.f32.mrf.mxu0
        %v941 = vadd.f32 %v738, %v940
        %942 = vmatprep.mubr.f32.mxu0 0.0
        %v943 = vand.u32 %v299, 4294901760
        %v944 = vsub.f32 %v299, %v943
        %945 = vmatmul.mubr.f32.gmra.mxu0 %v944
        %v946 = vpop.f32.mrf.mxu0
        %v947 = vadd.f32 %v743, %v946
        %v948 = vpop.f32.mrf.mxu0
        %v949 = vadd.f32 %v745, %v948
        %950 = vmatprep.mubr.f32.mxu0 0.0
        %v951 = vand.u32 %v302, 4294901760
        %v952 = vsub.f32 %v302, %v951
        %953 = vmatmul.mubr.f32.gmra.mxu0 %v952
        %v954 = vpop.f32.mrf.mxu0
        %v955 = vadd.f32 %v750, %v954
        %v956 = vpop.f32.mrf.mxu0
        %v957 = vadd.f32 %v752, %v956
        %958 = vmatprep.mubr.f32.mxu0 0.0
        %v959 = vand.u32 %v305, 4294901760
        %v960 = vsub.f32 %v305, %v959
        %961 = vmatmul.mubr.f32.gmra.mxu0 %v960
        %v962 = vpop.f32.mrf.mxu0
        %v963 = vadd.f32 %v757, %v962
        %v964 = vpop.f32.mrf.mxu0
        %v965 = vadd.f32 %v759, %v964
        %966 = vmatprep.mubr.f32.mxu0 0.0
        %v967 = vand.u32 %v308, 4294901760
        %v968 = vsub.f32 %v308, %v967
        %969 = vmatmul.mubr.f32.gmra.mxu0 %v968
        %v970 = vpop.f32.mrf.mxu0
        %v971 = vadd.f32 %v764, %v970
        %v972 = vpop.f32.mrf.mxu0
        %v973 = vadd.f32 %v766, %v972
        %974 = vmatprep.mubr.f32.mxu0 0.0
        %v975 = vand.u32 %v311, 4294901760
        %v976 = vsub.f32 %v311, %v975
        %977 = vmatmul.mubr.f32.gmra.mxu0 %v976
        %v978 = vpop.f32.mrf.mxu0
        %v979 = vadd.f32 %v771, %v978
        %v980 = vpop.f32.mrf.mxu0
        %v981 = vadd.f32 %v773, %v980
        %982 = vmatprep.mubr.f32.mxu0 0.0
        %v983 = vand.u32 %v314, 4294901760
        %v984 = vsub.f32 %v314, %v983
        %985 = vmatmul.mubr.f32.gmra.mxu0 %v984
        %v986 = vpop.f32.mrf.mxu0
        %v987 = vadd.f32 %v778, %v986
        %v988 = vpop.f32.mrf.mxu0
        %v989 = vadd.f32 %v780, %v988
        %990 = vdwg.mxu0
        %991 = vmatprep.subr.mxu0 0.0
        %992 = vmatpush1.msra.mxu0 0.0
        %993 = vmatprep.subr.mxu0 0.0
        %994 = vmatpush1.msra.mxu0 0.0
        %995 = vmatprep.subr.mxu0 0.0
        %996 = vmatpush1.msra.mxu0 0.0
        %997 = vmatprep.subr.mxu0 0.0
        %998 = vmatpush1.msra.mxu0 0.0
        %999 = vmatprep.subr.mxu0 0.0
        %1000 = vmatpush1.msra.mxu0 0.0
        %1001 = vmatprep.subr.mxu0 0.0
        %1002 = vmatpush1.msra.mxu0 0.0
        %1003 = vmatprep.subr.mxu0 0.0
        %1004 = vmatpush1.msra.mxu0 0.0
        %1005 = vmatprep.subr.mxu0 0.0
        %1006 = vmatpush1.msra.mxu0 0.0
        %1007 = vmatprep.subr.mxu0 0.0
        %1008 = vmatpush1.msra.mxu0 0.0
        %1009 = vmatprep.subr.mxu0 0.0
        %1010 = vmatpush1.msra.mxu0 0.0
        %1011 = vmatprep.subr.mxu0 0.0
        %1012 = vmatpush1.msra.mxu0 0.0
        %1013 = vmatprep.subr.mxu0 0.0
        %1014 = vmatpush1.msra.mxu0 0.0
        %v1015 = vand.u32 %v242, 4294901760
        %1016 = vmatprep.subr.mxu0 %v1015
        %v1017 = vand.u32 %v241, 4294901760
        %1018 = vmatpush1.msra.mxu0 %v1017
        %v1019 = vand.u32 %v238, 4294901760
        %1020 = vmatprep.subr.mxu0 %v1019
        %v1021 = vand.u32 %v237, 4294901760
        %1022 = vmatpush1.msra.mxu0 %v1021
        %v1023 = vand.u32 %v234, 4294901760
        %1024 = vmatprep.subr.mxu0 %v1023
        %v1025 = vand.u32 %v233, 4294901760
        %1026 = vmatpush1.msra.mxu0 %v1025
        %v1027 = vand.u32 %v230, 4294901760
        %1028 = vmatprep.subr.mxu0 %v1027
        %v1029 = vand.u32 %v229, 4294901760
        %1030 = vmatpush1.msra.mxu0 %v1029
        %1031 = vmatprep.subr.mxu0 0.0
        %1032 = vmatpush2.msra.mxu0 0.0
        %1033 = vmatprep.subr.mxu0 0.0
        %1034 = vmatpush2.msra.mxu0 0.0
        %1035 = vmatprep.subr.mxu0 0.0
        %1036 = vmatpush2.msra.mxu0 0.0
        %1037 = vmatprep.subr.mxu0 0.0
        %1038 = vmatpush2.msra.mxu0 0.0
        %1039 = vmatprep.subr.mxu0 0.0
        %1040 = vmatpush2.msra.mxu0 0.0
        %1041 = vmatprep.subr.mxu0 0.0
        %1042 = vmatpush2.msra.mxu0 0.0
        %1043 = vmatprep.subr.mxu0 0.0
        %1044 = vmatpush2.msra.mxu0 0.0
        %1045 = vmatprep.subr.mxu0 0.0
        %1046 = vmatpush2.msra.mxu0 0.0
        %1047 = vmatprep.subr.mxu0 0.0
        %1048 = vmatpush2.msra.mxu0 0.0
        %1049 = vmatprep.subr.mxu0 0.0
        %1050 = vmatpush2.msra.mxu0 0.0
        %1051 = vmatprep.subr.mxu0 0.0
        %1052 = vmatpush2.msra.mxu0 0.0
        %1053 = vmatprep.subr.mxu0 0.0
        %1054 = vmatpush2.msra.mxu0 0.0
        %1055 = vmatprep.subr.mxu0 0.0
        %1056 = vmatpush2.msra.mxu0 0.0
        %1057 = vmatprep.subr.mxu0 0.0
        %1058 = vmatpush2.msra.mxu0 0.0
        %1059 = vmatprep.subr.mxu0 0.0
        %1060 = vmatpush2.msra.mxu0 0.0
        %1061 = vmatprep.subr.mxu0 0.0
        %1062 = vmatpush2.msra.mxu0 0.0
        %1063 = vmatprep.mubr.f32.mxu0 0.0
        %v1064 = vand.u32 %v269, 4294901760
        %v1065 = vsub.f32 %v269, %v1064
        %v1066 = vand.u32 %v1065, 4294901760
        %1067 = vmatmul.mubr.f32.gmra.mxu0 %v1066
        %v1068 = vpop.f32.mrf.mxu0
        %v1069 = vadd.f32 %v867, %v1068
        %v1070 = vpop.f32.mrf.mxu0
        %v1071 = vadd.f32 %v869, %v1070
        %1072 = vmatprep.mubr.f32.mxu0 0.0
        %v1073 = vand.u32 %v272, 4294901760
        %v1074 = vsub.f32 %v272, %v1073
        %v1075 = vand.u32 %v1074, 4294901760
        %1076 = vmatmul.mubr.f32.gmra.mxu0 %v1075
        %v1077 = vpop.f32.mrf.mxu0
        %v1078 = vadd.f32 %v875, %v1077
        %v1079 = vpop.f32.mrf.mxu0
        %v1080 = vadd.f32 %v877, %v1079
        %1081 = vmatprep.mubr.f32.mxu0 0.0
        %v1082 = vand.u32 %v275, 4294901760
        %v1083 = vsub.f32 %v275, %v1082
        %v1084 = vand.u32 %v1083, 4294901760
        %1085 = vmatmul.mubr.f32.gmra.mxu0 %v1084
        %v1086 = vpop.f32.mrf.mxu0
        %v1087 = vadd.f32 %v883, %v1086
        %v1088 = vpop.f32.mrf.mxu0
        %v1089 = vadd.f32 %v885, %v1088
        %1090 = vmatprep.mubr.f32.mxu0 0.0
        %v1091 = vand.u32 %v278, 4294901760
        %v1092 = vsub.f32 %v278, %v1091
        %v1093 = vand.u32 %v1092, 4294901760
        %1094 = vmatmul.mubr.f32.gmra.mxu0 %v1093
        %v1095 = vpop.f32.mrf.mxu0
        %v1096 = vadd.f32 %v891, %v1095
        %v1097 = vpop.f32.mrf.mxu0
        %v1098 = vadd.f32 %v893, %v1097
        %1099 = vmatprep.mubr.f32.mxu0 0.0
        %v1100 = vand.u32 %v281, 4294901760
        %v1101 = vsub.f32 %v281, %v1100
        %v1102 = vand.u32 %v1101, 4294901760
        %1103 = vmatmul.mubr.f32.gmra.mxu0 %v1102
        %v1104 = vpop.f32.mrf.mxu0
        %v1105 = vadd.f32 %v899, %v1104
        %v1106 = vpop.f32.mrf.mxu0
        %v1107 = vadd.f32 %v901, %v1106
        %1108 = vmatprep.mubr.f32.mxu0 0.0
        %v1109 = vand.u32 %v284, 4294901760
        %v1110 = vsub.f32 %v284, %v1109
        %v1111 = vand.u32 %v1110, 4294901760
        %1112 = vmatmul.mubr.f32.gmra.mxu0 %v1111
        %v1113 = vpop.f32.mrf.mxu0
        %v1114 = vadd.f32 %v907, %v1113
        %v1115 = vpop.f32.mrf.mxu0
        %v1116 = vadd.f32 %v909, %v1115
        %1117 = vmatprep.mubr.f32.mxu0 0.0
        %v1118 = vand.u32 %v287, 4294901760
        %v1119 = vsub.f32 %v287, %v1118
        %v1120 = vand.u32 %v1119, 4294901760
        %1121 = vmatmul.mubr.f32.gmra.mxu0 %v1120
        %v1122 = vpop.f32.mrf.mxu0
        %v1123 = vadd.f32 %v915, %v1122
        %v1124 = vpop.f32.mrf.mxu0
        %v1125 = vadd.f32 %v917, %v1124
        %1126 = vmatprep.mubr.f32.mxu0 0.0
        %v1127 = vand.u32 %v290, 4294901760
        %v1128 = vsub.f32 %v290, %v1127
        %v1129 = vand.u32 %v1128, 4294901760
        %1130 = vmatmul.mubr.f32.gmra.mxu0 %v1129
        %v1131 = vpop.f32.mrf.mxu0
        %v1132 = vadd.f32 %v923, %v1131
        %v1133 = vpop.f32.mrf.mxu0
        %v1134 = vadd.f32 %v925, %v1133
        %1135 = vmatprep.mubr.f32.mxu0 0.0
        %v1136 = vand.u32 %v293, 4294901760
        %v1137 = vsub.f32 %v293, %v1136
        %v1138 = vand.u32 %v1137, 4294901760
        %1139 = vmatmul.mubr.f32.gmra.mxu0 %v1138
        %v1140 = vpop.f32.mrf.mxu0
        %v1141 = vadd.f32 %v931, %v1140
        %v1142 = vpop.f32.mrf.mxu0
        %v1143 = vadd.f32 %v933, %v1142
        %1144 = vmatprep.mubr.f32.mxu0 0.0
        %v1145 = vand.u32 %v296, 4294901760
        %v1146 = vsub.f32 %v296, %v1145
        %v1147 = vand.u32 %v1146, 4294901760
        %1148 = vmatmul.mubr.f32.gmra.mxu0 %v1147
        %v1149 = vpop.f32.mrf.mxu0
        %v1150 = vadd.f32 %v939, %v1149
        %v1151 = vpop.f32.mrf.mxu0
        %v1152 = vadd.f32 %v941, %v1151
        %1153 = vmatprep.mubr.f32.mxu0 0.0
        %v1154 = vand.u32 %v299, 4294901760
        %v1155 = vsub.f32 %v299, %v1154
        %v1156 = vand.u32 %v1155, 4294901760
        %1157 = vmatmul.mubr.f32.gmra.mxu0 %v1156
        %v1158 = vpop.f32.mrf.mxu0
        %v1159 = vadd.f32 %v947, %v1158
        %v1160 = vpop.f32.mrf.mxu0
        %v1161 = vadd.f32 %v949, %v1160
        %1162 = vmatprep.mubr.f32.mxu0 0.0
        %v1163 = vand.u32 %v302, 4294901760
        %v1164 = vsub.f32 %v302, %v1163
        %v1165 = vand.u32 %v1164, 4294901760
        %1166 = vmatmul.mubr.f32.gmra.mxu0 %v1165
        %v1167 = vpop.f32.mrf.mxu0
        %v1168 = vadd.f32 %v955, %v1167
        %v1169 = vpop.f32.mrf.mxu0
        %v1170 = vadd.f32 %v957, %v1169
        %1171 = vmatprep.mubr.f32.mxu0 0.0
        %v1172 = vand.u32 %v305, 4294901760
        %v1173 = vsub.f32 %v305, %v1172
        %v1174 = vand.u32 %v1173, 4294901760
        %1175 = vmatmul.mubr.f32.gmra.mxu0 %v1174
        %v1176 = vpop.f32.mrf.mxu0
        %v1177 = vadd.f32 %v963, %v1176
        %v1178 = vpop.f32.mrf.mxu0
        %v1179 = vadd.f32 %v965, %v1178
        %1180 = vmatprep.mubr.f32.mxu0 0.0
        %v1181 = vand.u32 %v308, 4294901760
        %v1182 = vsub.f32 %v308, %v1181
        %v1183 = vand.u32 %v1182, 4294901760
        %1184 = vmatmul.mubr.f32.gmra.mxu0 %v1183
        %v1185 = vpop.f32.mrf.mxu0
        %v1186 = vadd.f32 %v971, %v1185
        %v1187 = vpop.f32.mrf.mxu0
        %v1188 = vadd.f32 %v973, %v1187
        %1189 = vmatprep.mubr.f32.mxu0 0.0
        %v1190 = vand.u32 %v311, 4294901760
        %v1191 = vsub.f32 %v311, %v1190
        %v1192 = vand.u32 %v1191, 4294901760
        %1193 = vmatmul.mubr.f32.gmra.mxu0 %v1192
        %v1194 = vpop.f32.mrf.mxu0
        %v1195 = vadd.f32 %v979, %v1194
        %v1196 = vpop.f32.mrf.mxu0
        %v1197 = vadd.f32 %v981, %v1196
        %1198 = vmatprep.mubr.f32.mxu0 0.0
        %v1199 = vand.u32 %v314, 4294901760
        %v1200 = vsub.f32 %v314, %v1199
        %v1201 = vand.u32 %v1200, 4294901760
        %1202 = vmatmul.mubr.f32.gmra.mxu0 %v1201
        %v1203 = vpop.f32.mrf.mxu0
        %v1204 = vadd.f32 %v987, %v1203
        %v1205 = vpop.f32.mrf.mxu0
        %v1206 = vadd.f32 %v989, %v1205
        %1207 = vdwg.mxu0
        %1208 = vmatprep.subr.mxu0 0.0
        %1209 = vmatpush1.msra.mxu0 0.0
        %1210 = vmatprep.subr.mxu0 0.0
        %1211 = vmatpush1.msra.mxu0 0.0
        %1212 = vmatprep.subr.mxu0 0.0
        %1213 = vmatpush1.msra.mxu0 0.0
        %1214 = vmatprep.subr.mxu0 0.0
        %1215 = vmatpush1.msra.mxu0 0.0
        %1216 = vmatprep.subr.mxu0 0.0
        %1217 = vmatpush1.msra.mxu0 0.0
        %1218 = vmatprep.subr.mxu0 0.0
        %1219 = vmatpush1.msra.mxu0 0.0
        %1220 = vmatprep.subr.mxu0 0.0
        %1221 = vmatpush1.msra.mxu0 0.0
        %1222 = vmatprep.subr.mxu0 0.0
        %1223 = vmatpush1.msra.mxu0 0.0
        %1224 = vmatprep.subr.mxu0 0.0
        %1225 = vmatpush1.msra.mxu0 0.0
        %1226 = vmatprep.subr.mxu0 0.0
        %1227 = vmatpush1.msra.mxu0 0.0
        %1228 = vmatprep.subr.mxu0 0.0
        %1229 = vmatpush1.msra.mxu0 0.0
        %1230 = vmatprep.subr.mxu0 0.0
        %1231 = vmatpush1.msra.mxu0 0.0
        %v1232 = vand.u32 %v242, 4294901760
        %v1233 = vsub.f32 %v242, %v1232
        %v1234 = vand.u32 %v1233, 4294901760
        %1235 = vmatprep.subr.mxu0 %v1234
        %v1236 = vand.u32 %v241, 4294901760
        %v1237 = vsub.f32 %v241, %v1236
        %v1238 = vand.u32 %v1237, 4294901760
        %1239 = vmatpush1.msra.mxu0 %v1238
        %v1240 = vand.u32 %v238, 4294901760
        %v1241 = vsub.f32 %v238, %v1240
        %v1242 = vand.u32 %v1241, 4294901760
        %1243 = vmatprep.subr.mxu0 %v1242
        %v1244 = vand.u32 %v237, 4294901760
        %v1245 = vsub.f32 %v237, %v1244
        %v1246 = vand.u32 %v1245, 4294901760
        %1247 = vmatpush1.msra.mxu0 %v1246
        %v1248 = vand.u32 %v234, 4294901760
        %v1249 = vsub.f32 %v234, %v1248
        %v1250 = vand.u32 %v1249, 4294901760
        %1251 = vmatprep.subr.mxu0 %v1250
        %v1252 = vand.u32 %v233, 4294901760
        %v1253 = vsub.f32 %v233, %v1252
        %v1254 = vand.u32 %v1253, 4294901760
        %1255 = vmatpush1.msra.mxu0 %v1254
        %v1256 = vand.u32 %v230, 4294901760
        %v1257 = vsub.f32 %v230, %v1256
        %v1258 = vand.u32 %v1257, 4294901760
        %1259 = vmatprep.subr.mxu0 %v1258
        %v1260 = vand.u32 %v229, 4294901760
        %v1261 = vsub.f32 %v229, %v1260
        %v1262 = vand.u32 %v1261, 4294901760
        %1263 = vmatpush1.msra.mxu0 %v1262
        %1264 = vmatprep.subr.mxu0 0.0
        %1265 = vmatpush2.msra.mxu0 0.0
        %1266 = vmatprep.subr.mxu0 0.0
        %1267 = vmatpush2.msra.mxu0 0.0
        %1268 = vmatprep.subr.mxu0 0.0
        %1269 = vmatpush2.msra.mxu0 0.0
        %1270 = vmatprep.subr.mxu0 0.0
        %1271 = vmatpush2.msra.mxu0 0.0
        %1272 = vmatprep.subr.mxu0 0.0
        %1273 = vmatpush2.msra.mxu0 0.0
        %1274 = vmatprep.subr.mxu0 0.0
        %1275 = vmatpush2.msra.mxu0 0.0
        %1276 = vmatprep.subr.mxu0 0.0
        %1277 = vmatpush2.msra.mxu0 0.0
        %1278 = vmatprep.subr.mxu0 0.0
        %1279 = vmatpush2.msra.mxu0 0.0
        %1280 = vmatprep.subr.mxu0 0.0
        %1281 = vmatpush2.msra.mxu0 0.0
        %1282 = vmatprep.subr.mxu0 0.0
        %1283 = vmatpush2.msra.mxu0 0.0
        %1284 = vmatprep.subr.mxu0 0.0
        %1285 = vmatpush2.msra.mxu0 0.0
        %1286 = vmatprep.subr.mxu0 0.0
        %1287 = vmatpush2.msra.mxu0 0.0
        %1288 = vmatprep.subr.mxu0 0.0
        %1289 = vmatpush2.msra.mxu0 0.0
        %1290 = vmatprep.subr.mxu0 0.0
        %1291 = vmatpush2.msra.mxu0 0.0
        %1292 = vmatprep.subr.mxu0 0.0
        %1293 = vmatpush2.msra.mxu0 0.0
        %1294 = vmatprep.subr.mxu0 0.0
        %1295 = vmatpush2.msra.mxu0 0.0
        %1296 = vmatprep.mubr.f32.mxu0 0.0
        %v1297 = vand.u32 %v269, 4294901760
        %1298 = vmatmul.mubr.f32.gmra.mxu0 %v1297
        %v1299 = vpop.f32.mrf.mxu0
        %v1300 = vadd.f32 %v1069, %v1299
        %v1301 = vpop.f32.mrf.mxu0
        %v1302 = vadd.f32 %v1071, %v1301
        %1303 = vmatprep.mubr.f32.mxu0 0.0
        %v1304 = vand.u32 %v272, 4294901760
        %1305 = vmatmul.mubr.f32.gmra.mxu0 %v1304
        %v1306 = vpop.f32.mrf.mxu0
        %v1307 = vadd.f32 %v1078, %v1306
        %v1308 = vpop.f32.mrf.mxu0
        %v1309 = vadd.f32 %v1080, %v1308
        %1310 = vmatprep.mubr.f32.mxu0 0.0
        %v1311 = vand.u32 %v275, 4294901760
        %1312 = vmatmul.mubr.f32.gmra.mxu0 %v1311
        %v1313 = vpop.f32.mrf.mxu0
        %v1314 = vadd.f32 %v1087, %v1313
        %v1315 = vpop.f32.mrf.mxu0
        %v1316 = vadd.f32 %v1089, %v1315
        %1317 = vmatprep.mubr.f32.mxu0 0.0
        %v1318 = vand.u32 %v278, 4294901760
        %1319 = vmatmul.mubr.f32.gmra.mxu0 %v1318
        %v1320 = vpop.f32.mrf.mxu0
        %v1321 = vadd.f32 %v1096, %v1320
        %v1322 = vpop.f32.mrf.mxu0
        %v1323 = vadd.f32 %v1098, %v1322
        %1324 = vmatprep.mubr.f32.mxu0 0.0
        %v1325 = vand.u32 %v281, 4294901760
        %1326 = vmatmul.mubr.f32.gmra.mxu0 %v1325
        %v1327 = vpop.f32.mrf.mxu0
        %v1328 = vadd.f32 %v1105, %v1327
        %v1329 = vpop.f32.mrf.mxu0
        %v1330 = vadd.f32 %v1107, %v1329
        %1331 = vmatprep.mubr.f32.mxu0 0.0
        %v1332 = vand.u32 %v284, 4294901760
        %1333 = vmatmul.mubr.f32.gmra.mxu0 %v1332
        %v1334 = vpop.f32.mrf.mxu0
        %v1335 = vadd.f32 %v1114, %v1334
        %v1336 = vpop.f32.mrf.mxu0
        %v1337 = vadd.f32 %v1116, %v1336
        %1338 = vmatprep.mubr.f32.mxu0 0.0
        %v1339 = vand.u32 %v287, 4294901760
        %1340 = vmatmul.mubr.f32.gmra.mxu0 %v1339
        %v1341 = vpop.f32.mrf.mxu0
        %v1342 = vadd.f32 %v1123, %v1341
        %v1343 = vpop.f32.mrf.mxu0
        %v1344 = vadd.f32 %v1125, %v1343
        %1345 = vmatprep.mubr.f32.mxu0 0.0
        %v1346 = vand.u32 %v290, 4294901760
        %1347 = vmatmul.mubr.f32.gmra.mxu0 %v1346
        %v1348 = vpop.f32.mrf.mxu0
        %v1349 = vadd.f32 %v1132, %v1348
        %v1350 = vpop.f32.mrf.mxu0
        %v1351 = vadd.f32 %v1134, %v1350
        %1352 = vmatprep.mubr.f32.mxu0 0.0
        %v1353 = vand.u32 %v293, 4294901760
        %1354 = vmatmul.mubr.f32.gmra.mxu0 %v1353
        %v1355 = vpop.f32.mrf.mxu0
        %v1356 = vadd.f32 %v1141, %v1355
        %v1357 = vpop.f32.mrf.mxu0
        %v1358 = vadd.f32 %v1143, %v1357
        %1359 = vmatprep.mubr.f32.mxu0 0.0
        %v1360 = vand.u32 %v296, 4294901760
        %1361 = vmatmul.mubr.f32.gmra.mxu0 %v1360
        %v1362 = vpop.f32.mrf.mxu0
        %v1363 = vadd.f32 %v1150, %v1362
        %v1364 = vpop.f32.mrf.mxu0
        %v1365 = vadd.f32 %v1152, %v1364
        %1366 = vmatprep.mubr.f32.mxu0 0.0
        %v1367 = vand.u32 %v299, 4294901760
        %1368 = vmatmul.mubr.f32.gmra.mxu0 %v1367
        %v1369 = vpop.f32.mrf.mxu0
        %v1370 = vadd.f32 %v1159, %v1369
        %v1371 = vpop.f32.mrf.mxu0
        %v1372 = vadd.f32 %v1161, %v1371
        %1373 = vmatprep.mubr.f32.mxu0 0.0
        %v1374 = vand.u32 %v302, 4294901760
        %1375 = vmatmul.mubr.f32.gmra.mxu0 %v1374
        %v1376 = vpop.f32.mrf.mxu0
        %v1377 = vadd.f32 %v1168, %v1376
        %v1378 = vpop.f32.mrf.mxu0
        %v1379 = vadd.f32 %v1170, %v1378
        %1380 = vmatprep.mubr.f32.mxu0 0.0
        %v1381 = vand.u32 %v305, 4294901760
        %1382 = vmatmul.mubr.f32.gmra.mxu0 %v1381
        %v1383 = vpop.f32.mrf.mxu0
        %v1384 = vadd.f32 %v1177, %v1383
        %v1385 = vpop.f32.mrf.mxu0
        %v1386 = vadd.f32 %v1179, %v1385
        %1387 = vmatprep.mubr.f32.mxu0 0.0
        %v1388 = vand.u32 %v308, 4294901760
        %1389 = vmatmul.mubr.f32.gmra.mxu0 %v1388
        %v1390 = vpop.f32.mrf.mxu0
        %v1391 = vadd.f32 %v1186, %v1390
        %v1392 = vpop.f32.mrf.mxu0
        %v1393 = vadd.f32 %v1188, %v1392
        %1394 = vmatprep.mubr.f32.mxu0 0.0
        %v1395 = vand.u32 %v311, 4294901760
        %1396 = vmatmul.mubr.f32.gmra.mxu0 %v1395
        %v1397 = vpop.f32.mrf.mxu0
        %v1398 = vadd.f32 %v1195, %v1397
        %v1399 = vpop.f32.mrf.mxu0
        %v1400 = vadd.f32 %v1197, %v1399
        %1401 = vmatprep.mubr.f32.mxu0 0.0
        %v1402 = vand.u32 %v314, 4294901760
        %1403 = vmatmul.mubr.f32.gmra.mxu0 %v1402
        %v1404 = vpop.f32.mrf.mxu0
        %v1405 = vadd.f32 %v1204, %v1404
        %v1406 = vpop.f32.mrf.mxu0
        %v1407 = vadd.f32 %v1206, %v1406
        %1408 = vdwg.mxu0
        %1409 = vmatprep.subr.mxu0 0.0
        %1410 = vmatpush1.msra.mxu0 0.0
        %1411 = vmatprep.subr.mxu0 0.0
        %1412 = vmatpush1.msra.mxu0 0.0
        %1413 = vmatprep.subr.mxu0 0.0
        %1414 = vmatpush1.msra.mxu0 0.0
        %1415 = vmatprep.subr.mxu0 0.0
        %1416 = vmatpush1.msra.mxu0 0.0
        %1417 = vmatprep.subr.mxu0 0.0
        %1418 = vmatpush1.msra.mxu0 0.0
        %1419 = vmatprep.subr.mxu0 0.0
        %1420 = vmatpush1.msra.mxu0 0.0
        %1421 = vmatprep.subr.mxu0 0.0
        %1422 = vmatpush1.msra.mxu0 0.0
        %1423 = vmatprep.subr.mxu0 0.0
        %1424 = vmatpush1.msra.mxu0 0.0
        %1425 = vmatprep.subr.mxu0 0.0
        %1426 = vmatpush1.msra.mxu0 0.0
        %1427 = vmatprep.subr.mxu0 0.0
        %1428 = vmatpush1.msra.mxu0 0.0
        %1429 = vmatprep.subr.mxu0 0.0
        %1430 = vmatpush1.msra.mxu0 0.0
        %1431 = vmatprep.subr.mxu0 0.0
        %1432 = vmatpush1.msra.mxu0 0.0
        %v1433 = vand.u32 %v242, 4294901760
        %1434 = vmatprep.subr.mxu0 %v1433
        %v1435 = vand.u32 %v241, 4294901760
        %1436 = vmatpush1.msra.mxu0 %v1435
        %v1437 = vand.u32 %v238, 4294901760
        %1438 = vmatprep.subr.mxu0 %v1437
        %v1439 = vand.u32 %v237, 4294901760
        %1440 = vmatpush1.msra.mxu0 %v1439
        %v1441 = vand.u32 %v234, 4294901760
        %1442 = vmatprep.subr.mxu0 %v1441
        %v1443 = vand.u32 %v233, 4294901760
        %1444 = vmatpush1.msra.mxu0 %v1443
        %v1445 = vand.u32 %v230, 4294901760
        %1446 = vmatprep.subr.mxu0 %v1445
        %v1447 = vand.u32 %v229, 4294901760
        %1448 = vmatpush1.msra.mxu0 %v1447
        %1449 = vmatprep.subr.mxu0 0.0
        %1450 = vmatpush2.msra.mxu0 0.0
        %1451 = vmatprep.subr.mxu0 0.0
        %1452 = vmatpush2.msra.mxu0 0.0
        %1453 = vmatprep.subr.mxu0 0.0
        %1454 = vmatpush2.msra.mxu0 0.0
        %1455 = vmatprep.subr.mxu0 0.0
        %1456 = vmatpush2.msra.mxu0 0.0
        %1457 = vmatprep.subr.mxu0 0.0
        %1458 = vmatpush2.msra.mxu0 0.0
        %1459 = vmatprep.subr.mxu0 0.0
        %1460 = vmatpush2.msra.mxu0 0.0
        %1461 = vmatprep.subr.mxu0 0.0
        %1462 = vmatpush2.msra.mxu0 0.0
        %1463 = vmatprep.subr.mxu0 0.0
        %1464 = vmatpush2.msra.mxu0 0.0
        %1465 = vmatprep.subr.mxu0 0.0
        %1466 = vmatpush2.msra.mxu0 0.0
        %1467 = vmatprep.subr.mxu0 0.0
        %1468 = vmatpush2.msra.mxu0 0.0
        %1469 = vmatprep.subr.mxu0 0.0
        %1470 = vmatpush2.msra.mxu0 0.0
        %1471 = vmatprep.subr.mxu0 0.0
        %1472 = vmatpush2.msra.mxu0 0.0
        %1473 = vmatprep.subr.mxu0 0.0
        %1474 = vmatpush2.msra.mxu0 0.0
        %1475 = vmatprep.subr.mxu0 0.0
        %1476 = vmatpush2.msra.mxu0 0.0
        %1477 = vmatprep.subr.mxu0 0.0
        %1478 = vmatpush2.msra.mxu0 0.0
        %1479 = vmatprep.subr.mxu0 0.0
        %1480 = vmatpush2.msra.mxu0 0.0
        %1481 = vmatprep.mubr.f32.mxu0 0.0
        %v1482 = vand.u32 %v269, 4294901760
        %1483 = vmatmul.mubr.f32.gmra.mxu0 %v1482
        %v1484 = vpop.f32.mrf.mxu0
        %v1485 = vadd.f32 %v1300, %v1484
        %v1486 = vpop.f32.mrf.mxu0
        %v1487 = vadd.f32 %v1302, %v1486
        %1488 = vmatprep.mubr.f32.mxu0 0.0
        %v1489 = vand.u32 %v272, 4294901760
        %1490 = vmatmul.mubr.f32.gmra.mxu0 %v1489
        %v1491 = vpop.f32.mrf.mxu0
        %v1492 = vadd.f32 %v1307, %v1491
        %v1493 = vpop.f32.mrf.mxu0
        %v1494 = vadd.f32 %v1309, %v1493
        %1495 = vmatprep.mubr.f32.mxu0 0.0
        %v1496 = vand.u32 %v275, 4294901760
        %1497 = vmatmul.mubr.f32.gmra.mxu0 %v1496
        %v1498 = vpop.f32.mrf.mxu0
        %v1499 = vadd.f32 %v1314, %v1498
        %v1500 = vpop.f32.mrf.mxu0
        %v1501 = vadd.f32 %v1316, %v1500
        %1502 = vmatprep.mubr.f32.mxu0 0.0
        %v1503 = vand.u32 %v278, 4294901760
        %1504 = vmatmul.mubr.f32.gmra.mxu0 %v1503
        %v1505 = vpop.f32.mrf.mxu0
        %v1506 = vadd.f32 %v1321, %v1505
        %v1507 = vpop.f32.mrf.mxu0
        %v1508 = vadd.f32 %v1323, %v1507
        %1509 = vmatprep.mubr.f32.mxu0 0.0
        %v1510 = vand.u32 %v281, 4294901760
        %1511 = vmatmul.mubr.f32.gmra.mxu0 %v1510
        %v1512 = vpop.f32.mrf.mxu0
        %v1513 = vadd.f32 %v1328, %v1512
        %v1514 = vpop.f32.mrf.mxu0
        %v1515 = vadd.f32 %v1330, %v1514
        %1516 = vmatprep.mubr.f32.mxu0 0.0
        %v1517 = vand.u32 %v284, 4294901760
        %1518 = vmatmul.mubr.f32.gmra.mxu0 %v1517
        %v1519 = vpop.f32.mrf.mxu0
        %v1520 = vadd.f32 %v1335, %v1519
        %v1521 = vpop.f32.mrf.mxu0
        %v1522 = vadd.f32 %v1337, %v1521
        %1523 = vmatprep.mubr.f32.mxu0 0.0
        %v1524 = vand.u32 %v287, 4294901760
        %1525 = vmatmul.mubr.f32.gmra.mxu0 %v1524
        %v1526 = vpop.f32.mrf.mxu0
        %v1527 = vadd.f32 %v1342, %v1526
        %v1528 = vpop.f32.mrf.mxu0
        %v1529 = vadd.f32 %v1344, %v1528
        %1530 = vmatprep.mubr.f32.mxu0 0.0
        %v1531 = vand.u32 %v290, 4294901760
        %1532 = vmatmul.mubr.f32.gmra.mxu0 %v1531
        %v1533 = vpop.f32.mrf.mxu0
        %v1534 = vadd.f32 %v1349, %v1533
        %v1535 = vpop.f32.mrf.mxu0
        %v1536 = vadd.f32 %v1351, %v1535
        %1537 = vmatprep.mubr.f32.mxu0 0.0
        %v1538 = vand.u32 %v293, 4294901760
        %1539 = vmatmul.mubr.f32.gmra.mxu0 %v1538
        %v1540 = vpop.f32.mrf.mxu0
        %v1541 = vadd.f32 %v1356, %v1540
        %v1542 = vpop.f32.mrf.mxu0
        %v1543 = vadd.f32 %v1358, %v1542
        %1544 = vmatprep.mubr.f32.mxu0 0.0
        %v1545 = vand.u32 %v296, 4294901760
        %1546 = vmatmul.mubr.f32.gmra.mxu0 %v1545
        %v1547 = vpop.f32.mrf.mxu0
        %v1548 = vadd.f32 %v1363, %v1547
        %v1549 = vpop.f32.mrf.mxu0
        %v1550 = vadd.f32 %v1365, %v1549
        %1551 = vmatprep.mubr.f32.mxu0 0.0
        %v1552 = vand.u32 %v299, 4294901760
        %1553 = vmatmul.mubr.f32.gmra.mxu0 %v1552
        %v1554 = vpop.f32.mrf.mxu0
        %v1555 = vadd.f32 %v1370, %v1554
        %v1556 = vpop.f32.mrf.mxu0
        %v1557 = vadd.f32 %v1372, %v1556
        %1558 = vmatprep.mubr.f32.mxu0 0.0
        %v1559 = vand.u32 %v302, 4294901760
        %1560 = vmatmul.mubr.f32.gmra.mxu0 %v1559
        %v1561 = vpop.f32.mrf.mxu0
        %v1562 = vadd.f32 %v1377, %v1561
        %v1563 = vpop.f32.mrf.mxu0
        %v1564 = vadd.f32 %v1379, %v1563
        %1565 = vmatprep.mubr.f32.mxu0 0.0
        %v1566 = vand.u32 %v305, 4294901760
        %1567 = vmatmul.mubr.f32.gmra.mxu0 %v1566
        %v1568 = vpop.f32.mrf.mxu0
        %v1569 = vadd.f32 %v1384, %v1568
        %v1570 = vpop.f32.mrf.mxu0
        %v1571 = vadd.f32 %v1386, %v1570
        %1572 = vmatprep.mubr.f32.mxu0 0.0
        %v1573 = vand.u32 %v308, 4294901760
        %1574 = vmatmul.mubr.f32.gmra.mxu0 %v1573
        %v1575 = vpop.f32.mrf.mxu0
        %v1576 = vadd.f32 %v1391, %v1575
        %v1577 = vpop.f32.mrf.mxu0
        %v1578 = vadd.f32 %v1393, %v1577
        %1579 = vmatprep.mubr.f32.mxu0 0.0
        %v1580 = vand.u32 %v311, 4294901760
        %1581 = vmatmul.mubr.f32.gmra.mxu0 %v1580
        %v1582 = vpop.f32.mrf.mxu0
        %v1583 = vadd.f32 %v1398, %v1582
        %v1584 = vpop.f32.mrf.mxu0
        %v1585 = vadd.f32 %v1400, %v1584
        %1586 = vmatprep.mubr.f32.mxu0 0.0
        %v1587 = vand.u32 %v314, 4294901760
        %1588 = vmatmul.mubr.f32.gmra.mxu0 %v1587
        %v1589 = vpop.f32.mrf.mxu0
        %v1590 = vadd.f32 %v1405, %v1589
        %v1591 = vpop.f32.mrf.mxu0
        %v1592 = vadd.f32 %v1407, %v1591
        %1593 = vdwg.mxu0
        %1594 = vmatprep.subr.mxu0 0.0
        %1595 = vmatpush1.msra.mxu0 0.0
        %1596 = vmatprep.subr.mxu0 0.0
        %1597 = vmatpush1.msra.mxu0 0.0
        %1598 = vmatprep.subr.mxu0 0.0
        %1599 = vmatpush1.msra.mxu0 0.0
        %1600 = vmatprep.subr.mxu0 0.0
        %1601 = vmatpush1.msra.mxu0 0.0
        %1602 = vmatprep.subr.mxu0 0.0
        %1603 = vmatpush1.msra.mxu0 0.0
        %1604 = vmatprep.subr.mxu0 0.0
        %1605 = vmatpush1.msra.mxu0 0.0
        %1606 = vmatprep.subr.mxu0 0.0
        %1607 = vmatpush1.msra.mxu0 0.0
        %1608 = vmatprep.subr.mxu0 0.0
        %1609 = vmatpush1.msra.mxu0 0.0
        %1610 = vmatprep.subr.mxu0 0.0
        %1611 = vmatpush1.msra.mxu0 0.0
        %1612 = vmatprep.subr.mxu0 0.0
        %1613 = vmatpush1.msra.mxu0 0.0
        %1614 = vmatprep.subr.mxu0 0.0
        %1615 = vmatpush1.msra.mxu0 0.0
        %1616 = vmatprep.subr.mxu0 0.0
        %1617 = vmatpush1.msra.mxu0 0.0
        %v1618 = vand.u32 %v244, 4294901760
        %1619 = vmatprep.subr.mxu0 %v1618
        %v1620 = vand.u32 %v243, 4294901760
        %1621 = vmatpush1.msra.mxu0 %v1620
        %v1622 = vand.u32 %v240, 4294901760
        %1623 = vmatprep.subr.mxu0 %v1622
        %v1624 = vand.u32 %v239, 4294901760
        %1625 = vmatpush1.msra.mxu0 %v1624
        %v1626 = vand.u32 %v236, 4294901760
        %1627 = vmatprep.subr.mxu0 %v1626
        %v1628 = vand.u32 %v235, 4294901760
        %1629 = vmatpush1.msra.mxu0 %v1628
        %v1630 = vand.u32 %v232, 4294901760
        %1631 = vmatprep.subr.mxu0 %v1630
        %v1632 = vand.u32 %v231, 4294901760
        %1633 = vmatpush1.msra.mxu0 %v1632
        %1634 = vmatprep.subr.mxu0 0.0
        %1635 = vmatpush2.msra.mxu0 0.0
        %1636 = vmatprep.subr.mxu0 0.0
        %1637 = vmatpush2.msra.mxu0 0.0
        %1638 = vmatprep.subr.mxu0 0.0
        %1639 = vmatpush2.msra.mxu0 0.0
        %1640 = vmatprep.subr.mxu0 0.0
        %1641 = vmatpush2.msra.mxu0 0.0
        %1642 = vmatprep.subr.mxu0 0.0
        %1643 = vmatpush2.msra.mxu0 0.0
        %1644 = vmatprep.subr.mxu0 0.0
        %1645 = vmatpush2.msra.mxu0 0.0
        %1646 = vmatprep.subr.mxu0 0.0
        %1647 = vmatpush2.msra.mxu0 0.0
        %1648 = vmatprep.subr.mxu0 0.0
        %1649 = vmatpush2.msra.mxu0 0.0
        %1650 = vmatprep.subr.mxu0 0.0
        %1651 = vmatpush2.msra.mxu0 0.0
        %1652 = vmatprep.subr.mxu0 0.0
        %1653 = vmatpush2.msra.mxu0 0.0
        %1654 = vmatprep.subr.mxu0 0.0
        %1655 = vmatpush2.msra.mxu0 0.0
        %1656 = vmatprep.subr.mxu0 0.0
        %1657 = vmatpush2.msra.mxu0 0.0
        %1658 = vmatprep.subr.mxu0 0.0
        %1659 = vmatpush2.msra.mxu0 0.0
        %1660 = vmatprep.subr.mxu0 0.0
        %1661 = vmatpush2.msra.mxu0 0.0
        %1662 = vmatprep.subr.mxu0 0.0
        %1663 = vmatpush2.msra.mxu0 0.0
        %1664 = vmatprep.subr.mxu0 0.0
        %1665 = vmatpush2.msra.mxu0 0.0
        %1666 = vmatprep.mubr.f32.mxu0 0.0
        %v1667 = vand.u32 %v269, 4294901760
        %v1668 = vsub.f32 %v269, %v1667
        %v1669 = vand.u32 %v1668, 4294901760
        %v1670 = vsub.f32 %v1668, %v1669
        %v1671 = vand.u32 %v1670, 4294901760
        %1672 = vmatmul.mubr.f32.gmra.mxu0 %v1671
        %v1673 = vpop.f32.mrf.mxu0
        %v1674 = vadd.f32 %v258, %v1673
        %v1675 = vpop.f32.mrf.mxu0
        %v1676 = vadd.f32 %v262, %v1675
        %1677 = vmatprep.mubr.f32.mxu0 0.0
        %v1678 = vand.u32 %v272, 4294901760
        %v1679 = vsub.f32 %v272, %v1678
        %v1680 = vand.u32 %v1679, 4294901760
        %v1681 = vsub.f32 %v1679, %v1680
        %v1682 = vand.u32 %v1681, 4294901760
        %1683 = vmatmul.mubr.f32.gmra.mxu0 %v1682
        %v1684 = vpop.f32.mrf.mxu0
        %v1685 = vadd.f32 %v258, %v1684
        %v1686 = vpop.f32.mrf.mxu0
        %v1687 = vadd.f32 %v262, %v1686
        %1688 = vmatprep.mubr.f32.mxu0 0.0
        %v1689 = vand.u32 %v275, 4294901760
        %v1690 = vsub.f32 %v275, %v1689
        %v1691 = vand.u32 %v1690, 4294901760
        %v1692 = vsub.f32 %v1690, %v1691
        %v1693 = vand.u32 %v1692, 4294901760
        %1694 = vmatmul.mubr.f32.gmra.mxu0 %v1693
        %v1695 = vpop.f32.mrf.mxu0
        %v1696 = vadd.f32 %v258, %v1695
        %v1697 = vpop.f32.mrf.mxu0
        %v1698 = vadd.f32 %v262, %v1697
        %1699 = vmatprep.mubr.f32.mxu0 0.0
        %v1700 = vand.u32 %v278, 4294901760
        %v1701 = vsub.f32 %v278, %v1700
        %v1702 = vand.u32 %v1701, 4294901760
        %v1703 = vsub.f32 %v1701, %v1702
        %v1704 = vand.u32 %v1703, 4294901760
        %1705 = vmatmul.mubr.f32.gmra.mxu0 %v1704
        %v1706 = vpop.f32.mrf.mxu0
        %v1707 = vadd.f32 %v258, %v1706
        %v1708 = vpop.f32.mrf.mxu0
        %v1709 = vadd.f32 %v262, %v1708
        %1710 = vmatprep.mubr.f32.mxu0 0.0
        %v1711 = vand.u32 %v281, 4294901760
        %v1712 = vsub.f32 %v281, %v1711
        %v1713 = vand.u32 %v1712, 4294901760
        %v1714 = vsub.f32 %v1712, %v1713
        %v1715 = vand.u32 %v1714, 4294901760
        %1716 = vmatmul.mubr.f32.gmra.mxu0 %v1715
        %v1717 = vpop.f32.mrf.mxu0
        %v1718 = vadd.f32 %v258, %v1717
        %v1719 = vpop.f32.mrf.mxu0
        %v1720 = vadd.f32 %v262, %v1719
        %1721 = vmatprep.mubr.f32.mxu0 0.0
        %v1722 = vand.u32 %v284, 4294901760
        %v1723 = vsub.f32 %v284, %v1722
        %v1724 = vand.u32 %v1723, 4294901760
        %v1725 = vsub.f32 %v1723, %v1724
        %v1726 = vand.u32 %v1725, 4294901760
        %1727 = vmatmul.mubr.f32.gmra.mxu0 %v1726
        %v1728 = vpop.f32.mrf.mxu0
        %v1729 = vadd.f32 %v258, %v1728
        %v1730 = vpop.f32.mrf.mxu0
        %v1731 = vadd.f32 %v262, %v1730
        %1732 = vmatprep.mubr.f32.mxu0 0.0
        %v1733 = vand.u32 %v287, 4294901760
        %v1734 = vsub.f32 %v287, %v1733
        %v1735 = vand.u32 %v1734, 4294901760
        %v1736 = vsub.f32 %v1734, %v1735
        %v1737 = vand.u32 %v1736, 4294901760
        %1738 = vmatmul.mubr.f32.gmra.mxu0 %v1737
        %v1739 = vpop.f32.mrf.mxu0
        %v1740 = vadd.f32 %v258, %v1739
        %v1741 = vpop.f32.mrf.mxu0
        %v1742 = vadd.f32 %v262, %v1741
        %1743 = vmatprep.mubr.f32.mxu0 0.0
        %v1744 = vand.u32 %v290, 4294901760
        %v1745 = vsub.f32 %v290, %v1744
        %v1746 = vand.u32 %v1745, 4294901760
        %v1747 = vsub.f32 %v1745, %v1746
        %v1748 = vand.u32 %v1747, 4294901760
        %1749 = vmatmul.mubr.f32.gmra.mxu0 %v1748
        %v1750 = vpop.f32.mrf.mxu0
        %v1751 = vadd.f32 %v258, %v1750
        %v1752 = vpop.f32.mrf.mxu0
        %v1753 = vadd.f32 %v262, %v1752
        %1754 = vmatprep.mubr.f32.mxu0 0.0
        %v1755 = vand.u32 %v293, 4294901760
        %v1756 = vsub.f32 %v293, %v1755
        %v1757 = vand.u32 %v1756, 4294901760
        %v1758 = vsub.f32 %v1756, %v1757
        %v1759 = vand.u32 %v1758, 4294901760
        %1760 = vmatmul.mubr.f32.gmra.mxu0 %v1759
        %v1761 = vpop.f32.mrf.mxu0
        %v1762 = vadd.f32 %v258, %v1761
        %v1763 = vpop.f32.mrf.mxu0
        %v1764 = vadd.f32 %v262, %v1763
        %1765 = vmatprep.mubr.f32.mxu0 0.0
        %v1766 = vand.u32 %v296, 4294901760
        %v1767 = vsub.f32 %v296, %v1766
        %v1768 = vand.u32 %v1767, 4294901760
        %v1769 = vsub.f32 %v1767, %v1768
        %v1770 = vand.u32 %v1769, 4294901760
        %1771 = vmatmul.mubr.f32.gmra.mxu0 %v1770
        %v1772 = vpop.f32.mrf.mxu0
        %v1773 = vadd.f32 %v258, %v1772
        %v1774 = vpop.f32.mrf.mxu0
        %v1775 = vadd.f32 %v262, %v1774
        %1776 = vmatprep.mubr.f32.mxu0 0.0
        %v1777 = vand.u32 %v299, 4294901760
        %v1778 = vsub.f32 %v299, %v1777
        %v1779 = vand.u32 %v1778, 4294901760
        %v1780 = vsub.f32 %v1778, %v1779
        %v1781 = vand.u32 %v1780, 4294901760
        %1782 = vmatmul.mubr.f32.gmra.mxu0 %v1781
        %v1783 = vpop.f32.mrf.mxu0
        %v1784 = vadd.f32 %v258, %v1783
        %v1785 = vpop.f32.mrf.mxu0
        %v1786 = vadd.f32 %v262, %v1785
        %1787 = vmatprep.mubr.f32.mxu0 0.0
        %v1788 = vand.u32 %v302, 4294901760
        %v1789 = vsub.f32 %v302, %v1788
        %v1790 = vand.u32 %v1789, 4294901760
        %v1791 = vsub.f32 %v1789, %v1790
        %v1792 = vand.u32 %v1791, 4294901760
        %1793 = vmatmul.mubr.f32.gmra.mxu0 %v1792
        %v1794 = vpop.f32.mrf.mxu0
        %v1795 = vadd.f32 %v258, %v1794
        %v1796 = vpop.f32.mrf.mxu0
        %v1797 = vadd.f32 %v262, %v1796
        %1798 = vmatprep.mubr.f32.mxu0 0.0
        %v1799 = vand.u32 %v305, 4294901760
        %v1800 = vsub.f32 %v305, %v1799
        %v1801 = vand.u32 %v1800, 4294901760
        %v1802 = vsub.f32 %v1800, %v1801
        %v1803 = vand.u32 %v1802, 4294901760
        %1804 = vmatmul.mubr.f32.gmra.mxu0 %v1803
        %v1805 = vpop.f32.mrf.mxu0
        %v1806 = vadd.f32 %v258, %v1805
        %v1807 = vpop.f32.mrf.mxu0
        %v1808 = vadd.f32 %v262, %v1807
        %1809 = vmatprep.mubr.f32.mxu0 0.0
        %v1810 = vand.u32 %v308, 4294901760
        %v1811 = vsub.f32 %v308, %v1810
        %v1812 = vand.u32 %v1811, 4294901760
        %v1813 = vsub.f32 %v1811, %v1812
        %v1814 = vand.u32 %v1813, 4294901760
        %1815 = vmatmul.mubr.f32.gmra.mxu0 %v1814
        %v1816 = vpop.f32.mrf.mxu0
        %v1817 = vadd.f32 %v258, %v1816
        %v1818 = vpop.f32.mrf.mxu0
        %v1819 = vadd.f32 %v262, %v1818
        %1820 = vmatprep.mubr.f32.mxu0 0.0
        %v1821 = vand.u32 %v311, 4294901760
        %v1822 = vsub.f32 %v311, %v1821
        %v1823 = vand.u32 %v1822, 4294901760
        %v1824 = vsub.f32 %v1822, %v1823
        %v1825 = vand.u32 %v1824, 4294901760
        %1826 = vmatmul.mubr.f32.gmra.mxu0 %v1825
        %v1827 = vpop.f32.mrf.mxu0
        %v1828 = vadd.f32 %v258, %v1827
        %v1829 = vpop.f32.mrf.mxu0
        %v1830 = vadd.f32 %v262, %v1829
        %1831 = vmatprep.mubr.f32.mxu0 0.0
        %v1832 = vand.u32 %v314, 4294901760
        %v1833 = vsub.f32 %v314, %v1832
        %v1834 = vand.u32 %v1833, 4294901760
        %v1835 = vsub.f32 %v1833, %v1834
        %v1836 = vand.u32 %v1835, 4294901760
        %1837 = vmatmul.mubr.f32.gmra.mxu0 %v1836
        %v1838 = vpop.f32.mrf.mxu0
        %v1839 = vadd.f32 %v258, %v1838
        %v1840 = vpop.f32.mrf.mxu0
        %v1841 = vadd.f32 %v262, %v1840
        %1842 = vdwg.mxu0
        %1843 = vmatprep.subr.mxu0 0.0
        %1844 = vmatpush1.msra.mxu0 0.0
        %1845 = vmatprep.subr.mxu0 0.0
        %1846 = vmatpush1.msra.mxu0 0.0
        %1847 = vmatprep.subr.mxu0 0.0
        %1848 = vmatpush1.msra.mxu0 0.0
        %1849 = vmatprep.subr.mxu0 0.0
        %1850 = vmatpush1.msra.mxu0 0.0
        %1851 = vmatprep.subr.mxu0 0.0
        %1852 = vmatpush1.msra.mxu0 0.0
        %1853 = vmatprep.subr.mxu0 0.0
        %1854 = vmatpush1.msra.mxu0 0.0
        %1855 = vmatprep.subr.mxu0 0.0
        %1856 = vmatpush1.msra.mxu0 0.0
        %1857 = vmatprep.subr.mxu0 0.0
        %1858 = vmatpush1.msra.mxu0 0.0
        %1859 = vmatprep.subr.mxu0 0.0
        %1860 = vmatpush1.msra.mxu0 0.0
        %1861 = vmatprep.subr.mxu0 0.0
        %1862 = vmatpush1.msra.mxu0 0.0
        %1863 = vmatprep.subr.mxu0 0.0
        %1864 = vmatpush1.msra.mxu0 0.0
        %1865 = vmatprep.subr.mxu0 0.0
        %1866 = vmatpush1.msra.mxu0 0.0
        %v1867 = vand.u32 %v244, 4294901760
        %v1868 = vsub.f32 %v244, %v1867
        %v1869 = vand.u32 %v1868, 4294901760
        %v1870 = vsub.f32 %v1868, %v1869
        %v1871 = vand.u32 %v1870, 4294901760
        %1872 = vmatprep.subr.mxu0 %v1871
        %v1873 = vand.u32 %v243, 4294901760
        %v1874 = vsub.f32 %v243, %v1873
        %v1875 = vand.u32 %v1874, 4294901760
        %v1876 = vsub.f32 %v1874, %v1875
        %v1877 = vand.u32 %v1876, 4294901760
        %1878 = vmatpush1.msra.mxu0 %v1877
        %v1879 = vand.u32 %v240, 4294901760
        %v1880 = vsub.f32 %v240, %v1879
        %v1881 = vand.u32 %v1880, 4294901760
        %v1882 = vsub.f32 %v1880, %v1881
        %v1883 = vand.u32 %v1882, 4294901760
        %1884 = vmatprep.subr.mxu0 %v1883
        %v1885 = vand.u32 %v239, 4294901760
        %v1886 = vsub.f32 %v239, %v1885
        %v1887 = vand.u32 %v1886, 4294901760
        %v1888 = vsub.f32 %v1886, %v1887
        %v1889 = vand.u32 %v1888, 4294901760
        %1890 = vmatpush1.msra.mxu0 %v1889
        %v1891 = vand.u32 %v236, 4294901760
        %v1892 = vsub.f32 %v236, %v1891
        %v1893 = vand.u32 %v1892, 4294901760
        %v1894 = vsub.f32 %v1892, %v1893
        %v1895 = vand.u32 %v1894, 4294901760
        %1896 = vmatprep.subr.mxu0 %v1895
        %v1897 = vand.u32 %v235, 4294901760
        %v1898 = vsub.f32 %v235, %v1897
        %v1899 = vand.u32 %v1898, 4294901760
        %v1900 = vsub.f32 %v1898, %v1899
        %v1901 = vand.u32 %v1900, 4294901760
        %1902 = vmatpush1.msra.mxu0 %v1901
        %v1903 = vand.u32 %v232, 4294901760
        %v1904 = vsub.f32 %v232, %v1903
        %v1905 = vand.u32 %v1904, 4294901760
        %v1906 = vsub.f32 %v1904, %v1905
        %v1907 = vand.u32 %v1906, 4294901760
        %1908 = vmatprep.subr.mxu0 %v1907
        %v1909 = vand.u32 %v231, 4294901760
        %v1910 = vsub.f32 %v231, %v1909
        %v1911 = vand.u32 %v1910, 4294901760
        %v1912 = vsub.f32 %v1910, %v1911
        %v1913 = vand.u32 %v1912, 4294901760
        %1914 = vmatpush1.msra.mxu0 %v1913
        %1915 = vmatprep.subr.mxu0 0.0
        %1916 = vmatpush2.msra.mxu0 0.0
        %1917 = vmatprep.subr.mxu0 0.0
        %1918 = vmatpush2.msra.mxu0 0.0
        %1919 = vmatprep.subr.mxu0 0.0
        %1920 = vmatpush2.msra.mxu0 0.0
        %1921 = vmatprep.subr.mxu0 0.0
        %1922 = vmatpush2.msra.mxu0 0.0
        %1923 = vmatprep.subr.mxu0 0.0
        %1924 = vmatpush2.msra.mxu0 0.0
        %1925 = vmatprep.subr.mxu0 0.0
        %1926 = vmatpush2.msra.mxu0 0.0
        %1927 = vmatprep.subr.mxu0 0.0
        %1928 = vmatpush2.msra.mxu0 0.0
        %1929 = vmatprep.subr.mxu0 0.0
        %1930 = vmatpush2.msra.mxu0 0.0
        %1931 = vmatprep.subr.mxu0 0.0
        %1932 = vmatpush2.msra.mxu0 0.0
        %1933 = vmatprep.subr.mxu0 0.0
        %1934 = vmatpush2.msra.mxu0 0.0
        %1935 = vmatprep.subr.mxu0 0.0
        %1936 = vmatpush2.msra.mxu0 0.0
        %1937 = vmatprep.subr.mxu0 0.0
        %1938 = vmatpush2.msra.mxu0 0.0
        %1939 = vmatprep.subr.mxu0 0.0
        %1940 = vmatpush2.msra.mxu0 0.0
        %1941 = vmatprep.subr.mxu0 0.0
        %1942 = vmatpush2.msra.mxu0 0.0
        %1943 = vmatprep.subr.mxu0 0.0
        %1944 = vmatpush2.msra.mxu0 0.0
        %1945 = vmatprep.subr.mxu0 0.0
        %1946 = vmatpush2.msra.mxu0 0.0
        %1947 = vmatprep.mubr.f32.mxu0 0.0
        %v1948 = vand.u32 %v269, 4294901760
        %1949 = vmatmul.mubr.f32.gmra.mxu0 %v1948
        %v1950 = vpop.f32.mrf.mxu0
        %v1951 = vadd.f32 %v1674, %v1950
        %v1952 = vpop.f32.mrf.mxu0
        %v1953 = vadd.f32 %v1676, %v1952
        %1954 = vmatprep.mubr.f32.mxu0 0.0
        %v1955 = vand.u32 %v272, 4294901760
        %1956 = vmatmul.mubr.f32.gmra.mxu0 %v1955
        %v1957 = vpop.f32.mrf.mxu0
        %v1958 = vadd.f32 %v1685, %v1957
        %v1959 = vpop.f32.mrf.mxu0
        %v1960 = vadd.f32 %v1687, %v1959
        %1961 = vmatprep.mubr.f32.mxu0 0.0
        %v1962 = vand.u32 %v275, 4294901760
        %1963 = vmatmul.mubr.f32.gmra.mxu0 %v1962
        %v1964 = vpop.f32.mrf.mxu0
        %v1965 = vadd.f32 %v1696, %v1964
        %v1966 = vpop.f32.mrf.mxu0
        %v1967 = vadd.f32 %v1698, %v1966
        %1968 = vmatprep.mubr.f32.mxu0 0.0
        %v1969 = vand.u32 %v278, 4294901760
        %1970 = vmatmul.mubr.f32.gmra.mxu0 %v1969
        %v1971 = vpop.f32.mrf.mxu0
        %v1972 = vadd.f32 %v1707, %v1971
        %v1973 = vpop.f32.mrf.mxu0
        %v1974 = vadd.f32 %v1709, %v1973
        %1975 = vmatprep.mubr.f32.mxu0 0.0
        %v1976 = vand.u32 %v281, 4294901760
        %1977 = vmatmul.mubr.f32.gmra.mxu0 %v1976
        %v1978 = vpop.f32.mrf.mxu0
        %v1979 = vadd.f32 %v1718, %v1978
        %v1980 = vpop.f32.mrf.mxu0
        %v1981 = vadd.f32 %v1720, %v1980
        %1982 = vmatprep.mubr.f32.mxu0 0.0
        %v1983 = vand.u32 %v284, 4294901760
        %1984 = vmatmul.mubr.f32.gmra.mxu0 %v1983
        %v1985 = vpop.f32.mrf.mxu0
        %v1986 = vadd.f32 %v1729, %v1985
        %v1987 = vpop.f32.mrf.mxu0
        %v1988 = vadd.f32 %v1731, %v1987
        %1989 = vmatprep.mubr.f32.mxu0 0.0
        %v1990 = vand.u32 %v287, 4294901760
        %1991 = vmatmul.mubr.f32.gmra.mxu0 %v1990
        %v1992 = vpop.f32.mrf.mxu0
        %v1993 = vadd.f32 %v1740, %v1992
        %v1994 = vpop.f32.mrf.mxu0
        %v1995 = vadd.f32 %v1742, %v1994
        %1996 = vmatprep.mubr.f32.mxu0 0.0
        %v1997 = vand.u32 %v290, 4294901760
        %1998 = vmatmul.mubr.f32.gmra.mxu0 %v1997
        %v1999 = vpop.f32.mrf.mxu0
        %v2000 = vadd.f32 %v1751, %v1999
        %v2001 = vpop.f32.mrf.mxu0
        %v2002 = vadd.f32 %v1753, %v2001
        %2003 = vmatprep.mubr.f32.mxu0 0.0
        %v2004 = vand.u32 %v293, 4294901760
        %2005 = vmatmul.mubr.f32.gmra.mxu0 %v2004
        %v2006 = vpop.f32.mrf.mxu0
        %v2007 = vadd.f32 %v1762, %v2006
        %v2008 = vpop.f32.mrf.mxu0
        %v2009 = vadd.f32 %v1764, %v2008
        %2010 = vmatprep.mubr.f32.mxu0 0.0
        %v2011 = vand.u32 %v296, 4294901760
        %2012 = vmatmul.mubr.f32.gmra.mxu0 %v2011
        %v2013 = vpop.f32.mrf.mxu0
        %v2014 = vadd.f32 %v1773, %v2013
        %v2015 = vpop.f32.mrf.mxu0
        %v2016 = vadd.f32 %v1775, %v2015
        %2017 = vmatprep.mubr.f32.mxu0 0.0
        %v2018 = vand.u32 %v299, 4294901760
        %2019 = vmatmul.mubr.f32.gmra.mxu0 %v2018
        %v2020 = vpop.f32.mrf.mxu0
        %v2021 = vadd.f32 %v1784, %v2020
        %v2022 = vpop.f32.mrf.mxu0
        %v2023 = vadd.f32 %v1786, %v2022
        %2024 = vmatprep.mubr.f32.mxu0 0.0
        %v2025 = vand.u32 %v302, 4294901760
        %2026 = vmatmul.mubr.f32.gmra.mxu0 %v2025
        %v2027 = vpop.f32.mrf.mxu0
        %v2028 = vadd.f32 %v1795, %v2027
        %v2029 = vpop.f32.mrf.mxu0
        %v2030 = vadd.f32 %v1797, %v2029
        %2031 = vmatprep.mubr.f32.mxu0 0.0
        %v2032 = vand.u32 %v305, 4294901760
        %2033 = vmatmul.mubr.f32.gmra.mxu0 %v2032
        %v2034 = vpop.f32.mrf.mxu0
        %v2035 = vadd.f32 %v1806, %v2034
        %v2036 = vpop.f32.mrf.mxu0
        %v2037 = vadd.f32 %v1808, %v2036
        %2038 = vmatprep.mubr.f32.mxu0 0.0
        %v2039 = vand.u32 %v308, 4294901760
        %2040 = vmatmul.mubr.f32.gmra.mxu0 %v2039
        %v2041 = vpop.f32.mrf.mxu0
        %v2042 = vadd.f32 %v1817, %v2041
        %v2043 = vpop.f32.mrf.mxu0
        %v2044 = vadd.f32 %v1819, %v2043
        %2045 = vmatprep.mubr.f32.mxu0 0.0
        %v2046 = vand.u32 %v311, 4294901760
        %2047 = vmatmul.mubr.f32.gmra.mxu0 %v2046
        %v2048 = vpop.f32.mrf.mxu0
        %v2049 = vadd.f32 %v1828, %v2048
        %v2050 = vpop.f32.mrf.mxu0
        %v2051 = vadd.f32 %v1830, %v2050
        %2052 = vmatprep.mubr.f32.mxu0 0.0
        %v2053 = vand.u32 %v314, 4294901760
        %2054 = vmatmul.mubr.f32.gmra.mxu0 %v2053
        %v2055 = vpop.f32.mrf.mxu0
        %v2056 = vadd.f32 %v1839, %v2055
        %v2057 = vpop.f32.mrf.mxu0
        %v2058 = vadd.f32 %v1841, %v2057
        %2059 = vdwg.mxu0
        %2060 = vmatprep.subr.mxu0 0.0
        %2061 = vmatpush1.msra.mxu0 0.0
        %2062 = vmatprep.subr.mxu0 0.0
        %2063 = vmatpush1.msra.mxu0 0.0
        %2064 = vmatprep.subr.mxu0 0.0
        %2065 = vmatpush1.msra.mxu0 0.0
        %2066 = vmatprep.subr.mxu0 0.0
        %2067 = vmatpush1.msra.mxu0 0.0
        %2068 = vmatprep.subr.mxu0 0.0
        %2069 = vmatpush1.msra.mxu0 0.0
        %2070 = vmatprep.subr.mxu0 0.0
        %2071 = vmatpush1.msra.mxu0 0.0
        %2072 = vmatprep.subr.mxu0 0.0
        %2073 = vmatpush1.msra.mxu0 0.0
        %2074 = vmatprep.subr.mxu0 0.0
        %2075 = vmatpush1.msra.mxu0 0.0
        %2076 = vmatprep.subr.mxu0 0.0
        %2077 = vmatpush1.msra.mxu0 0.0
        %2078 = vmatprep.subr.mxu0 0.0
        %2079 = vmatpush1.msra.mxu0 0.0
        %2080 = vmatprep.subr.mxu0 0.0
        %2081 = vmatpush1.msra.mxu0 0.0
        %2082 = vmatprep.subr.mxu0 0.0
        %2083 = vmatpush1.msra.mxu0 0.0
        %v2084 = vand.u32 %v244, 4294901760
        %v2085 = vsub.f32 %v244, %v2084
        %2086 = vmatprep.subr.mxu0 %v2085
        %v2087 = vand.u32 %v243, 4294901760
        %v2088 = vsub.f32 %v243, %v2087
        %2089 = vmatpush1.msra.mxu0 %v2088
        %v2090 = vand.u32 %v240, 4294901760
        %v2091 = vsub.f32 %v240, %v2090
        %2092 = vmatprep.subr.mxu0 %v2091
        %v2093 = vand.u32 %v239, 4294901760
        %v2094 = vsub.f32 %v239, %v2093
        %2095 = vmatpush1.msra.mxu0 %v2094
        %v2096 = vand.u32 %v236, 4294901760
        %v2097 = vsub.f32 %v236, %v2096
        %2098 = vmatprep.subr.mxu0 %v2097
        %v2099 = vand.u32 %v235, 4294901760
        %v2100 = vsub.f32 %v235, %v2099
        %2101 = vmatpush1.msra.mxu0 %v2100
        %v2102 = vand.u32 %v232, 4294901760
        %v2103 = vsub.f32 %v232, %v2102
        %2104 = vmatprep.subr.mxu0 %v2103
        %v2105 = vand.u32 %v231, 4294901760
        %v2106 = vsub.f32 %v231, %v2105
        %2107 = vmatpush1.msra.mxu0 %v2106
        %2108 = vmatprep.subr.mxu0 0.0
        %2109 = vmatpush2.msra.mxu0 0.0
        %2110 = vmatprep.subr.mxu0 0.0
        %2111 = vmatpush2.msra.mxu0 0.0
        %2112 = vmatprep.subr.mxu0 0.0
        %2113 = vmatpush2.msra.mxu0 0.0
        %2114 = vmatprep.subr.mxu0 0.0
        %2115 = vmatpush2.msra.mxu0 0.0
        %2116 = vmatprep.subr.mxu0 0.0
        %2117 = vmatpush2.msra.mxu0 0.0
        %2118 = vmatprep.subr.mxu0 0.0
        %2119 = vmatpush2.msra.mxu0 0.0
        %2120 = vmatprep.subr.mxu0 0.0
        %2121 = vmatpush2.msra.mxu0 0.0
        %2122 = vmatprep.subr.mxu0 0.0
        %2123 = vmatpush2.msra.mxu0 0.0
        %2124 = vmatprep.subr.mxu0 0.0
        %2125 = vmatpush2.msra.mxu0 0.0
        %2126 = vmatprep.subr.mxu0 0.0
        %2127 = vmatpush2.msra.mxu0 0.0
        %2128 = vmatprep.subr.mxu0 0.0
        %2129 = vmatpush2.msra.mxu0 0.0
        %2130 = vmatprep.subr.mxu0 0.0
        %2131 = vmatpush2.msra.mxu0 0.0
        %2132 = vmatprep.subr.mxu0 0.0
        %2133 = vmatpush2.msra.mxu0 0.0
        %2134 = vmatprep.subr.mxu0 0.0
        %2135 = vmatpush2.msra.mxu0 0.0
        %2136 = vmatprep.subr.mxu0 0.0
        %2137 = vmatpush2.msra.mxu0 0.0
        %2138 = vmatprep.subr.mxu0 0.0
        %2139 = vmatpush2.msra.mxu0 0.0
        %2140 = vmatprep.mubr.f32.mxu0 0.0
        %v2141 = vand.u32 %v269, 4294901760
        %v2142 = vsub.f32 %v269, %v2141
        %2143 = vmatmul.mubr.f32.gmra.mxu0 %v2142
        %v2144 = vpop.f32.mrf.mxu0
        %v2145 = vadd.f32 %v1951, %v2144
        %v2146 = vpop.f32.mrf.mxu0
        %v2147 = vadd.f32 %v1953, %v2146
        %2148 = vmatprep.mubr.f32.mxu0 0.0
        %v2149 = vand.u32 %v272, 4294901760
        %v2150 = vsub.f32 %v272, %v2149
        %2151 = vmatmul.mubr.f32.gmra.mxu0 %v2150
        %v2152 = vpop.f32.mrf.mxu0
        %v2153 = vadd.f32 %v1958, %v2152
        %v2154 = vpop.f32.mrf.mxu0
        %v2155 = vadd.f32 %v1960, %v2154
        %2156 = vmatprep.mubr.f32.mxu0 0.0
        %v2157 = vand.u32 %v275, 4294901760
        %v2158 = vsub.f32 %v275, %v2157
        %2159 = vmatmul.mubr.f32.gmra.mxu0 %v2158
        %v2160 = vpop.f32.mrf.mxu0
        %v2161 = vadd.f32 %v1965, %v2160
        %v2162 = vpop.f32.mrf.mxu0
        %v2163 = vadd.f32 %v1967, %v2162
        %2164 = vmatprep.mubr.f32.mxu0 0.0
        %v2165 = vand.u32 %v278, 4294901760
        %v2166 = vsub.f32 %v278, %v2165
        %2167 = vmatmul.mubr.f32.gmra.mxu0 %v2166
        %v2168 = vpop.f32.mrf.mxu0
        %v2169 = vadd.f32 %v1972, %v2168
        %v2170 = vpop.f32.mrf.mxu0
        %v2171 = vadd.f32 %v1974, %v2170
        %2172 = vmatprep.mubr.f32.mxu0 0.0
        %v2173 = vand.u32 %v281, 4294901760
        %v2174 = vsub.f32 %v281, %v2173
        %2175 = vmatmul.mubr.f32.gmra.mxu0 %v2174
        %v2176 = vpop.f32.mrf.mxu0
        %v2177 = vadd.f32 %v1979, %v2176
        %v2178 = vpop.f32.mrf.mxu0
        %v2179 = vadd.f32 %v1981, %v2178
        %2180 = vmatprep.mubr.f32.mxu0 0.0
        %v2181 = vand.u32 %v284, 4294901760
        %v2182 = vsub.f32 %v284, %v2181
        %2183 = vmatmul.mubr.f32.gmra.mxu0 %v2182
        %v2184 = vpop.f32.mrf.mxu0
        %v2185 = vadd.f32 %v1986, %v2184
        %v2186 = vpop.f32.mrf.mxu0
        %v2187 = vadd.f32 %v1988, %v2186
        %2188 = vmatprep.mubr.f32.mxu0 0.0
        %v2189 = vand.u32 %v287, 4294901760
        %v2190 = vsub.f32 %v287, %v2189
        %2191 = vmatmul.mubr.f32.gmra.mxu0 %v2190
        %v2192 = vpop.f32.mrf.mxu0
        %v2193 = vadd.f32 %v1993, %v2192
        %v2194 = vpop.f32.mrf.mxu0
        %v2195 = vadd.f32 %v1995, %v2194
        %2196 = vmatprep.mubr.f32.mxu0 0.0
        %v2197 = vand.u32 %v290, 4294901760
        %v2198 = vsub.f32 %v290, %v2197
        %2199 = vmatmul.mubr.f32.gmra.mxu0 %v2198
        %v2200 = vpop.f32.mrf.mxu0
        %v2201 = vadd.f32 %v2000, %v2200
        %v2202 = vpop.f32.mrf.mxu0
        %v2203 = vadd.f32 %v2002, %v2202
        %2204 = vmatprep.mubr.f32.mxu0 0.0
        %v2205 = vand.u32 %v293, 4294901760
        %v2206 = vsub.f32 %v293, %v2205
        %2207 = vmatmul.mubr.f32.gmra.mxu0 %v2206
        %v2208 = vpop.f32.mrf.mxu0
        %v2209 = vadd.f32 %v2007, %v2208
        %v2210 = vpop.f32.mrf.mxu0
        %v2211 = vadd.f32 %v2009, %v2210
        %2212 = vmatprep.mubr.f32.mxu0 0.0
        %v2213 = vand.u32 %v296, 4294901760
        %v2214 = vsub.f32 %v296, %v2213
        %2215 = vmatmul.mubr.f32.gmra.mxu0 %v2214
        %v2216 = vpop.f32.mrf.mxu0
        %v2217 = vadd.f32 %v2014, %v2216
        %v2218 = vpop.f32.mrf.mxu0
        %v2219 = vadd.f32 %v2016, %v2218
        %2220 = vmatprep.mubr.f32.mxu0 0.0
        %v2221 = vand.u32 %v299, 4294901760
        %v2222 = vsub.f32 %v299, %v2221
        %2223 = vmatmul.mubr.f32.gmra.mxu0 %v2222
        %v2224 = vpop.f32.mrf.mxu0
        %v2225 = vadd.f32 %v2021, %v2224
        %v2226 = vpop.f32.mrf.mxu0
        %v2227 = vadd.f32 %v2023, %v2226
        %2228 = vmatprep.mubr.f32.mxu0 0.0
        %v2229 = vand.u32 %v302, 4294901760
        %v2230 = vsub.f32 %v302, %v2229
        %2231 = vmatmul.mubr.f32.gmra.mxu0 %v2230
        %v2232 = vpop.f32.mrf.mxu0
        %v2233 = vadd.f32 %v2028, %v2232
        %v2234 = vpop.f32.mrf.mxu0
        %v2235 = vadd.f32 %v2030, %v2234
        %2236 = vmatprep.mubr.f32.mxu0 0.0
        %v2237 = vand.u32 %v305, 4294901760
        %v2238 = vsub.f32 %v305, %v2237
        %2239 = vmatmul.mubr.f32.gmra.mxu0 %v2238
        %v2240 = vpop.f32.mrf.mxu0
        %v2241 = vadd.f32 %v2035, %v2240
        %v2242 = vpop.f32.mrf.mxu0
        %v2243 = vadd.f32 %v2037, %v2242
        %2244 = vmatprep.mubr.f32.mxu0 0.0
        %v2245 = vand.u32 %v308, 4294901760
        %v2246 = vsub.f32 %v308, %v2245
        %2247 = vmatmul.mubr.f32.gmra.mxu0 %v2246
        %v2248 = vpop.f32.mrf.mxu0
        %v2249 = vadd.f32 %v2042, %v2248
        %v2250 = vpop.f32.mrf.mxu0
        %v2251 = vadd.f32 %v2044, %v2250
        %2252 = vmatprep.mubr.f32.mxu0 0.0
        %v2253 = vand.u32 %v311, 4294901760
        %v2254 = vsub.f32 %v311, %v2253
        %2255 = vmatmul.mubr.f32.gmra.mxu0 %v2254
        %v2256 = vpop.f32.mrf.mxu0
        %v2257 = vadd.f32 %v2049, %v2256
        %v2258 = vpop.f32.mrf.mxu0
        %v2259 = vadd.f32 %v2051, %v2258
        %2260 = vmatprep.mubr.f32.mxu0 0.0
        %v2261 = vand.u32 %v314, 4294901760
        %v2262 = vsub.f32 %v314, %v2261
        %2263 = vmatmul.mubr.f32.gmra.mxu0 %v2262
        %v2264 = vpop.f32.mrf.mxu0
        %v2265 = vadd.f32 %v2056, %v2264
        %v2266 = vpop.f32.mrf.mxu0
        %v2267 = vadd.f32 %v2058, %v2266
        %2268 = vdwg.mxu0
        %2269 = vmatprep.subr.mxu0 0.0
        %2270 = vmatpush1.msra.mxu0 0.0
        %2271 = vmatprep.subr.mxu0 0.0
        %2272 = vmatpush1.msra.mxu0 0.0
        %2273 = vmatprep.subr.mxu0 0.0
        %2274 = vmatpush1.msra.mxu0 0.0
        %2275 = vmatprep.subr.mxu0 0.0
        %2276 = vmatpush1.msra.mxu0 0.0
        %2277 = vmatprep.subr.mxu0 0.0
        %2278 = vmatpush1.msra.mxu0 0.0
        %2279 = vmatprep.subr.mxu0 0.0
        %2280 = vmatpush1.msra.mxu0 0.0
        %2281 = vmatprep.subr.mxu0 0.0
        %2282 = vmatpush1.msra.mxu0 0.0
        %2283 = vmatprep.subr.mxu0 0.0
        %2284 = vmatpush1.msra.mxu0 0.0
        %2285 = vmatprep.subr.mxu0 0.0
        %2286 = vmatpush1.msra.mxu0 0.0
        %2287 = vmatprep.subr.mxu0 0.0
        %2288 = vmatpush1.msra.mxu0 0.0
        %2289 = vmatprep.subr.mxu0 0.0
        %2290 = vmatpush1.msra.mxu0 0.0
        %2291 = vmatprep.subr.mxu0 0.0
        %2292 = vmatpush1.msra.mxu0 0.0
        %v2293 = vand.u32 %v244, 4294901760
        %2294 = vmatprep.subr.mxu0 %v2293
        %v2295 = vand.u32 %v243, 4294901760
        %2296 = vmatpush1.msra.mxu0 %v2295
        %v2297 = vand.u32 %v240, 4294901760
        %2298 = vmatprep.subr.mxu0 %v2297
        %v2299 = vand.u32 %v239, 4294901760
        %2300 = vmatpush1.msra.mxu0 %v2299
        %v2301 = vand.u32 %v236, 4294901760
        %2302 = vmatprep.subr.mxu0 %v2301
        %v2303 = vand.u32 %v235, 4294901760
        %2304 = vmatpush1.msra.mxu0 %v2303
        %v2305 = vand.u32 %v232, 4294901760
        %2306 = vmatprep.subr.mxu0 %v2305
        %v2307 = vand.u32 %v231, 4294901760
        %2308 = vmatpush1.msra.mxu0 %v2307
        %2309 = vmatprep.subr.mxu0 0.0
        %2310 = vmatpush2.msra.mxu0 0.0
        %2311 = vmatprep.subr.mxu0 0.0
        %2312 = vmatpush2.msra.mxu0 0.0
        %2313 = vmatprep.subr.mxu0 0.0
        %2314 = vmatpush2.msra.mxu0 0.0
        %2315 = vmatprep.subr.mxu0 0.0
        %2316 = vmatpush2.msra.mxu0 0.0
        %2317 = vmatprep.subr.mxu0 0.0
        %2318 = vmatpush2.msra.mxu0 0.0
        %2319 = vmatprep.subr.mxu0 0.0
        %2320 = vmatpush2.msra.mxu0 0.0
        %2321 = vmatprep.subr.mxu0 0.0
        %2322 = vmatpush2.msra.mxu0 0.0
        %2323 = vmatprep.subr.mxu0 0.0
        %2324 = vmatpush2.msra.mxu0 0.0
        %2325 = vmatprep.subr.mxu0 0.0
        %2326 = vmatpush2.msra.mxu0 0.0
        %2327 = vmatprep.subr.mxu0 0.0
        %2328 = vmatpush2.msra.mxu0 0.0
        %2329 = vmatprep.subr.mxu0 0.0
        %2330 = vmatpush2.msra.mxu0 0.0
        %2331 = vmatprep.subr.mxu0 0.0
        %2332 = vmatpush2.msra.mxu0 0.0
        %2333 = vmatprep.subr.mxu0 0.0
        %2334 = vmatpush2.msra.mxu0 0.0
        %2335 = vmatprep.subr.mxu0 0.0
        %2336 = vmatpush2.msra.mxu0 0.0
        %2337 = vmatprep.subr.mxu0 0.0
        %2338 = vmatpush2.msra.mxu0 0.0
        %2339 = vmatprep.subr.mxu0 0.0
        %2340 = vmatpush2.msra.mxu0 0.0
        %2341 = vmatprep.mubr.f32.mxu0 0.0
        %v2342 = vand.u32 %v269, 4294901760
        %v2343 = vsub.f32 %v269, %v2342
        %v2344 = vand.u32 %v2343, 4294901760
        %2345 = vmatmul.mubr.f32.gmra.mxu0 %v2344
        %v2346 = vpop.f32.mrf.mxu0
        %v2347 = vadd.f32 %v2145, %v2346
        %v2348 = vpop.f32.mrf.mxu0
        %v2349 = vadd.f32 %v2147, %v2348
        %2350 = vmatprep.mubr.f32.mxu0 0.0
        %v2351 = vand.u32 %v272, 4294901760
        %v2352 = vsub.f32 %v272, %v2351
        %v2353 = vand.u32 %v2352, 4294901760
        %2354 = vmatmul.mubr.f32.gmra.mxu0 %v2353
        %v2355 = vpop.f32.mrf.mxu0
        %v2356 = vadd.f32 %v2153, %v2355
        %v2357 = vpop.f32.mrf.mxu0
        %v2358 = vadd.f32 %v2155, %v2357
        %2359 = vmatprep.mubr.f32.mxu0 0.0
        %v2360 = vand.u32 %v275, 4294901760
        %v2361 = vsub.f32 %v275, %v2360
        %v2362 = vand.u32 %v2361, 4294901760
        %2363 = vmatmul.mubr.f32.gmra.mxu0 %v2362
        %v2364 = vpop.f32.mrf.mxu0
        %v2365 = vadd.f32 %v2161, %v2364
        %v2366 = vpop.f32.mrf.mxu0
        %v2367 = vadd.f32 %v2163, %v2366
        %2368 = vmatprep.mubr.f32.mxu0 0.0
        %v2369 = vand.u32 %v278, 4294901760
        %v2370 = vsub.f32 %v278, %v2369
        %v2371 = vand.u32 %v2370, 4294901760
        %2372 = vmatmul.mubr.f32.gmra.mxu0 %v2371
        %v2373 = vpop.f32.mrf.mxu0
        %v2374 = vadd.f32 %v2169, %v2373
        %v2375 = vpop.f32.mrf.mxu0
        %v2376 = vadd.f32 %v2171, %v2375
        %2377 = vmatprep.mubr.f32.mxu0 0.0
        %v2378 = vand.u32 %v281, 4294901760
        %v2379 = vsub.f32 %v281, %v2378
        %v2380 = vand.u32 %v2379, 4294901760
        %2381 = vmatmul.mubr.f32.gmra.mxu0 %v2380
        %v2382 = vpop.f32.mrf.mxu0
        %v2383 = vadd.f32 %v2177, %v2382
        %v2384 = vpop.f32.mrf.mxu0
        %v2385 = vadd.f32 %v2179, %v2384
        %2386 = vmatprep.mubr.f32.mxu0 0.0
        %v2387 = vand.u32 %v284, 4294901760
        %v2388 = vsub.f32 %v284, %v2387
        %v2389 = vand.u32 %v2388, 4294901760
        %2390 = vmatmul.mubr.f32.gmra.mxu0 %v2389
        %v2391 = vpop.f32.mrf.mxu0
        %v2392 = vadd.f32 %v2185, %v2391
        %v2393 = vpop.f32.mrf.mxu0
        %v2394 = vadd.f32 %v2187, %v2393
        %2395 = vmatprep.mubr.f32.mxu0 0.0
        %v2396 = vand.u32 %v287, 4294901760
        %v2397 = vsub.f32 %v287, %v2396
        %v2398 = vand.u32 %v2397, 4294901760
        %2399 = vmatmul.mubr.f32.gmra.mxu0 %v2398
        %v2400 = vpop.f32.mrf.mxu0
        %v2401 = vadd.f32 %v2193, %v2400
        %v2402 = vpop.f32.mrf.mxu0
        %v2403 = vadd.f32 %v2195, %v2402
        %2404 = vmatprep.mubr.f32.mxu0 0.0
        %v2405 = vand.u32 %v290, 4294901760
        %v2406 = vsub.f32 %v290, %v2405
        %v2407 = vand.u32 %v2406, 4294901760
        %2408 = vmatmul.mubr.f32.gmra.mxu0 %v2407
        %v2409 = vpop.f32.mrf.mxu0
        %v2410 = vadd.f32 %v2201, %v2409
        %v2411 = vpop.f32.mrf.mxu0
        %v2412 = vadd.f32 %v2203, %v2411
        %2413 = vmatprep.mubr.f32.mxu0 0.0
        %v2414 = vand.u32 %v293, 4294901760
        %v2415 = vsub.f32 %v293, %v2414
        %v2416 = vand.u32 %v2415, 4294901760
        %2417 = vmatmul.mubr.f32.gmra.mxu0 %v2416
        %v2418 = vpop.f32.mrf.mxu0
        %v2419 = vadd.f32 %v2209, %v2418
        %v2420 = vpop.f32.mrf.mxu0
        %v2421 = vadd.f32 %v2211, %v2420
        %2422 = vmatprep.mubr.f32.mxu0 0.0
        %v2423 = vand.u32 %v296, 4294901760
        %v2424 = vsub.f32 %v296, %v2423
        %v2425 = vand.u32 %v2424, 4294901760
        %2426 = vmatmul.mubr.f32.gmra.mxu0 %v2425
        %v2427 = vpop.f32.mrf.mxu0
        %v2428 = vadd.f32 %v2217, %v2427
        %v2429 = vpop.f32.mrf.mxu0
        %v2430 = vadd.f32 %v2219, %v2429
        %2431 = vmatprep.mubr.f32.mxu0 0.0
        %v2432 = vand.u32 %v299, 4294901760
        %v2433 = vsub.f32 %v299, %v2432
        %v2434 = vand.u32 %v2433, 4294901760
        %2435 = vmatmul.mubr.f32.gmra.mxu0 %v2434
        %v2436 = vpop.f32.mrf.mxu0
        %v2437 = vadd.f32 %v2225, %v2436
        %v2438 = vpop.f32.mrf.mxu0
        %v2439 = vadd.f32 %v2227, %v2438
        %2440 = vmatprep.mubr.f32.mxu0 0.0
        %v2441 = vand.u32 %v302, 4294901760
        %v2442 = vsub.f32 %v302, %v2441
        %v2443 = vand.u32 %v2442, 4294901760
        %2444 = vmatmul.mubr.f32.gmra.mxu0 %v2443
        %v2445 = vpop.f32.mrf.mxu0
        %v2446 = vadd.f32 %v2233, %v2445
        %v2447 = vpop.f32.mrf.mxu0
        %v2448 = vadd.f32 %v2235, %v2447
        %2449 = vmatprep.mubr.f32.mxu0 0.0
        %v2450 = vand.u32 %v305, 4294901760
        %v2451 = vsub.f32 %v305, %v2450
        %v2452 = vand.u32 %v2451, 4294901760
        %2453 = vmatmul.mubr.f32.gmra.mxu0 %v2452
        %v2454 = vpop.f32.mrf.mxu0
        %v2455 = vadd.f32 %v2241, %v2454
        %v2456 = vpop.f32.mrf.mxu0
        %v2457 = vadd.f32 %v2243, %v2456
        %2458 = vmatprep.mubr.f32.mxu0 0.0
        %v2459 = vand.u32 %v308, 4294901760
        %v2460 = vsub.f32 %v308, %v2459
        %v2461 = vand.u32 %v2460, 4294901760
        %2462 = vmatmul.mubr.f32.gmra.mxu0 %v2461
        %v2463 = vpop.f32.mrf.mxu0
        %v2464 = vadd.f32 %v2249, %v2463
        %v2465 = vpop.f32.mrf.mxu0
        %v2466 = vadd.f32 %v2251, %v2465
        %2467 = vmatprep.mubr.f32.mxu0 0.0
        %v2468 = vand.u32 %v311, 4294901760
        %v2469 = vsub.f32 %v311, %v2468
        %v2470 = vand.u32 %v2469, 4294901760
        %2471 = vmatmul.mubr.f32.gmra.mxu0 %v2470
        %v2472 = vpop.f32.mrf.mxu0
        %v2473 = vadd.f32 %v2257, %v2472
        %v2474 = vpop.f32.mrf.mxu0
        %v2475 = vadd.f32 %v2259, %v2474
        %2476 = vmatprep.mubr.f32.mxu0 0.0
        %v2477 = vand.u32 %v314, 4294901760
        %v2478 = vsub.f32 %v314, %v2477
        %v2479 = vand.u32 %v2478, 4294901760
        %2480 = vmatmul.mubr.f32.gmra.mxu0 %v2479
        %v2481 = vpop.f32.mrf.mxu0
        %v2482 = vadd.f32 %v2265, %v2481
        %v2483 = vpop.f32.mrf.mxu0
        %v2484 = vadd.f32 %v2267, %v2483
        %2485 = vdwg.mxu0
        %2486 = vmatprep.subr.mxu0 0.0
        %2487 = vmatpush1.msra.mxu0 0.0
        %2488 = vmatprep.subr.mxu0 0.0
        %2489 = vmatpush1.msra.mxu0 0.0
        %2490 = vmatprep.subr.mxu0 0.0
        %2491 = vmatpush1.msra.mxu0 0.0
        %2492 = vmatprep.subr.mxu0 0.0
        %2493 = vmatpush1.msra.mxu0 0.0
        %2494 = vmatprep.subr.mxu0 0.0
        %2495 = vmatpush1.msra.mxu0 0.0
        %2496 = vmatprep.subr.mxu0 0.0
        %2497 = vmatpush1.msra.mxu0 0.0
        %2498 = vmatprep.subr.mxu0 0.0
        %2499 = vmatpush1.msra.mxu0 0.0
        %2500 = vmatprep.subr.mxu0 0.0
        %2501 = vmatpush1.msra.mxu0 0.0
        %2502 = vmatprep.subr.mxu0 0.0
        %2503 = vmatpush1.msra.mxu0 0.0
        %2504 = vmatprep.subr.mxu0 0.0
        %2505 = vmatpush1.msra.mxu0 0.0
        %2506 = vmatprep.subr.mxu0 0.0
        %2507 = vmatpush1.msra.mxu0 0.0
        %2508 = vmatprep.subr.mxu0 0.0
        %2509 = vmatpush1.msra.mxu0 0.0
        %v2510 = vand.u32 %v244, 4294901760
        %v2511 = vsub.f32 %v244, %v2510
        %v2512 = vand.u32 %v2511, 4294901760
        %2513 = vmatprep.subr.mxu0 %v2512
        %v2514 = vand.u32 %v243, 4294901760
        %v2515 = vsub.f32 %v243, %v2514
        %v2516 = vand.u32 %v2515, 4294901760
        %2517 = vmatpush1.msra.mxu0 %v2516
        %v2518 = vand.u32 %v240, 4294901760
        %v2519 = vsub.f32 %v240, %v2518
        %v2520 = vand.u32 %v2519, 4294901760
        %2521 = vmatprep.subr.mxu0 %v2520
        %v2522 = vand.u32 %v239, 4294901760
        %v2523 = vsub.f32 %v239, %v2522
        %v2524 = vand.u32 %v2523, 4294901760
        %2525 = vmatpush1.msra.mxu0 %v2524
        %v2526 = vand.u32 %v236, 4294901760
        %v2527 = vsub.f32 %v236, %v2526
        %v2528 = vand.u32 %v2527, 4294901760
        %2529 = vmatprep.subr.mxu0 %v2528
        %v2530 = vand.u32 %v235, 4294901760
        %v2531 = vsub.f32 %v235, %v2530
        %v2532 = vand.u32 %v2531, 4294901760
        %2533 = vmatpush1.msra.mxu0 %v2532
        %v2534 = vand.u32 %v232, 4294901760
        %v2535 = vsub.f32 %v232, %v2534
        %v2536 = vand.u32 %v2535, 4294901760
        %2537 = vmatprep.subr.mxu0 %v2536
        %v2538 = vand.u32 %v231, 4294901760
        %v2539 = vsub.f32 %v231, %v2538
        %v2540 = vand.u32 %v2539, 4294901760
        %2541 = vmatpush1.msra.mxu0 %v2540
        %2542 = vmatprep.subr.mxu0 0.0
        %2543 = vmatpush2.msra.mxu0 0.0
        %2544 = vmatprep.subr.mxu0 0.0
        %2545 = vmatpush2.msra.mxu0 0.0
        %2546 = vmatprep.subr.mxu0 0.0
        %2547 = vmatpush2.msra.mxu0 0.0
        %2548 = vmatprep.subr.mxu0 0.0
        %2549 = vmatpush2.msra.mxu0 0.0
        %2550 = vmatprep.subr.mxu0 0.0
        %2551 = vmatpush2.msra.mxu0 0.0
        %2552 = vmatprep.subr.mxu0 0.0
        %2553 = vmatpush2.msra.mxu0 0.0
        %2554 = vmatprep.subr.mxu0 0.0
        %2555 = vmatpush2.msra.mxu0 0.0
        %2556 = vmatprep.subr.mxu0 0.0
        %2557 = vmatpush2.msra.mxu0 0.0
        %2558 = vmatprep.subr.mxu0 0.0
        %2559 = vmatpush2.msra.mxu0 0.0
        %2560 = vmatprep.subr.mxu0 0.0
        %2561 = vmatpush2.msra.mxu0 0.0
        %2562 = vmatprep.subr.mxu0 0.0
        %2563 = vmatpush2.msra.mxu0 0.0
        %2564 = vmatprep.subr.mxu0 0.0
        %2565 = vmatpush2.msra.mxu0 0.0
        %2566 = vmatprep.subr.mxu0 0.0
        %2567 = vmatpush2.msra.mxu0 0.0
        %2568 = vmatprep.subr.mxu0 0.0
        %2569 = vmatpush2.msra.mxu0 0.0
        %2570 = vmatprep.subr.mxu0 0.0
        %2571 = vmatpush2.msra.mxu0 0.0
        %2572 = vmatprep.subr.mxu0 0.0
        %2573 = vmatpush2.msra.mxu0 0.0
        %2574 = vmatprep.mubr.f32.mxu0 0.0
        %v2575 = vand.u32 %v269, 4294901760
        %2576 = vmatmul.mubr.f32.gmra.mxu0 %v2575
        %v2577 = vpop.f32.mrf.mxu0
        %v2578 = vadd.f32 %v2347, %v2577
        %v2579 = vpop.f32.mrf.mxu0
        %v2580 = vadd.f32 %v2349, %v2579
        %2581 = vmatprep.mubr.f32.mxu0 0.0
        %v2582 = vand.u32 %v272, 4294901760
        %2583 = vmatmul.mubr.f32.gmra.mxu0 %v2582
        %v2584 = vpop.f32.mrf.mxu0
        %v2585 = vadd.f32 %v2356, %v2584
        %v2586 = vpop.f32.mrf.mxu0
        %v2587 = vadd.f32 %v2358, %v2586
        %2588 = vmatprep.mubr.f32.mxu0 0.0
        %v2589 = vand.u32 %v275, 4294901760
        %2590 = vmatmul.mubr.f32.gmra.mxu0 %v2589
        %v2591 = vpop.f32.mrf.mxu0
        %v2592 = vadd.f32 %v2365, %v2591
        %v2593 = vpop.f32.mrf.mxu0
        %v2594 = vadd.f32 %v2367, %v2593
        %2595 = vmatprep.mubr.f32.mxu0 0.0
        %v2596 = vand.u32 %v278, 4294901760
        %2597 = vmatmul.mubr.f32.gmra.mxu0 %v2596
        %v2598 = vpop.f32.mrf.mxu0
        %v2599 = vadd.f32 %v2374, %v2598
        %v2600 = vpop.f32.mrf.mxu0
        %v2601 = vadd.f32 %v2376, %v2600
        %2602 = vmatprep.mubr.f32.mxu0 0.0
        %v2603 = vand.u32 %v281, 4294901760
        %2604 = vmatmul.mubr.f32.gmra.mxu0 %v2603
        %v2605 = vpop.f32.mrf.mxu0
        %v2606 = vadd.f32 %v2383, %v2605
        %v2607 = vpop.f32.mrf.mxu0
        %v2608 = vadd.f32 %v2385, %v2607
        %2609 = vmatprep.mubr.f32.mxu0 0.0
        %v2610 = vand.u32 %v284, 4294901760
        %2611 = vmatmul.mubr.f32.gmra.mxu0 %v2610
        %v2612 = vpop.f32.mrf.mxu0
        %v2613 = vadd.f32 %v2392, %v2612
        %v2614 = vpop.f32.mrf.mxu0
        %v2615 = vadd.f32 %v2394, %v2614
        %2616 = vmatprep.mubr.f32.mxu0 0.0
        %v2617 = vand.u32 %v287, 4294901760
        %2618 = vmatmul.mubr.f32.gmra.mxu0 %v2617
        %v2619 = vpop.f32.mrf.mxu0
        %v2620 = vadd.f32 %v2401, %v2619
        %v2621 = vpop.f32.mrf.mxu0
        %v2622 = vadd.f32 %v2403, %v2621
        %2623 = vmatprep.mubr.f32.mxu0 0.0
        %v2624 = vand.u32 %v290, 4294901760
        %2625 = vmatmul.mubr.f32.gmra.mxu0 %v2624
        %v2626 = vpop.f32.mrf.mxu0
        %v2627 = vadd.f32 %v2410, %v2626
        %v2628 = vpop.f32.mrf.mxu0
        %v2629 = vadd.f32 %v2412, %v2628
        %2630 = vmatprep.mubr.f32.mxu0 0.0
        %v2631 = vand.u32 %v293, 4294901760
        %2632 = vmatmul.mubr.f32.gmra.mxu0 %v2631
        %v2633 = vpop.f32.mrf.mxu0
        %v2634 = vadd.f32 %v2419, %v2633
        %v2635 = vpop.f32.mrf.mxu0
        %v2636 = vadd.f32 %v2421, %v2635
        %2637 = vmatprep.mubr.f32.mxu0 0.0
        %v2638 = vand.u32 %v296, 4294901760
        %2639 = vmatmul.mubr.f32.gmra.mxu0 %v2638
        %v2640 = vpop.f32.mrf.mxu0
        %v2641 = vadd.f32 %v2428, %v2640
        %v2642 = vpop.f32.mrf.mxu0
        %v2643 = vadd.f32 %v2430, %v2642
        %2644 = vmatprep.mubr.f32.mxu0 0.0
        %v2645 = vand.u32 %v299, 4294901760
        %2646 = vmatmul.mubr.f32.gmra.mxu0 %v2645
        %v2647 = vpop.f32.mrf.mxu0
        %v2648 = vadd.f32 %v2437, %v2647
        %v2649 = vpop.f32.mrf.mxu0
        %v2650 = vadd.f32 %v2439, %v2649
        %2651 = vmatprep.mubr.f32.mxu0 0.0
        %v2652 = vand.u32 %v302, 4294901760
        %2653 = vmatmul.mubr.f32.gmra.mxu0 %v2652
        %v2654 = vpop.f32.mrf.mxu0
        %v2655 = vadd.f32 %v2446, %v2654
        %v2656 = vpop.f32.mrf.mxu0
        %v2657 = vadd.f32 %v2448, %v2656
        %2658 = vmatprep.mubr.f32.mxu0 0.0
        %v2659 = vand.u32 %v305, 4294901760
        %2660 = vmatmul.mubr.f32.gmra.mxu0 %v2659
        %v2661 = vpop.f32.mrf.mxu0
        %v2662 = vadd.f32 %v2455, %v2661
        %v2663 = vpop.f32.mrf.mxu0
        %v2664 = vadd.f32 %v2457, %v2663
        %2665 = vmatprep.mubr.f32.mxu0 0.0
        %v2666 = vand.u32 %v308, 4294901760
        %2667 = vmatmul.mubr.f32.gmra.mxu0 %v2666
        %v2668 = vpop.f32.mrf.mxu0
        %v2669 = vadd.f32 %v2464, %v2668
        %v2670 = vpop.f32.mrf.mxu0
        %v2671 = vadd.f32 %v2466, %v2670
        %2672 = vmatprep.mubr.f32.mxu0 0.0
        %v2673 = vand.u32 %v311, 4294901760
        %2674 = vmatmul.mubr.f32.gmra.mxu0 %v2673
        %v2675 = vpop.f32.mrf.mxu0
        %v2676 = vadd.f32 %v2473, %v2675
        %v2677 = vpop.f32.mrf.mxu0
        %v2678 = vadd.f32 %v2475, %v2677
        %2679 = vmatprep.mubr.f32.mxu0 0.0
        %v2680 = vand.u32 %v314, 4294901760
        %2681 = vmatmul.mubr.f32.gmra.mxu0 %v2680
        %v2682 = vpop.f32.mrf.mxu0
        %v2683 = vadd.f32 %v2482, %v2682
        %v2684 = vpop.f32.mrf.mxu0
        %v2685 = vadd.f32 %v2484, %v2684
        %2686 = vdwg.mxu0
        %2687 = vmatprep.subr.mxu0 0.0
        %2688 = vmatpush1.msra.mxu0 0.0
        %2689 = vmatprep.subr.mxu0 0.0
        %2690 = vmatpush1.msra.mxu0 0.0
        %2691 = vmatprep.subr.mxu0 0.0
        %2692 = vmatpush1.msra.mxu0 0.0
        %2693 = vmatprep.subr.mxu0 0.0
        %2694 = vmatpush1.msra.mxu0 0.0
        %2695 = vmatprep.subr.mxu0 0.0
        %2696 = vmatpush1.msra.mxu0 0.0
        %2697 = vmatprep.subr.mxu0 0.0
        %2698 = vmatpush1.msra.mxu0 0.0
        %2699 = vmatprep.subr.mxu0 0.0
        %2700 = vmatpush1.msra.mxu0 0.0
        %2701 = vmatprep.subr.mxu0 0.0
        %2702 = vmatpush1.msra.mxu0 0.0
        %2703 = vmatprep.subr.mxu0 0.0
        %2704 = vmatpush1.msra.mxu0 0.0
        %2705 = vmatprep.subr.mxu0 0.0
        %2706 = vmatpush1.msra.mxu0 0.0
        %2707 = vmatprep.subr.mxu0 0.0
        %2708 = vmatpush1.msra.mxu0 0.0
        %2709 = vmatprep.subr.mxu0 0.0
        %2710 = vmatpush1.msra.mxu0 0.0
        %v2711 = vand.u32 %v244, 4294901760
        %2712 = vmatprep.subr.mxu0 %v2711
        %v2713 = vand.u32 %v243, 4294901760
        %2714 = vmatpush1.msra.mxu0 %v2713
        %v2715 = vand.u32 %v240, 4294901760
        %2716 = vmatprep.subr.mxu0 %v2715
        %v2717 = vand.u32 %v239, 4294901760
        %2718 = vmatpush1.msra.mxu0 %v2717
        %v2719 = vand.u32 %v236, 4294901760
        %2720 = vmatprep.subr.mxu0 %v2719
        %v2721 = vand.u32 %v235, 4294901760
        %2722 = vmatpush1.msra.mxu0 %v2721
        %v2723 = vand.u32 %v232, 4294901760
        %2724 = vmatprep.subr.mxu0 %v2723
        %v2725 = vand.u32 %v231, 4294901760
        %2726 = vmatpush1.msra.mxu0 %v2725
        %2727 = vmatprep.subr.mxu0 0.0
        %2728 = vmatpush2.msra.mxu0 0.0
        %2729 = vmatprep.subr.mxu0 0.0
        %2730 = vmatpush2.msra.mxu0 0.0
        %2731 = vmatprep.subr.mxu0 0.0
        %2732 = vmatpush2.msra.mxu0 0.0
        %2733 = vmatprep.subr.mxu0 0.0
        %2734 = vmatpush2.msra.mxu0 0.0
        %2735 = vmatprep.subr.mxu0 0.0
        %2736 = vmatpush2.msra.mxu0 0.0
        %2737 = vmatprep.subr.mxu0 0.0
        %2738 = vmatpush2.msra.mxu0 0.0
        %2739 = vmatprep.subr.mxu0 0.0
        %2740 = vmatpush2.msra.mxu0 0.0
        %2741 = vmatprep.subr.mxu0 0.0
        %2742 = vmatpush2.msra.mxu0 0.0
        %2743 = vmatprep.subr.mxu0 0.0
        %2744 = vmatpush2.msra.mxu0 0.0
        %2745 = vmatprep.subr.mxu0 0.0
        %2746 = vmatpush2.msra.mxu0 0.0
        %2747 = vmatprep.subr.mxu0 0.0
        %2748 = vmatpush2.msra.mxu0 0.0
        %2749 = vmatprep.subr.mxu0 0.0
        %2750 = vmatpush2.msra.mxu0 0.0
        %2751 = vmatprep.subr.mxu0 0.0
        %2752 = vmatpush2.msra.mxu0 0.0
        %2753 = vmatprep.subr.mxu0 0.0
        %2754 = vmatpush2.msra.mxu0 0.0
        %2755 = vmatprep.subr.mxu0 0.0
        %2756 = vmatpush2.msra.mxu0 0.0
        %2757 = vmatprep.subr.mxu0 0.0
        %2758 = vmatpush2.msra.mxu0 0.0
        %2759 = vmatprep.mubr.f32.mxu0 0.0
        %v2760 = vand.u32 %v269, 4294901760
        %2761 = vmatmul.mubr.f32.gmra.mxu0 %v2760
        %v2762 = vpop.f32.mrf.mxu0
        %v2763 = vadd.f32 %v2578, %v2762
        %v2764 = vpop.f32.mrf.mxu0
        %v2765 = vadd.f32 %v2580, %v2764
        %2766 = vmatprep.mubr.f32.mxu0 0.0
        %v2767 = vand.u32 %v272, 4294901760
        %2768 = vmatmul.mubr.f32.gmra.mxu0 %v2767
        %v2769 = vpop.f32.mrf.mxu0
        %v2770 = vadd.f32 %v2585, %v2769
        %v2771 = vpop.f32.mrf.mxu0
        %v2772 = vadd.f32 %v2587, %v2771
        %2773 = vmatprep.mubr.f32.mxu0 0.0
        %v2774 = vand.u32 %v275, 4294901760
        %2775 = vmatmul.mubr.f32.gmra.mxu0 %v2774
        %v2776 = vpop.f32.mrf.mxu0
        %v2777 = vadd.f32 %v2592, %v2776
        %v2778 = vpop.f32.mrf.mxu0
        %v2779 = vadd.f32 %v2594, %v2778
        %2780 = vmatprep.mubr.f32.mxu0 0.0
        %v2781 = vand.u32 %v278, 4294901760
        %2782 = vmatmul.mubr.f32.gmra.mxu0 %v2781
        %v2783 = vpop.f32.mrf.mxu0
        %v2784 = vadd.f32 %v2599, %v2783
        %v2785 = vpop.f32.mrf.mxu0
        %v2786 = vadd.f32 %v2601, %v2785
        %2787 = vmatprep.mubr.f32.mxu0 0.0
        %v2788 = vand.u32 %v281, 4294901760
        %2789 = vmatmul.mubr.f32.gmra.mxu0 %v2788
        %v2790 = vpop.f32.mrf.mxu0
        %v2791 = vadd.f32 %v2606, %v2790
        %v2792 = vpop.f32.mrf.mxu0
        %v2793 = vadd.f32 %v2608, %v2792
        %2794 = vmatprep.mubr.f32.mxu0 0.0
        %v2795 = vand.u32 %v284, 4294901760
        %2796 = vmatmul.mubr.f32.gmra.mxu0 %v2795
        %v2797 = vpop.f32.mrf.mxu0
        %v2798 = vadd.f32 %v2613, %v2797
        %v2799 = vpop.f32.mrf.mxu0
        %v2800 = vadd.f32 %v2615, %v2799
        %2801 = vmatprep.mubr.f32.mxu0 0.0
        %v2802 = vand.u32 %v287, 4294901760
        %2803 = vmatmul.mubr.f32.gmra.mxu0 %v2802
        %v2804 = vpop.f32.mrf.mxu0
        %v2805 = vadd.f32 %v2620, %v2804
        %v2806 = vpop.f32.mrf.mxu0
        %v2807 = vadd.f32 %v2622, %v2806
        %2808 = vmatprep.mubr.f32.mxu0 0.0
        %v2809 = vand.u32 %v290, 4294901760
        %2810 = vmatmul.mubr.f32.gmra.mxu0 %v2809
        %v2811 = vpop.f32.mrf.mxu0
        %v2812 = vadd.f32 %v2627, %v2811
        %v2813 = vpop.f32.mrf.mxu0
        %v2814 = vadd.f32 %v2629, %v2813
        %2815 = vmatprep.mubr.f32.mxu0 0.0
        %v2816 = vand.u32 %v293, 4294901760
        %2817 = vmatmul.mubr.f32.gmra.mxu0 %v2816
        %v2818 = vpop.f32.mrf.mxu0
        %v2819 = vadd.f32 %v2634, %v2818
        %v2820 = vpop.f32.mrf.mxu0
        %v2821 = vadd.f32 %v2636, %v2820
        %2822 = vmatprep.mubr.f32.mxu0 0.0
        %v2823 = vand.u32 %v296, 4294901760
        %2824 = vmatmul.mubr.f32.gmra.mxu0 %v2823
        %v2825 = vpop.f32.mrf.mxu0
        %v2826 = vadd.f32 %v2641, %v2825
        %v2827 = vpop.f32.mrf.mxu0
        %v2828 = vadd.f32 %v2643, %v2827
        %2829 = vmatprep.mubr.f32.mxu0 0.0
        %v2830 = vand.u32 %v299, 4294901760
        %2831 = vmatmul.mubr.f32.gmra.mxu0 %v2830
        %v2832 = vpop.f32.mrf.mxu0
        %v2833 = vadd.f32 %v2648, %v2832
        %v2834 = vpop.f32.mrf.mxu0
        %v2835 = vadd.f32 %v2650, %v2834
        %2836 = vmatprep.mubr.f32.mxu0 0.0
        %v2837 = vand.u32 %v302, 4294901760
        %2838 = vmatmul.mubr.f32.gmra.mxu0 %v2837
        %v2839 = vpop.f32.mrf.mxu0
        %v2840 = vadd.f32 %v2655, %v2839
        %v2841 = vpop.f32.mrf.mxu0
        %v2842 = vadd.f32 %v2657, %v2841
        %2843 = vmatprep.mubr.f32.mxu0 0.0
        %v2844 = vand.u32 %v305, 4294901760
        %2845 = vmatmul.mubr.f32.gmra.mxu0 %v2844
        %v2846 = vpop.f32.mrf.mxu0
        %v2847 = vadd.f32 %v2662, %v2846
        %v2848 = vpop.f32.mrf.mxu0
        %v2849 = vadd.f32 %v2664, %v2848
        %2850 = vmatprep.mubr.f32.mxu0 0.0
        %v2851 = vand.u32 %v308, 4294901760
        %2852 = vmatmul.mubr.f32.gmra.mxu0 %v2851
        %v2853 = vpop.f32.mrf.mxu0
        %v2854 = vadd.f32 %v2669, %v2853
        %v2855 = vpop.f32.mrf.mxu0
        %v2856 = vadd.f32 %v2671, %v2855
        %2857 = vmatprep.mubr.f32.mxu0 0.0
        %v2858 = vand.u32 %v311, 4294901760
        %2859 = vmatmul.mubr.f32.gmra.mxu0 %v2858
        %v2860 = vpop.f32.mrf.mxu0
        %v2861 = vadd.f32 %v2676, %v2860
        %v2862 = vpop.f32.mrf.mxu0
        %v2863 = vadd.f32 %v2678, %v2862
        %2864 = vmatprep.mubr.f32.mxu0 0.0
        %v2865 = vand.u32 %v314, 4294901760
        %2866 = vmatmul.mubr.f32.gmra.mxu0 %v2865
        %v2867 = vpop.f32.mrf.mxu0
        %v2868 = vadd.f32 %v2683, %v2867
        %v2869 = vpop.f32.mrf.mxu0
        %v2870 = vadd.f32 %v2685, %v2869
        %2871 = vdwg.mxu0
        %2872 = vst.msk [vmem:[%s210] sm:$0xff] %vm267, %v1485
        %2873 = vst.msk [vmem:[%s210 + $0x8] sm:$0xff] %vm267, %v1492
        %2874 = vst.msk [vmem:[%s210 + $0x10] sm:$0xff] %vm267, %v1499
        %2875 = vst.msk [vmem:[%s210 + $0x18] sm:$0xff] %vm267, %v1506
        %2876 = vst.msk [vmem:[%s210 + $0x20] sm:$0xff] %vm267, %v1513
        %2877 = vst.msk [vmem:[%s210 + $0x28] sm:$0xff] %vm267, %v1520
        %2878 = vst.msk [vmem:[%s210 + $0x30] sm:$0xff] %vm267, %v1527
        %2879 = vst.msk [vmem:[%s210 + $0x38] sm:$0xff] %vm267, %v1534
        %2880 = vst.msk [vmem:[%s210 + $0x40] sm:$0xff] %vm267, %v1541
        %2881 = vst.msk [vmem:[%s210 + $0x48] sm:$0xff] %vm267, %v1548
        %2882 = vst.msk [vmem:[%s210 + $0x50] sm:$0xff] %vm267, %v1555
        %2883 = vst.msk [vmem:[%s210 + $0x58] sm:$0xff] %vm267, %v1562
        %2884 = vst.msk [vmem:[%s210 + $0x60] sm:$0xff] %vm267, %v1569
        %2885 = vst.msk [vmem:[%s210 + $0x68] sm:$0xff] %vm267, %v1576
        %2886 = vst.msk [vmem:[%s210 + $0x70] sm:$0xff] %vm267, %v1583
        %2887 = vst.msk [vmem:[%s210 + $0x78] sm:$0xff] %vm267, %v1590
        %2952 = vrot.lane.b32.xlu0 %v1485, 96
        %v2953 = vpop.permute.xlu0 %2952
        %2954 = vrot.lane.b32.xlu0 %v1487, 96
        %v2955 = vpop.permute.xlu0 %2954
        %2956 = vrot.lane.b32.xlu0 %v2763, 96
        %v2957 = vpop.permute.xlu0 %2956
        %2958 = vrot.lane.b32.xlu0 %v2765, 96
        %v2959 = vpop.permute.xlu0 %2958
        %2960 = vrot.lane.b32.xlu0 %v1492, 96
        %v2961 = vpop.permute.xlu0 %2960
        %2962 = vrot.lane.b32.xlu0 %v1494, 96
        %v2963 = vpop.permute.xlu0 %2962
        %2964 = vrot.lane.b32.xlu0 %v2770, 96
        %v2965 = vpop.permute.xlu0 %2964
        %2966 = vrot.lane.b32.xlu0 %v2772, 96
        %v2967 = vpop.permute.xlu0 %2966
        %2968 = vrot.lane.b32.xlu0 %v1499, 96
        %v2969 = vpop.permute.xlu0 %2968
        %2970 = vrot.lane.b32.xlu0 %v1501, 96
        %v2971 = vpop.permute.xlu0 %2970
        %2972 = vrot.lane.b32.xlu0 %v2777, 96
        %v2973 = vpop.permute.xlu0 %2972
        %2974 = vrot.lane.b32.xlu0 %v2779, 96
        %v2975 = vpop.permute.xlu0 %2974
        %2976 = vrot.lane.b32.xlu0 %v1506, 96
        %v2977 = vpop.permute.xlu0 %2976
        %2978 = vrot.lane.b32.xlu0 %v1508, 96
        %v2979 = vpop.permute.xlu0 %2978
        %2980 = vrot.lane.b32.xlu0 %v2784, 96
        %v2981 = vpop.permute.xlu0 %2980
        %2982 = vrot.lane.b32.xlu0 %v2786, 96
        %v2983 = vpop.permute.xlu0 %2982
        %2984 = vrot.lane.b32.xlu0 %v1513, 96
        %v2985 = vpop.permute.xlu0 %2984
        %2986 = vrot.lane.b32.xlu0 %v1515, 96
        %v2987 = vpop.permute.xlu0 %2986
        %2988 = vrot.lane.b32.xlu0 %v2791, 96
        %v2989 = vpop.permute.xlu0 %2988
        %2990 = vrot.lane.b32.xlu0 %v2793, 96
        %v2991 = vpop.permute.xlu0 %2990
        %2992 = vrot.lane.b32.xlu0 %v1520, 96
        %v2993 = vpop.permute.xlu0 %2992
        %2994 = vrot.lane.b32.xlu0 %v1522, 96
        %v2995 = vpop.permute.xlu0 %2994
        %2996 = vrot.lane.b32.xlu0 %v2798, 96
        %v2997 = vpop.permute.xlu0 %2996
        %2998 = vrot.lane.b32.xlu0 %v2800, 96
        %v2999 = vpop.permute.xlu0 %2998
        %3000 = vrot.lane.b32.xlu0 %v1527, 96
        %v3001 = vpop.permute.xlu0 %3000
        %3002 = vrot.lane.b32.xlu0 %v1529, 96
        %v3003 = vpop.permute.xlu0 %3002
        %3004 = vrot.lane.b32.xlu0 %v2805, 96
        %v3005 = vpop.permute.xlu0 %3004
        %3006 = vrot.lane.b32.xlu0 %v2807, 96
        %v3007 = vpop.permute.xlu0 %3006
        %3008 = vrot.lane.b32.xlu0 %v1534, 96
        %v3009 = vpop.permute.xlu0 %3008
        %3010 = vrot.lane.b32.xlu0 %v1536, 96
        %v3011 = vpop.permute.xlu0 %3010
        %3012 = vrot.lane.b32.xlu0 %v2812, 96
        %v3013 = vpop.permute.xlu0 %3012
        %3014 = vrot.lane.b32.xlu0 %v2814, 96
        %v3015 = vpop.permute.xlu0 %3014
        %3016 = vrot.lane.b32.xlu0 %v1541, 96
        %v3017 = vpop.permute.xlu0 %3016
        %3018 = vrot.lane.b32.xlu0 %v1543, 96
        %v3019 = vpop.permute.xlu0 %3018
        %3020 = vrot.lane.b32.xlu0 %v2819, 96
        %v3021 = vpop.permute.xlu0 %3020
        %3022 = vrot.lane.b32.xlu0 %v2821, 96
        %v3023 = vpop.permute.xlu0 %3022
        %3024 = vrot.lane.b32.xlu0 %v1548, 96
        %v3025 = vpop.permute.xlu0 %3024
        %3026 = vrot.lane.b32.xlu0 %v1550, 96
        %v3027 = vpop.permute.xlu0 %3026
        %3028 = vrot.lane.b32.xlu0 %v2826, 96
        %v3029 = vpop.permute.xlu0 %3028
        %3030 = vrot.lane.b32.xlu0 %v2828, 96
        %v3031 = vpop.permute.xlu0 %3030
        %3032 = vrot.lane.b32.xlu0 %v1555, 96
        %v3033 = vpop.permute.xlu0 %3032
        %3034 = vrot.lane.b32.xlu0 %v1557, 96
        %v3035 = vpop.permute.xlu0 %3034
        %3036 = vrot.lane.b32.xlu0 %v2833, 96
        %v3037 = vpop.permute.xlu0 %3036
        %3038 = vrot.lane.b32.xlu0 %v2835, 96
        %v3039 = vpop.permute.xlu0 %3038
        %3040 = vrot.lane.b32.xlu0 %v1562, 96
        %v3041 = vpop.permute.xlu0 %3040
        %3042 = vrot.lane.b32.xlu0 %v1564, 96
        %v3043 = vpop.permute.xlu0 %3042
        %3044 = vrot.lane.b32.xlu0 %v2840, 96
        %v3045 = vpop.permute.xlu0 %3044
        %3046 = vrot.lane.b32.xlu0 %v2842, 96
        %v3047 = vpop.permute.xlu0 %3046
        %3048 = vrot.lane.b32.xlu0 %v1569, 96
        %v3049 = vpop.permute.xlu0 %3048
        %3050 = vrot.lane.b32.xlu0 %v1571, 96
        %v3051 = vpop.permute.xlu0 %3050
        %3052 = vrot.lane.b32.xlu0 %v2847, 96
        %v3053 = vpop.permute.xlu0 %3052
        %3054 = vrot.lane.b32.xlu0 %v2849, 96
        %v3055 = vpop.permute.xlu0 %3054
        %3056 = vrot.lane.b32.xlu0 %v1576, 96
        %v3057 = vpop.permute.xlu0 %3056
        %3058 = vrot.lane.b32.xlu0 %v1578, 96
        %v3059 = vpop.permute.xlu0 %3058
        %3060 = vrot.lane.b32.xlu0 %v2854, 96
        %v3061 = vpop.permute.xlu0 %3060
        %3062 = vrot.lane.b32.xlu0 %v2856, 96
        %v3063 = vpop.permute.xlu0 %3062
        %3064 = vrot.lane.b32.xlu0 %v1583, 96
        %v3065 = vpop.permute.xlu0 %3064
        %3066 = vrot.lane.b32.xlu0 %v1585, 96
        %v3067 = vpop.permute.xlu0 %3066
        %3068 = vrot.lane.b32.xlu0 %v2861, 96
        %v3069 = vpop.permute.xlu0 %3068
        %3070 = vrot.lane.b32.xlu0 %v2863, 96
        %v3071 = vpop.permute.xlu0 %3070
        %3072 = vrot.lane.b32.xlu0 %v1590, 96
        %v3073 = vpop.permute.xlu0 %3072
        %3074 = vrot.lane.b32.xlu0 %v1592, 96
        %v3075 = vpop.permute.xlu0 %3074
        %3076 = vrot.lane.b32.xlu0 %v2868, 96
        %v3077 = vpop.permute.xlu0 %3076
        %3078 = vrot.lane.b32.xlu0 %v2870, 96
        %v3079 = vpop.permute.xlu0 %3078
        %vm3080 = vcmask 785408
        %v3081 = vsel %vm3080, %v2953, %v2955
        %v3082 = vsel %vm3080, %v2955, %v2957
        %v3083 = vsel %vm3080, %v2957, %v2959
        %v3084 = vsel %vm3080, %v2961, %v2963
        %v3085 = vsel %vm3080, %v2963, %v2965
        %v3086 = vsel %vm3080, %v2965, %v2967
        %v3087 = vsel %vm3080, %v2969, %v2971
        %v3088 = vsel %vm3080, %v2971, %v2973
        %v3089 = vsel %vm3080, %v2973, %v2975
        %v3090 = vsel %vm3080, %v2977, %v2979
        %v3091 = vsel %vm3080, %v2979, %v2981
        %v3092 = vsel %vm3080, %v2981, %v2983
        %v3093 = vsel %vm3080, %v2985, %v2987
        %v3094 = vsel %vm3080, %v2987, %v2989
        %v3095 = vsel %vm3080, %v2989, %v2991
        %v3096 = vsel %vm3080, %v2993, %v2995
        %v3097 = vsel %vm3080, %v2995, %v2997
        %v3098 = vsel %vm3080, %v2997, %v2999
        %v3099 = vsel %vm3080, %v3001, %v3003
        %v3100 = vsel %vm3080, %v3003, %v3005
        %v3101 = vsel %vm3080, %v3005, %v3007
        %v3102 = vsel %vm3080, %v3009, %v3011
        %v3103 = vsel %vm3080, %v3011, %v3013
        %v3104 = vsel %vm3080, %v3013, %v3015
        %v3105 = vsel %vm3080, %v3017, %v3019
        %v3106 = vsel %vm3080, %v3019, %v3021
        %v3107 = vsel %vm3080, %v3021, %v3023
        %v3108 = vsel %vm3080, %v3025, %v3027
        %v3109 = vsel %vm3080, %v3027, %v3029
        %v3110 = vsel %vm3080, %v3029, %v3031
        %v3111 = vsel %vm3080, %v3033, %v3035
        %v3112 = vsel %vm3080, %v3035, %v3037
        %v3113 = vsel %vm3080, %v3037, %v3039
        %v3114 = vsel %vm3080, %v3041, %v3043
        %v3115 = vsel %vm3080, %v3043, %v3045
        %v3116 = vsel %vm3080, %v3045, %v3047
        %v3117 = vsel %vm3080, %v3049, %v3051
        %v3118 = vsel %vm3080, %v3051, %v3053
        %v3119 = vsel %vm3080, %v3053, %v3055
        %v3120 = vsel %vm3080, %v3057, %v3059
        %v3121 = vsel %vm3080, %v3059, %v3061
        %v3122 = vsel %vm3080, %v3061, %v3063
        %v3123 = vsel %vm3080, %v3065, %v3067
        %v3124 = vsel %vm3080, %v3067, %v3069
        %v3125 = vsel %vm3080, %v3069, %v3071
        %v3126 = vsel %vm3080, %v3073, %v3075
        %v3127 = vsel %vm3080, %v3075, %v3077
        %v3128 = vsel %vm3080, %v3077, %v3079
        %3177 = vst [vmem:[%s199] sm:$0xff] %v3081
        %3178 = vst [vmem:[%s199 + $0x8] sm:$0xff] %v3082
        %3179 = vst [vmem:[%s199 + $0x10] sm:$0xff] %v3083
        %3180 = vst [vmem:[%s199 + $0x18] sm:$0xff] %v3084
        %3181 = vst [vmem:[%s199 + $0x20] sm:$0xff] %v3085
        %3182 = vst [vmem:[%s199 + $0x28] sm:$0xff] %v3086
        %3183 = vst [vmem:[%s199 + $0x30] sm:$0xff] %v3087
        %3184 = vst [vmem:[%s199 + $0x38] sm:$0xff] %v3088
        %3185 = vst [vmem:[%s199 + $0x40] sm:$0xff] %v3089
        %3186 = vst [vmem:[%s199 + $0x48] sm:$0xff] %v3090
        %3187 = vst [vmem:[%s199 + $0x50] sm:$0xff] %v3091
        %3188 = vst [vmem:[%s199 + $0x58] sm:$0xff] %v3092
        %3189 = vst [vmem:[%s199 + $0x60] sm:$0xff] %v3093
        %3190 = vst [vmem:[%s199 + $0x68] sm:$0xff] %v3094
        %3191 = vst [vmem:[%s199 + $0x70] sm:$0xff] %v3095
        %3192 = vst [vmem:[%s199 + $0x78] sm:$0xff] %v3096
        %3193 = vst [vmem:[%s199 + $0x80] sm:$0xff] %v3097
        %3194 = vst [vmem:[%s199 + $0x88] sm:$0xff] %v3098
        %3195 = vst [vmem:[%s199 + $0x90] sm:$0xff] %v3099
        %3196 = vst [vmem:[%s199 + $0x98] sm:$0xff] %v3100
        %3197 = vst [vmem:[%s199 + $0xa0] sm:$0xff] %v3101
        %3198 = vst [vmem:[%s199 + $0xa8] sm:$0xff] %v3102
        %3199 = vst [vmem:[%s199 + $0xb0] sm:$0xff] %v3103
        %3200 = vst [vmem:[%s199 + $0xb8] sm:$0xff] %v3104
        %3201 = vst [vmem:[%s199 + $0xc0] sm:$0xff] %v3105
        %3202 = vst [vmem:[%s199 + $0xc8] sm:$0xff] %v3106
        %3203 = vst [vmem:[%s199 + $0xd0] sm:$0xff] %v3107
        %3204 = vst [vmem:[%s199 + $0xd8] sm:$0xff] %v3108
        %3205 = vst [vmem:[%s199 + $0xe0] sm:$0xff] %v3109
        %3206 = vst [vmem:[%s199 + $0xe8] sm:$0xff] %v3110
        %3207 = vst [vmem:[%s199 + $0xf0] sm:$0xff] %v3111
        %3208 = vst [vmem:[%s199 + $0xf8] sm:$0xff] %v3112
        %3209 = vst [vmem:[%s199 + $0x100] sm:$0xff] %v3113
        %3210 = vst [vmem:[%s199 + $0x108] sm:$0xff] %v3114
        %3211 = vst [vmem:[%s199 + $0x110] sm:$0xff] %v3115
        %3212 = vst [vmem:[%s199 + $0x118] sm:$0xff] %v3116
        %3213 = vst [vmem:[%s199 + $0x120] sm:$0xff] %v3117
        %3214 = vst [vmem:[%s199 + $0x128] sm:$0xff] %v3118
        %3215 = vst [vmem:[%s199 + $0x130] sm:$0xff] %v3119
        %3216 = vst [vmem:[%s199 + $0x138] sm:$0xff] %v3120
        %3217 = vst [vmem:[%s199 + $0x140] sm:$0xff] %v3121
        %3218 = vst [vmem:[%s199 + $0x148] sm:$0xff] %v3122
        %3219 = vst [vmem:[%s199 + $0x150] sm:$0xff] %v3123
        %3220 = vst [vmem:[%s199 + $0x158] sm:$0xff] %v3124
        %3221 = vst [vmem:[%s199 + $0x160] sm:$0xff] %v3125
        %3222 = vst [vmem:[%s199 + $0x168] sm:$0xff] %v3126
        %3223 = vst [vmem:[%s199 + $0x170] sm:$0xff] %v3127
        %3224 = vst [vmem:[%s199 + $0x178] sm:$0xff] %v3128
        %s3225 = smul.u32 16, %s19
        %p3226 = scmp.lt.s32.totalorder %s3225, 31
        %s3227 = scalar_select %p3226, %s3225, 31
        %s3228 = smul.addr %s3227, 8
        %s3229 = scalar_lea.vmem %s3, %s3228
        %s3230 = sand.u32 %s121, 1
        %s3231 = scalar_lea.sflag [#allocation3], %s3230
        %s3232 = sand.u32 %s121, 1
        %s3233 = smul.addr %s3232, 384
        %s3234 = scalar_lea.vmem [#allocation2], %s3233
        // Predicated region
        $region33: #{tpu_custom_call.1} parent=31 // pred_check
          %p3235 = pneg %p105
        $region34: #{tpu_custom_call.1} parent=31 // pred_check_branch
          %3237 = sbr.rel (%p3235) target = $region36
        $region35: #{tpu_custom_call.1} parent=31 // pred_region
          %s3238 = smul.u32 16, %s19
        $region36: #{tpu_custom_call.1} parent=31 // pred_fallthru
          _
        // Predicated region
        $region37: #{tpu_custom_call.1} parent=31 // pred_check
          %p3239 = pneg %p131
        $region38: #{tpu_custom_call.1} parent=31 // pred_check_branch
          %3241 = sbr.rel (%p3239) target = $region40
        $region39: #{tpu_custom_call.1} parent=31 // pred_region
          %s3242 = smul.u32 16, %s19
          %s3244 = ssub.s32 6144, 6144
          %3245 = vsyncadd %s3231, %s3244
          %s3246 = smul.addr %s3242, 3
          %s3247 = smul.addr %s3246, 128
          %s3248 = scalar_lea.hbm %s4, %s3247
          %s3249 = sshll.u32 %s3234, 4
          %s3250 = int_to_ptr.vmem [resolvable:$true] %s3249
          %3255 = dma.vmem_to_hbm [thread:$0]  %s3250, 6144, %s3248, %s3231, 384, 384, 24
        $region40: #{tpu_custom_call.1} parent=31 // pred_fallthru
          _
      $region32: #{tpu_custom_call.1} parent=5 // pred_fallthru
        _
      %p3256 = scmp.le.s32.totalorder 2, %s14
      // Predicated region
      $region41: #{tpu_custom_call.1} parent=5 // pred_check
        %p3257 = pneg %p3256
      $region42: #{tpu_custom_call.1} parent=5 // pred_check_branch
        %3259 = sbr.rel (%p3257) target = $region44
      $region43: #{tpu_custom_call.1} parent=5 // pred_region
        %s3260 = ssub.s32 %s14, 2
        // Predicated region
        $region45: #{tpu_custom_call.1} parent=43 // pred_check
          %p3261 = pneg %p111
        $region46: #{tpu_custom_call.1} parent=43 // pred_check_branch
          %3263 = sbr.rel (%p3261) target = $region48
        $region47: #{tpu_custom_call.1} parent=43 // pred_region
          %s3264 = smul.u32 16, %s20
          %p3265 = scmp.lt.s32.totalorder %s3264, 31
          %s3266 = scalar_select %p3265, %s3264, 31
          %s3267 = smul.addr %s3266, 8
          %s3268 = scalar_lea.vmem %s3, %s3267
        $region48: #{tpu_custom_call.1} parent=43 // pred_fallthru
          _
        // Predicated region
        $region49: #{tpu_custom_call.1} parent=43 // pred_check
          %p3269 = pneg %p137
        $region50: #{tpu_custom_call.1} parent=43 // pred_check_branch
          %3271 = sbr.rel (%p3269) target = $region52
        $region51: #{tpu_custom_call.1} parent=43 // pred_region
          %s3272 = sand.u32 %s122, 1
          %s3273 = scalar_lea.sflag [#allocation3], %s3272
          %s3274 = sand.u32 %s122, 1
          %s3275 = smul.addr %s3274, 384
          %s3276 = scalar_lea.vmem [#allocation2], %s3275
          %3277 = dma.done %s3273, 6144
        $region52: #{tpu_custom_call.1} parent=43 // pred_fallthru
          _
      $region44: #{tpu_custom_call.1} parent=5 // pred_fallthru
        _
    $region6: #{tpu_custom_call.1} parent=1 // loop_footer
      %s18 = sadd.s32 1, %s14
    $region7: #{tpu_custom_call.1} parent=1 // loop_footer_branch
      %13 = sbr.rel target = $region3
    $region8: #{tpu_custom_call.1} parent=1 // loop_exit
      _
    %3278 = vsyncpa [#allocation3], 1
    %s3279 = scalar_lea.sflag [#allocation3], 1
    %3280 = vsyncpa %s3279, 1

</llo_original>
